<compile_context>
chip_gen: v7x
topology: tpu7x:2x2x1
jax: 0.10.0
libtpu: 0.0.40
codegen_flags: <defaults>
</compile_context>

<pallas_src>
import jax
import jax.numpy as jnp
from jax import lax
from jax.experimental import pallas as pl
from jax.experimental.pallas import tpu as pltpu


NUM_LAYERS = 4
LEAKY_SLOPE = 0.2
BN_EPS = 0.8
BLOCK_DEFS = [(3, 16, False), (16, 32, True), (32, 64, True), (64, 128, True)]


def _round_up(n, m):
    return ((n + m - 1) // m) * m


# ------------------------------ Pallas kernel --------------------------------

def fused_discriminator_kernel(*refs):
    """Entire Discriminator forward for ONE image (grid axis = batch).

    refs layout (inputs then output):
      refs[0]                    x       (1, H1, K1pad)   bf16 flattened rows
      refs[1+3l .. 3+3l]         layer l: S    (3, Ho, H)       bf16 row gather
                                          A    (3*Kpad, Wo*Cout) bf16 unrolled w
                                          BSS  (3, Wo*Cout)      f32 rows:
                                               [conv bias, BN scale, BN shift]
      refs[-3]                   head weight (ds, ds*128)  f32
      refs[-2]                   head bias   (1, 1)        f32
      refs[-1]                   output      (1, 1, 1)     f32
    """
    x_ref = refs[0]
    wh_ref, bh_ref, o_ref = refs[-3], refs[-2], refs[-1]

    x = x_ref[0]                                   # (H1, K1pad) bf16
    for l in range(NUM_LAYERS):
        s_ref, a_ref, bss_ref = refs[1 + 3 * l], refs[2 + 3 * l], refs[3 + 3 * l]
        xb = x if x.dtype == jnp.bfloat16 else x.astype(jnp.bfloat16)
        # Row gather for the three kernel rows (pure 0/1 selection, exact in
        # bf16), lane-concatenated into one wide-K operand.
        rows = jnp.concatenate(
            [jnp.dot(s_ref[kh], xb,
                     preferred_element_type=jnp.float32).astype(jnp.bfloat16)
             for kh in range(3)],
            axis=1)                                # (Ho, 3*Kpad) bf16
        # Single fused contraction per layer (one MXU fill/drain).
        acc = jnp.dot(rows, a_ref[...],
                      preferred_element_type=jnp.float32)   # (Ho, Wo*Cout) f32
        bss = bss_ref[...]                         # (3, Wo*Cout) f32
        y = acc + bss[0:1, :]                      # + conv bias
        y = jnp.maximum(y, LEAKY_SLOPE * y)        # LeakyReLU(0.2)
        # Dropout2d(0.25) is identity in eval mode.
        # TODO(synk): training-mode Dropout2d / batch-statistics BatchNorm are
        # not implemented; this reproduces eval-mode semantics.
        x = y * bss[1:2, :] + bss[2:3, :]          # BatchNorm (or 1/0 if no BN)

    # adv_layer: Linear(128*ds*ds, 1) + Sigmoid as a per-image VPU multiply +
    # reduce (head weight pre-permuted into the activation layout; no
    # transpose, no N=1 MXU GEMV, no per-batch weight duplication).
    p = x * wh_ref[...]                            # (ds, ds*C) f32
    z = jnp.sum(p, axis=1, keepdims=True)          # (ds, 1)
    z = jnp.sum(z, axis=0, keepdims=True)          # (1, 1)
    z = z + bh_ref[...]
    o_ref[...] = (1.0 / (1.0 + jnp.exp(-z))).reshape(1, 1, 1)   # Sigmoid


# --------------------------- parameter construction --------------------------

def init_raw_params(key, img_size):
    """Synthetic parameters with the exact shapes of the nn.Module."""
    blocks = []
    for cin, cout, bn in BLOCK_DEFS:
        key, kw, kb = jax.random.split(key, 3)
        blocks.append(dict(
            w=jax.random.normal(kw, (cout, cin, 3, 3), jnp.float32) * 0.05,
            b=jax.random.normal(kb, (cout,), jnp.float32) * 0.05,
            bn=bn,
            gamma=jnp.ones((cout,), jnp.float32),   # BatchNorm2d default init
            beta=jnp.zeros((cout,), jnp.float32),
            mean=jnp.zeros((cout,), jnp.float32),
            var=jnp.ones((cout,), jnp.float32),
        ))
    ds = img_size // 2 ** NUM_LAYERS
    feat = 128 * ds * ds
    key, kw, kb = jax.random.split(key, 3)
    head = dict(w=jax.random.normal(kw, (1, feat), jnp.float32) * 0.02,  # torch (out,in)
                b=jax.random.normal(kb, (1,), jnp.float32) * 0.02)
    return blocks, head


def _row_gather_matrices(h_out, h_in):
    """Per-image S_kh[ho, r] = 1 iff r == 2*ho + kh - 1 (else 0; -1/h_in never
    match -> zero pad row)."""
    ho = jnp.arange(h_out)
    r = jnp.arange(h_in)
    mats = []
    for kh in range(3):
        tgt = 2 * ho + kh - 1
        mats.append((r[None, :] == tgt[:, None]).astype(jnp.float32))
    return jnp.stack(mats)                     # (3, Ho, H)


def _col_unrolled_weights(w_t, w_in, k_pad):
    """A_kh[w*Cin+ci, wo*Cout+co] = w_t[kh, kw, ci, co] with kw = w - 2*wo + 1
    (zero outside [0,3), i.e. the column zero-padding)."""
    _, _, cin, cout = w_t.shape                # (3, 3, Cin, Cout)
    wo_n = w_in // 2
    w_idx = jnp.arange(w_in)[:, None, None]
    kw_idx = jnp.arange(3)[None, :, None]
    wo_idx = jnp.arange(wo_n)[None, None, :]
    sel = (w_idx == 2 * wo_idx + kw_idx - 1).astype(jnp.float32)   # (W, 3, Wo)
    mats = []
    for kh in range(3):
        a = jnp.einsum("wkv,kcd->wcvd", sel, w_t[kh])
        a = a.reshape(w_in * cin, wo_n * cout)
        if k_pad > w_in * cin:                 # lane-pad the contraction dim
            a = jnp.pad(a, ((0, k_pad - w_in * cin), (0, 0)))
        mats.append(a)
    return jnp.stack(mats)                     # (3, Kpad, Wo*Cout)


def build_kernel_params(raw_blocks, raw_head, img_size):
    """Unroll the convs into lane-dense bf16 matmul operands and build the f32
    per-layer (bias, BN scale, BN shift) rows.  Batch-independent."""
    layers = []
    h = img_size
    for blk in raw_blocks:
        cout, cin = blk["w"].shape[0], blk["w"].shape[1]
        ho, wo = h // 2, h // 2
        if blk["bn"]:
            scale = blk["gamma"] / jnp.sqrt(blk["var"] + BN_EPS)
            shift = blk["beta"] - blk["mean"] * scale
        else:
            scale = jnp.ones((cout,), jnp.float32)
            shift = jnp.zeros((cout,), jnp.float32)

        w_t = jnp.transpose(blk["w"], (2, 3, 1, 0))        # (3,3,Cin,Cout)
        k_pad = _round_up(h * cin, 128)

        s_cat = _row_gather_matrices(ho, h).astype(jnp.bfloat16)       # (3,Ho,H)
        a_cat = _col_unrolled_weights(w_t, h, k_pad)                    # (3,Kpad,N)
        a_stack = a_cat.reshape(3 * k_pad, wo * cout).astype(jnp.bfloat16)
        # BN applied AFTER LeakyReLU (matches the module); scale kept explicit
        # so the kernel is valid for any gamma sign (no scale>0 fold needed).
        bss = jnp.stack([jnp.tile(blk["b"], (wo,)),
                         jnp.tile(scale, (wo,)),
                         jnp.tile(shift, (wo,))]).astype(jnp.float32)   # (3,N)
        layers.append((s_cat, a_stack, bss))
        h = ho

    # Head: permute the Linear weight from PyTorch's NCHW-flatten order
    # (f = c*ds*ds + h*ds + w) into the kernel's (row = h, lane = w*C + c)
    # layout.  Single copy (no per-batch tiling); kept f32 for the VPU multiply.
    ds = img_size // 2 ** NUM_LAYERS
    cfin = raw_blocks[-1]["w"].shape[0]
    wp = raw_head["w"].reshape(cfin, ds, ds)                  # [c, h, w]
    wp = jnp.transpose(wp, (1, 2, 0)).reshape(ds, ds * cfin)  # [h, w*C + c]
    b_head = raw_head["b"].reshape(1, 1).astype(jnp.float32)
    return {"layers": layers, "head": (wp.astype(jnp.float32), b_head)}


# ---------------------------------- forward ----------------------------------

def discriminator_forward(img_nchw, kparams):
    batch, chan, h, w = img_nchw.shape
    # NCHW -> per-image flattened rows (B, H, W*C), channel minor; lane-pad to
    # 128 and cast to bf16 (the first dot would cast anyway).
    x = jnp.transpose(img_nchw, (0, 2, 3, 1)).reshape(batch, h, w * chan)
    k1 = _round_up(w * chan, 128)
    if k1 > w * chan:
        x = jnp.pad(x, ((0, 0), (0, 0), (0, k1 - w * chan)))
    x = x.astype(jnp.bfloat16)

    args = [x]
    for layer in kparams["layers"]:
        args.extend(layer)
    args.extend(kparams["head"])

    # Per-image block for the input; every weight operand gets a constant
    # index_map (full-array block) so it stays VMEM-resident across grid steps.
    in_specs = [pl.BlockSpec((1, h, k1), lambda b: (b, 0, 0))]
    for a in args[1:]:
        in_specs.append(pl.BlockSpec(a.shape, lambda b, _n=a.ndim: (0,) * _n))

    # Advisory cost estimate so XLA can overlap the weight DMA of this call.
    flops = 0
    for s_cat, a_stack, _bss in kparams["layers"]:
        _, ho_l, h_l = s_cat.shape
        k3, n_l = a_stack.shape
        flops += batch * (2 * 3 * ho_l * h_l * (k3 // 3) + 2 * ho_l * k3 * n_l)
    wp, _ = kparams["head"]
    flops += batch * 2 * int(wp.size)
    bytes_accessed = sum(int(a.size) * a.dtype.itemsize for a in args) + batch * 4
    cost = pl.CostEstimate(flops=int(flops), transcendentals=int(batch),
                           bytes_accessed=int(bytes_accessed))

    out = pl.pallas_call(
        fused_discriminator_kernel,
        out_shape=jax.ShapeDtypeStruct((batch, 1, 1), jnp.float32),
        grid=(batch,),
        in_specs=in_specs,
        out_specs=pl.BlockSpec((1, 1, 1), lambda b: (b, 0, 0)),
        compiler_params=pltpu.CompilerParams(
            dimension_semantics=("parallel",),
            vmem_limit_bytes=32 * 1024 * 1024),
        cost_estimate=cost,
    )(*args)
    return out.reshape(batch, 1)


# ------------------------------ plain-JAX reference --------------------------

def reference_forward(img, raw_blocks, raw_head):
    """Straightforward XLA implementation of the PyTorch module (eval mode)."""
    x = img
    for blk in raw_blocks:
        x = lax.conv_general_dilated(
            x, blk["w"], window_strides=(2, 2), padding=((1, 1), (1, 1)),
            dimension_numbers=("NCHW", "OIHW", "NCHW"),
            precision=lax.Precision.HIGHEST)
        x = x + blk["b"][None, :, None, None]
        x = jnp.where(x >= 0, x, LEAKY_SLOPE * x)        # LeakyReLU(0.2)
        # Dropout2d(0.25): identity in eval mode.
        if blk["bn"]:
            scale = blk["gamma"] / jnp.sqrt(blk["var"] + BN_EPS)
            x = ((x - blk["mean"][None, :, None, None])
                 * scale[None, :, None, None] + blk["beta"][None, :, None, None])
    x = x.reshape(x.shape[0], -1)                        # out.view(B, -1)
    y = jnp.dot(x, raw_head["w"].T, precision=lax.Precision.HIGHEST) + raw_head["b"]
    return jax.nn.sigmoid(y)


# ------------------------------------ main ------------------------------------

if __name__ == "__main__":
    IMG_SIZE = 32          # small, divisible by 2**4
    BATCH = 2

    key = jax.random.PRNGKey(0)
    key, k_img = jax.random.split(key)
    img = jax.random.normal(k_img, (BATCH, 3, IMG_SIZE, IMG_SIZE), jnp.float32)

    raw_blocks, raw_head = init_raw_params(key, IMG_SIZE)
    kparams = build_kernel_params(raw_blocks, raw_head, IMG_SIZE)

    validity = jax.jit(discriminator_forward)(img, kparams)
    validity = jax.block_until_ready(validity)

    assert validity.shape == (BATCH, 1), validity.shape
    assert validity.dtype == jnp.float32
    assert bool(jnp.all((validity >= 0.0) & (validity <= 1.0)))

    # Cross-check against the plain-JAX f32 reference of the PyTorch module.
    # Tolerance accounts for bf16 matmul operands (f32 accumulation).
    ref = reference_forward(img, raw_blocks, raw_head)
    err = float(jnp.max(jnp.abs(validity - ref)))
    assert err < 3e-2, err

    print("KERNEL_OK")
</pallas_src>

<mosaic_0001>
module attributes {stable_mosaic.version = 11 : i64} {
  func.func @fused_discriminator_kernel(%arg0: i32, %arg1: memref<1x32x128xbf16, #tpu.memory_space<vmem>>, %arg2: memref<3x16x32xbf16, #tpu.memory_space<vmem>>, %arg3: memref<384x256xbf16, #tpu.memory_space<vmem>>, %arg4: memref<3x256xf32, #tpu.memory_space<vmem>>, %arg5: memref<3x8x16xbf16, #tpu.memory_space<vmem>>, %arg6: memref<768x256xbf16, #tpu.memory_space<vmem>>, %arg7: memref<3x256xf32, #tpu.memory_space<vmem>>, %arg8: memref<3x4x8xbf16, #tpu.memory_space<vmem>>, %arg9: memref<768x256xbf16, #tpu.memory_space<vmem>>, %arg10: memref<3x256xf32, #tpu.memory_space<vmem>>, %arg11: memref<3x2x4xbf16, #tpu.memory_space<vmem>>, %arg12: memref<768x256xbf16, #tpu.memory_space<vmem>>, %arg13: memref<3x256xf32, #tpu.memory_space<vmem>>, %arg14: memref<2x256xf32, #tpu.memory_space<vmem>>, %arg15: memref<1x1xf32, #tpu.memory_space<vmem>>, %arg16: memref<1x1x1xf32, #tpu.memory_space<vmem>>) attributes {dimension_semantics = [#tpu.dimension_semantics<parallel>], iteration_bounds = array<i64: 2>, scalar_prefetch = 0 : i64, scratch_operands = 0 : i64, tpu.core_type = #tpu.core_type<tc>, window_params = [{transform_indices = @transform_0, window_bounds = array<i64: 1, 32, 128>}, {pipeline_mode = #tpu.pipeline_mode<synchronous>, transform_indices = @transform_1, window_bounds = array<i64: 3, 16, 32>}, {pipeline_mode = #tpu.pipeline_mode<synchronous>, transform_indices = @transform_2, window_bounds = array<i64: 384, 256>}, {pipeline_mode = #tpu.pipeline_mode<synchronous>, transform_indices = @transform_3, window_bounds = array<i64: 3, 256>}, {pipeline_mode = #tpu.pipeline_mode<synchronous>, transform_indices = @transform_4, window_bounds = array<i64: 3, 8, 16>}, {pipeline_mode = #tpu.pipeline_mode<synchronous>, transform_indices = @transform_5, window_bounds = array<i64: 768, 256>}, {pipeline_mode = #tpu.pipeline_mode<synchronous>, transform_indices = @transform_6, window_bounds = array<i64: 3, 256>}, {pipeline_mode = #tpu.pipeline_mode<synchronous>, transform_indices = @transform_7, window_bounds = array<i64: 3, 4, 8>}, {pipeline_mode = #tpu.pipeline_mode<synchronous>, transform_indices = @transform_8, window_bounds = array<i64: 768, 256>}, {pipeline_mode = #tpu.pipeline_mode<synchronous>, transform_indices = @transform_9, window_bounds = array<i64: 3, 256>}, {pipeline_mode = #tpu.pipeline_mode<synchronous>, transform_indices = @transform_10, window_bounds = array<i64: 3, 2, 4>}, {pipeline_mode = #tpu.pipeline_mode<synchronous>, transform_indices = @transform_11, window_bounds = array<i64: 768, 256>}, {pipeline_mode = #tpu.pipeline_mode<synchronous>, transform_indices = @transform_12, window_bounds = array<i64: 3, 256>}, {pipeline_mode = #tpu.pipeline_mode<synchronous>, transform_indices = @transform_13, window_bounds = array<i64: 2, 256>}, {pipeline_mode = #tpu.pipeline_mode<synchronous>, transform_indices = @transform_14, window_bounds = array<i64: 1, 1>}, {transform_indices = @transform_15, window_bounds = array<i64: 1, 1, 1>}]} {
    %c0 = arith.constant 0 : index
    %c0_0 = arith.constant 0 : index
    %c0_1 = arith.constant 0 : index
    %0 = vector.load %arg1[%c0, %c0_0, %c0_1] : memref<1x32x128xbf16, #tpu.memory_space<vmem>>, vector<1x32x128xbf16>
    %1 = vector.shape_cast %0 : vector<1x32x128xbf16> to vector<32x128xbf16>
    %c0_2 = arith.constant 0 : index
    %c0_3 = arith.constant 0 : index
    %c0_4 = arith.constant 0 : index
    %2 = vector.load %arg2[%c0_2, %c0_3, %c0_4] : memref<3x16x32xbf16, #tpu.memory_space<vmem>>, vector<1x16x32xbf16>
    %3 = vector.shape_cast %2 : vector<1x16x32xbf16> to vector<16x32xbf16>
    %cst = arith.constant dense<0.000000e+00> : vector<16x128xf32>
    %4 = tpu.matmul %3, %1, %cst {dimension_numbers = #tpu.dot_dimension_numbers<[1], [0], [0], [1], [0, 0, 1, 1], [], []>} : vector<16x32xbf16>, vector<32x128xbf16>, vector<16x128xf32> -> vector<16x128xf32>
    %5 = arith.truncf %4 : vector<16x128xf32> to vector<16x128xbf16>
    %c1 = arith.constant 1 : index
    %c0_5 = arith.constant 0 : index
    %c0_6 = arith.constant 0 : index
    %6 = vector.load %arg2[%c1, %c0_5, %c0_6] : memref<3x16x32xbf16, #tpu.memory_space<vmem>>, vector<1x16x32xbf16>
    %7 = vector.shape_cast %6 : vector<1x16x32xbf16> to vector<16x32xbf16>
    %cst_7 = arith.constant dense<0.000000e+00> : vector<16x128xf32>
    %8 = tpu.matmul %7, %1, %cst_7 {dimension_numbers = #tpu.dot_dimension_numbers<[1], [0], [0], [1], [0, 0, 1, 1], [], []>} : vector<16x32xbf16>, vector<32x128xbf16>, vector<16x128xf32> -> vector<16x128xf32>
    %9 = arith.truncf %8 : vector<16x128xf32> to vector<16x128xbf16>
    %c2 = arith.constant 2 : index
    %c0_8 = arith.constant 0 : index
    %c0_9 = arith.constant 0 : index
    %10 = vector.load %arg2[%c2, %c0_8, %c0_9] : memref<3x16x32xbf16, #tpu.memory_space<vmem>>, vector<1x16x32xbf16>
    %11 = vector.shape_cast %10 : vector<1x16x32xbf16> to vector<16x32xbf16>
    %cst_10 = arith.constant dense<0.000000e+00> : vector<16x128xf32>
    %12 = tpu.matmul %11, %1, %cst_10 {dimension_numbers = #tpu.dot_dimension_numbers<[1], [0], [0], [1], [0, 0, 1, 1], [], []>} : vector<16x32xbf16>, vector<32x128xbf16>, vector<16x128xf32> -> vector<16x128xf32>
    %13 = arith.truncf %12 : vector<16x128xf32> to vector<16x128xbf16>
    %14 = tpu.concatenate %5, %9, %13 in 1 : vector<16x128xbf16>, vector<16x128xbf16>, vector<16x128xbf16> -> vector<16x384xbf16>
    %c0_11 = arith.constant 0 : index
    %c0_12 = arith.constant 0 : index
    %15 = vector.load %arg3[%c0_11, %c0_12] : memref<384x256xbf16, #tpu.memory_space<vmem>>, vector<384x256xbf16>
    %cst_13 = arith.constant dense<0.000000e+00> : vector<16x256xf32>
    %16 = tpu.matmul %14, %15, %cst_13 {dimension_numbers = #tpu.dot_dimension_numbers<[1], [0], [0], [1], [0, 0, 1, 1], [], []>} : vector<16x384xbf16>, vector<384x256xbf16>, vector<16x256xf32> -> vector<16x256xf32>
    %c0_14 = arith.constant 0 : index
    %c0_15 = arith.constant 0 : index
    %17 = vector.load %arg4[%c0_14, %c0_15] : memref<3x256xf32, #tpu.memory_space<vmem>>, vector<3x256xf32>
    %18 = vector.extract_strided_slice %17 {offsets = [0, 0], sizes = [1, 256], strides = [1, 1]} : vector<3x256xf32> to vector<1x256xf32>
    %19 = vector.broadcast %18 : vector<1x256xf32> to vector<16x256xf32>
    %20 = arith.addf %16, %19 : vector<16x256xf32>
    %cst_16 = arith.constant 2.000000e-01 : f32
    %21 = vector.broadcast %cst_16 : f32 to vector<16x256xf32>
    %22 = arith.mulf %21, %20 : vector<16x256xf32>
    %23 = arith.maximumf %20, %22 : vector<16x256xf32>
    %24 = vector.extract_strided_slice %17 {offsets = [1, 0], sizes = [1, 256], strides = [1, 1]} : vector<3x256xf32> to vector<1x256xf32>
    %25 = vector.broadcast %24 : vector<1x256xf32> to vector<16x256xf32>
    %26 = arith.mulf %23, %25 : vector<16x256xf32>
    %27 = vector.extract_strided_slice %17 {offsets = [2, 0], sizes = [1, 256], strides = [1, 1]} : vector<3x256xf32> to vector<1x256xf32>
    %28 = vector.broadcast %27 : vector<1x256xf32> to vector<16x256xf32>
    %29 = arith.addf %26, %28 : vector<16x256xf32>
    %30 = arith.truncf %29 : vector<16x256xf32> to vector<16x256xbf16>
    %c0_17 = arith.constant 0 : index
    %c0_18 = arith.constant 0 : index
    %c0_19 = arith.constant 0 : index
    %31 = vector.load %arg5[%c0_17, %c0_18, %c0_19] : memref<3x8x16xbf16, #tpu.memory_space<vmem>>, vector<1x8x16xbf16>
    %32 = vector.shape_cast %31 : vector<1x8x16xbf16> to vector<8x16xbf16>
    %cst_20 = arith.constant dense<0.000000e+00> : vector<8x256xf32>
    %33 = tpu.matmul %32, %30, %cst_20 {dimension_numbers = #tpu.dot_dimension_numbers<[1], [0], [0], [1], [0, 0, 1, 1], [], []>} : vector<8x16xbf16>, vector<16x256xbf16>, vector<8x256xf32> -> vector<8x256xf32>
    %34 = arith.truncf %33 : vector<8x256xf32> to vector<8x256xbf16>
    %c1_21 = arith.constant 1 : index
    %c0_22 = arith.constant 0 : index
    %c0_23 = arith.constant 0 : index
    %35 = vector.load %arg5[%c1_21, %c0_22, %c0_23] : memref<3x8x16xbf16, #tpu.memory_space<vmem>>, vector<1x8x16xbf16>
    %36 = vector.shape_cast %35 : vector<1x8x16xbf16> to vector<8x16xbf16>
    %cst_24 = arith.constant dense<0.000000e+00> : vector<8x256xf32>
    %37 = tpu.matmul %36, %30, %cst_24 {dimension_numbers = #tpu.dot_dimension_numbers<[1], [0], [0], [1], [0, 0, 1, 1], [], []>} : vector<8x16xbf16>, vector<16x256xbf16>, vector<8x256xf32> -> vector<8x256xf32>
    %38 = arith.truncf %37 : vector<8x256xf32> to vector<8x256xbf16>
    %c2_25 = arith.constant 2 : index
    %c0_26 = arith.constant 0 : index
    %c0_27 = arith.constant 0 : index
    %39 = vector.load %arg5[%c2_25, %c0_26, %c0_27] : memref<3x8x16xbf16, #tpu.memory_space<vmem>>, vector<1x8x16xbf16>
    %40 = vector.shape_cast %39 : vector<1x8x16xbf16> to vector<8x16xbf16>
    %cst_28 = arith.constant dense<0.000000e+00> : vector<8x256xf32>
    %41 = tpu.matmul %40, %30, %cst_28 {dimension_numbers = #tpu.dot_dimension_numbers<[1], [0], [0], [1], [0, 0, 1, 1], [], []>} : vector<8x16xbf16>, vector<16x256xbf16>, vector<8x256xf32> -> vector<8x256xf32>
    %42 = arith.truncf %41 : vector<8x256xf32> to vector<8x256xbf16>
    %43 = tpu.concatenate %34, %38, %42 in 1 : vector<8x256xbf16>, vector<8x256xbf16>, vector<8x256xbf16> -> vector<8x768xbf16>
    %c0_29 = arith.constant 0 : index
    %c0_30 = arith.constant 0 : index
    %44 = vector.load %arg6[%c0_29, %c0_30] : memref<768x256xbf16, #tpu.memory_space<vmem>>, vector<768x256xbf16>
    %cst_31 = arith.constant dense<0.000000e+00> : vector<8x256xf32>
    %45 = tpu.matmul %43, %44, %cst_31 {dimension_numbers = #tpu.dot_dimension_numbers<[1], [0], [0], [1], [0, 0, 1, 1], [], []>} : vector<8x768xbf16>, vector<768x256xbf16>, vector<8x256xf32> -> vector<8x256xf32>
    %c0_32 = arith.constant 0 : index
    %c0_33 = arith.constant 0 : index
    %46 = vector.load %arg7[%c0_32, %c0_33] : memref<3x256xf32, #tpu.memory_space<vmem>>, vector<3x256xf32>
    %47 = vector.extract_strided_slice %46 {offsets = [0, 0], sizes = [1, 256], strides = [1, 1]} : vector<3x256xf32> to vector<1x256xf32>
    %48 = vector.broadcast %47 : vector<1x256xf32> to vector<8x256xf32>
    %49 = arith.addf %45, %48 : vector<8x256xf32>
    %cst_34 = arith.constant 2.000000e-01 : f32
    %50 = vector.broadcast %cst_34 : f32 to vector<8x256xf32>
    %51 = arith.mulf %50, %49 : vector<8x256xf32>
    %52 = arith.maximumf %49, %51 : vector<8x256xf32>
    %53 = vector.extract_strided_slice %46 {offsets = [1, 0], sizes = [1, 256], strides = [1, 1]} : vector<3x256xf32> to vector<1x256xf32>
    %54 = vector.broadcast %53 : vector<1x256xf32> to vector<8x256xf32>
    %55 = arith.mulf %52, %54 : vector<8x256xf32>
    %56 = vector.extract_strided_slice %46 {offsets = [2, 0], sizes = [1, 256], strides = [1, 1]} : vector<3x256xf32> to vector<1x256xf32>
    %57 = vector.broadcast %56 : vector<1x256xf32> to vector<8x256xf32>
    %58 = arith.addf %55, %57 : vector<8x256xf32>
    %59 = arith.truncf %58 : vector<8x256xf32> to vector<8x256xbf16>
    %c0_35 = arith.constant 0 : index
    %c0_36 = arith.constant 0 : index
    %c0_37 = arith.constant 0 : index
    %60 = vector.load %arg8[%c0_35, %c0_36, %c0_37] : memref<3x4x8xbf16, #tpu.memory_space<vmem>>, vector<1x4x8xbf16>
    %61 = vector.shape_cast %60 : vector<1x4x8xbf16> to vector<4x8xbf16>
    %cst_38 = arith.constant dense<0.000000e+00> : vector<4x256xf32>
    %62 = tpu.matmul %61, %59, %cst_38 {dimension_numbers = #tpu.dot_dimension_numbers<[1], [0], [0], [1], [0, 0, 1, 1], [], []>} : vector<4x8xbf16>, vector<8x256xbf16>, vector<4x256xf32> -> vector<4x256xf32>
    %63 = arith.truncf %62 : vector<4x256xf32> to vector<4x256xbf16>
    %c1_39 = arith.constant 1 : index
    %c0_40 = arith.constant 0 : index
    %c0_41 = arith.constant 0 : index
    %64 = vector.load %arg8[%c1_39, %c0_40, %c0_41] : memref<3x4x8xbf16, #tpu.memory_space<vmem>>, vector<1x4x8xbf16>
    %65 = vector.shape_cast %64 : vector<1x4x8xbf16> to vector<4x8xbf16>
    %cst_42 = arith.constant dense<0.000000e+00> : vector<4x256xf32>
    %66 = tpu.matmul %65, %59, %cst_42 {dimension_numbers = #tpu.dot_dimension_numbers<[1], [0], [0], [1], [0, 0, 1, 1], [], []>} : vector<4x8xbf16>, vector<8x256xbf16>, vector<4x256xf32> -> vector<4x256xf32>
    %67 = arith.truncf %66 : vector<4x256xf32> to vector<4x256xbf16>
    %c2_43 = arith.constant 2 : index
    %c0_44 = arith.constant 0 : index
    %c0_45 = arith.constant 0 : index
    %68 = vector.load %arg8[%c2_43, %c0_44, %c0_45] : memref<3x4x8xbf16, #tpu.memory_space<vmem>>, vector<1x4x8xbf16>
    %69 = vector.shape_cast %68 : vector<1x4x8xbf16> to vector<4x8xbf16>
    %cst_46 = arith.constant dense<0.000000e+00> : vector<4x256xf32>
    %70 = tpu.matmul %69, %59, %cst_46 {dimension_numbers = #tpu.dot_dimension_numbers<[1], [0], [0], [1], [0, 0, 1, 1], [], []>} : vector<4x8xbf16>, vector<8x256xbf16>, vector<4x256xf32> -> vector<4x256xf32>
    %71 = arith.truncf %70 : vector<4x256xf32> to vector<4x256xbf16>
    %72 = tpu.concatenate %63, %67, %71 in 1 : vector<4x256xbf16>, vector<4x256xbf16>, vector<4x256xbf16> -> vector<4x768xbf16>
    %c0_47 = arith.constant 0 : index
    %c0_48 = arith.constant 0 : index
    %73 = vector.load %arg9[%c0_47, %c0_48] : memref<768x256xbf16, #tpu.memory_space<vmem>>, vector<768x256xbf16>
    %cst_49 = arith.constant dense<0.000000e+00> : vector<4x256xf32>
    %74 = tpu.matmul %72, %73, %cst_49 {dimension_numbers = #tpu.dot_dimension_numbers<[1], [0], [0], [1], [0, 0, 1, 1], [], []>} : vector<4x768xbf16>, vector<768x256xbf16>, vector<4x256xf32> -> vector<4x256xf32>
    %c0_50 = arith.constant 0 : index
    %c0_51 = arith.constant 0 : index
    %75 = vector.load %arg10[%c0_50, %c0_51] : memref<3x256xf32, #tpu.memory_space<vmem>>, vector<3x256xf32>
    %76 = vector.extract_strided_slice %75 {offsets = [0, 0], sizes = [1, 256], strides = [1, 1]} : vector<3x256xf32> to vector<1x256xf32>
    %77 = vector.broadcast %76 : vector<1x256xf32> to vector<4x256xf32>
    %78 = arith.addf %74, %77 : vector<4x256xf32>
    %cst_52 = arith.constant 2.000000e-01 : f32
    %79 = vector.broadcast %cst_52 : f32 to vector<4x256xf32>
    %80 = arith.mulf %79, %78 : vector<4x256xf32>
    %81 = arith.maximumf %78, %80 : vector<4x256xf32>
    %82 = vector.extract_strided_slice %75 {offsets = [1, 0], sizes = [1, 256], strides = [1, 1]} : vector<3x256xf32> to vector<1x256xf32>
    %83 = vector.broadcast %82 : vector<1x256xf32> to vector<4x256xf32>
    %84 = arith.mulf %81, %83 : vector<4x256xf32>
    %85 = vector.extract_strided_slice %75 {offsets = [2, 0], sizes = [1, 256], strides = [1, 1]} : vector<3x256xf32> to vector<1x256xf32>
    %86 = vector.broadcast %85 : vector<1x256xf32> to vector<4x256xf32>
    %87 = arith.addf %84, %86 : vector<4x256xf32>
    %88 = arith.truncf %87 : vector<4x256xf32> to vector<4x256xbf16>
    %c0_53 = arith.constant 0 : index
    %c0_54 = arith.constant 0 : index
    %c0_55 = arith.constant 0 : index
    %89 = vector.load %arg11[%c0_53, %c0_54, %c0_55] : memref<3x2x4xbf16, #tpu.memory_space<vmem>>, vector<1x2x4xbf16>
    %90 = vector.shape_cast %89 : vector<1x2x4xbf16> to vector<2x4xbf16>
    %cst_56 = arith.constant dense<0.000000e+00> : vector<2x256xf32>
    %91 = tpu.matmul %90, %88, %cst_56 {dimension_numbers = #tpu.dot_dimension_numbers<[1], [0], [0], [1], [0, 0, 1, 1], [], []>} : vector<2x4xbf16>, vector<4x256xbf16>, vector<2x256xf32> -> vector<2x256xf32>
    %92 = arith.truncf %91 : vector<2x256xf32> to vector<2x256xbf16>
    %c1_57 = arith.constant 1 : index
    %c0_58 = arith.constant 0 : index
    %c0_59 = arith.constant 0 : index
    %93 = vector.load %arg11[%c1_57, %c0_58, %c0_59] : memref<3x2x4xbf16, #tpu.memory_space<vmem>>, vector<1x2x4xbf16>
    %94 = vector.shape_cast %93 : vector<1x2x4xbf16> to vector<2x4xbf16>
    %cst_60 = arith.constant dense<0.000000e+00> : vector<2x256xf32>
    %95 = tpu.matmul %94, %88, %cst_60 {dimension_numbers = #tpu.dot_dimension_numbers<[1], [0], [0], [1], [0, 0, 1, 1], [], []>} : vector<2x4xbf16>, vector<4x256xbf16>, vector<2x256xf32> -> vector<2x256xf32>
    %96 = arith.truncf %95 : vector<2x256xf32> to vector<2x256xbf16>
    %c2_61 = arith.constant 2 : index
    %c0_62 = arith.constant 0 : index
    %c0_63 = arith.constant 0 : index
    %97 = vector.load %arg11[%c2_61, %c0_62, %c0_63] : memref<3x2x4xbf16, #tpu.memory_space<vmem>>, vector<1x2x4xbf16>
    %98 = vector.shape_cast %97 : vector<1x2x4xbf16> to vector<2x4xbf16>
    %cst_64 = arith.constant dense<0.000000e+00> : vector<2x256xf32>
    %99 = tpu.matmul %98, %88, %cst_64 {dimension_numbers = #tpu.dot_dimension_numbers<[1], [0], [0], [1], [0, 0, 1, 1], [], []>} : vector<2x4xbf16>, vector<4x256xbf16>, vector<2x256xf32> -> vector<2x256xf32>
    %100 = arith.truncf %99 : vector<2x256xf32> to vector<2x256xbf16>
    %101 = tpu.concatenate %92, %96, %100 in 1 : vector<2x256xbf16>, vector<2x256xbf16>, vector<2x256xbf16> -> vector<2x768xbf16>
    %c0_65 = arith.constant 0 : index
    %c0_66 = arith.constant 0 : index
    %102 = vector.load %arg12[%c0_65, %c0_66] : memref<768x256xbf16, #tpu.memory_space<vmem>>, vector<768x256xbf16>
    %cst_67 = arith.constant dense<0.000000e+00> : vector<2x256xf32>
    %103 = tpu.matmul %101, %102, %cst_67 {dimension_numbers = #tpu.dot_dimension_numbers<[1], [0], [0], [1], [0, 0, 1, 1], [], []>} : vector<2x768xbf16>, vector<768x256xbf16>, vector<2x256xf32> -> vector<2x256xf32>
    %c0_68 = arith.constant 0 : index
    %c0_69 = arith.constant 0 : index
    %104 = vector.load %arg13[%c0_68, %c0_69] : memref<3x256xf32, #tpu.memory_space<vmem>>, vector<3x256xf32>
    %105 = vector.extract_strided_slice %104 {offsets = [0, 0], sizes = [1, 256], strides = [1, 1]} : vector<3x256xf32> to vector<1x256xf32>
    %106 = vector.broadcast %105 : vector<1x256xf32> to vector<2x256xf32>
    %107 = arith.addf %103, %106 : vector<2x256xf32>
    %cst_70 = arith.constant 2.000000e-01 : f32
    %108 = vector.broadcast %cst_70 : f32 to vector<2x256xf32>
    %109 = arith.mulf %108, %107 : vector<2x256xf32>
    %110 = arith.maximumf %107, %109 : vector<2x256xf32>
    %111 = vector.extract_strided_slice %104 {offsets = [1, 0], sizes = [1, 256], strides = [1, 1]} : vector<3x256xf32> to vector<1x256xf32>
    %112 = vector.broadcast %111 : vector<1x256xf32> to vector<2x256xf32>
    %113 = arith.mulf %110, %112 : vector<2x256xf32>
    %114 = vector.extract_strided_slice %104 {offsets = [2, 0], sizes = [1, 256], strides = [1, 1]} : vector<3x256xf32> to vector<1x256xf32>
    %115 = vector.broadcast %114 : vector<1x256xf32> to vector<2x256xf32>
    %116 = arith.addf %113, %115 : vector<2x256xf32>
    %c0_71 = arith.constant 0 : index
    %c0_72 = arith.constant 0 : index
    %117 = vector.load %arg14[%c0_71, %c0_72] : memref<2x256xf32, #tpu.memory_space<vmem>>, vector<2x256xf32>
    %118 = arith.mulf %116, %117 : vector<2x256xf32>
    %cst_73 = arith.constant dense<0.000000e+00> : vector<2xf32>
    %119 = vector.multi_reduction <add>, %118, %cst_73 [1] : vector<2x256xf32> to vector<2xf32>
    %120 = vector.shape_cast %119 : vector<2xf32> to vector<2x1xf32>
    %cst_74 = arith.constant dense<0.000000e+00> : vector<1xf32>
    %121 = vector.multi_reduction <add>, %120, %cst_74 [0] : vector<2x1xf32> to vector<1xf32>
    %122 = vector.shape_cast %121 : vector<1xf32> to vector<1x1xf32>
    %c0_75 = arith.constant 0 : index
    %c0_76 = arith.constant 0 : index
    %123 = vector.load %arg15[%c0_75, %c0_76] : memref<1x1xf32, #tpu.memory_space<vmem>>, vector<1x1xf32>
    %124 = arith.addf %122, %123 : vector<1x1xf32>
    %cst_77 = arith.constant 0.000000e+00 : f32
    %125 = vector.broadcast %cst_77 : f32 to vector<1x1xf32>
    %126 = arith.subf %125, %124 : vector<1x1xf32>
    %127 = math.exp %126 : vector<1x1xf32>
    %cst_78 = arith.constant 1.000000e+00 : f32
    %128 = vector.broadcast %cst_78 : f32 to vector<1x1xf32>
    %129 = arith.addf %128, %127 : vector<1x1xf32>
    %cst_79 = arith.constant 1.000000e+00 : f32
    %130 = vector.broadcast %cst_79 : f32 to vector<1x1xf32>
    %131 = arith.divf %130, %129 : vector<1x1xf32>
    %132 = vector.shape_cast %131 : vector<1x1xf32> to vector<1x1x1xf32>
    %c0_80 = arith.constant 0 : index
    %c0_81 = arith.constant 0 : index
    %c0_82 = arith.constant 0 : index
    %133 = vector.load %arg16[%c0_80, %c0_81, %c0_82] : memref<1x1x1xf32, #tpu.memory_space<vmem>>, vector<1x1x1xf32>
    tpu.vector_store %arg16[%c0_80, %c0_81, %c0_82], %132 {strides = array<i32>} : memref<1x1x1xf32, #tpu.memory_space<vmem>>, vector<1x1x1xf32>,
    return
  }
  func.func @transform_0(%arg0: i32) -> (i32, i32, i32) {
    %c0_i32 = arith.constant 0 : i32
    %c0_i32_0 = arith.constant 0 : i32
    %c0_i32_1 = arith.constant 0 : i32
    return %arg0, %c0_i32, %c0_i32_0 : i32, i32, i32
  }
  func.func @transform_1(%arg0: i32) -> (i32, i32, i32) {
    %c0_i32 = arith.constant 0 : i32
    %c0_i32_0 = arith.constant 0 : i32
    %c0_i32_1 = arith.constant 0 : i32
    %c0_i32_2 = arith.constant 0 : i32
    return %c0_i32, %c0_i32_0, %c0_i32_1 : i32, i32, i32
  }
  func.func @transform_2(%arg0: i32) -> (i32, i32) {
    %c0_i32 = arith.constant 0 : i32
    %c0_i32_0 = arith.constant 0 : i32
    %c0_i32_1 = arith.constant 0 : i32
    return %c0_i32, %c0_i32_0 : i32, i32
  }
  func.func @transform_3(%arg0: i32) -> (i32, i32) {
    %c0_i32 = arith.constant 0 : i32
    %c0_i32_0 = arith.constant 0 : i32
    %c0_i32_1 = arith.constant 0 : i32
    return %c0_i32, %c0_i32_0 : i32, i32
  }
  func.func @transform_4(%arg0: i32) -> (i32, i32, i32) {
    %c0_i32 = arith.constant 0 : i32
    %c0_i32_0 = arith.constant 0 : i32
    %c0_i32_1 = arith.constant 0 : i32
    %c0_i32_2 = arith.constant 0 : i32
    return %c0_i32, %c0_i32_0, %c0_i32_1 : i32, i32, i32
  }
  func.func @transform_5(%arg0: i32) -> (i32, i32) {
    %c0_i32 = arith.constant 0 : i32
    %c0_i32_0 = arith.constant 0 : i32
    %c0_i32_1 = arith.constant 0 : i32
    return %c0_i32, %c0_i32_0 : i32, i32
  }
  func.func @transform_6(%arg0: i32) -> (i32, i32) {
    %c0_i32 = arith.constant 0 : i32
    %c0_i32_0 = arith.constant 0 : i32
    %c0_i32_1 = arith.constant 0 : i32
    return %c0_i32, %c0_i32_0 : i32, i32
  }
  func.func @transform_7(%arg0: i32) -> (i32, i32, i32) {
    %c0_i32 = arith.constant 0 : i32
    %c0_i32_0 = arith.constant 0 : i32
    %c0_i32_1 = arith.constant 0 : i32
    %c0_i32_2 = arith.constant 0 : i32
    return %c0_i32, %c0_i32_0, %c0_i32_1 : i32, i32, i32
  }
  func.func @transform_8(%arg0: i32) -> (i32, i32) {
    %c0_i32 = arith.constant 0 : i32
    %c0_i32_0 = arith.constant 0 : i32
    %c0_i32_1 = arith.constant 0 : i32
    return %c0_i32, %c0_i32_0 : i32, i32
  }
  func.func @transform_9(%arg0: i32) -> (i32, i32) {
    %c0_i32 = arith.constant 0 : i32
    %c0_i32_0 = arith.constant 0 : i32
    %c0_i32_1 = arith.constant 0 : i32
    return %c0_i32, %c0_i32_0 : i32, i32
  }
  func.func @transform_10(%arg0: i32) -> (i32, i32, i32) {
    %c0_i32 = arith.constant 0 : i32
    %c0_i32_0 = arith.constant 0 : i32
    %c0_i32_1 = arith.constant 0 : i32
    %c0_i32_2 = arith.constant 0 : i32
    return %c0_i32, %c0_i32_0, %c0_i32_1 : i32, i32, i32
  }
  func.func @transform_11(%arg0: i32) -> (i32, i32) {
    %c0_i32 = arith.constant 0 : i32
    %c0_i32_0 = arith.constant 0 : i32
    %c0_i32_1 = arith.constant 0 : i32
    return %c0_i32, %c0_i32_0 : i32, i32
  }
  func.func @transform_12(%arg0: i32) -> (i32, i32) {
    %c0_i32 = arith.constant 0 : i32
    %c0_i32_0 = arith.constant 0 : i32
    %c0_i32_1 = arith.constant 0 : i32
    return %c0_i32, %c0_i32_0 : i32, i32
  }
  func.func @transform_13(%arg0: i32) -> (i32, i32) {
    %c0_i32 = arith.constant 0 : i32
    %c0_i32_0 = arith.constant 0 : i32
    %c0_i32_1 = arith.constant 0 : i32
    return %c0_i32, %c0_i32_0 : i32, i32
  }
  func.func @transform_14(%arg0: i32) -> (i32, i32) {
    %c0_i32 = arith.constant 0 : i32
    %c0_i32_0 = arith.constant 0 : i32
    %c0_i32_1 = arith.constant 0 : i32
    return %c0_i32, %c0_i32_0 : i32, i32
  }
  func.func @transform_15(%arg0: i32) -> (i32, i32, i32) {
    %c0_i32 = arith.constant 0 : i32
    %c0_i32_0 = arith.constant 0 : i32
    %c0_i32_1 = arith.constant 0 : i32
    return %arg0, %c0_i32, %c0_i32_0 : i32, i32, i32
  }
}

</mosaic_0001>

<llo_original>
// kernel: discriminator_forward.1
$region0: #{discriminator_forward.1}
  #allocation0 [shape = 'u32[]', space=smem, size = 0x4, offset = 0x4, fixed_abs, tag = 'smem constant byte address 0x4 - core index']
  #allocation1 [shape = 'u32[144,128]{1,0:T(1,128)}', space=vmem, size = 0x12000, scoped, tag = 'internal scratch']
  #allocation2 [shape = 'f32[1,1]{1,0:T(1,128)S(1)}', space=vmem, size = 0x200, scoped, tag = 'scoped memory for discriminator_forward.1']
  %s0 = inlined_call_operand.vmem [shape: bf16[2,32,128], index: 0, kind: input, shape index: {}]
  %s1 = inlined_call_operand.vmem [shape: bf16[3,16,32], index: 1, kind: input, shape index: {}]
  %s2 = inlined_call_operand.vmem [shape: bf16[384,256], index: 2, kind: input, shape index: {}]
  %s3 = inlined_call_operand.vmem [shape: f32[3,256], index: 3, kind: input, shape index: {}]
  %s4 = inlined_call_operand.vmem [shape: bf16[3,8,16], index: 4, kind: input, shape index: {}]
  %s5 = inlined_call_operand.hbm [shape: bf16[768,256], index: 5, kind: input, shape index: {}]
  %s6 = inlined_call_operand.vmem [shape: f32[3,256], index: 6, kind: input, shape index: {}]
  %s7 = inlined_call_operand.vmem [shape: bf16[3,4,8], index: 7, kind: input, shape index: {}]
  %s8 = inlined_call_operand.hbm [shape: bf16[768,256], index: 8, kind: input, shape index: {}]
  %s9 = inlined_call_operand.vmem [shape: f32[3,256], index: 9, kind: input, shape index: {}]
  %s10 = inlined_call_operand.vmem [shape: bf16[3,2,4], index: 10, kind: input, shape index: {}]
  %s11 = inlined_call_operand.hbm [shape: bf16[768,256], index: 11, kind: input, shape index: {}]
  %s12 = inlined_call_operand.vmem [shape: f32[3,256], index: 12, kind: input, shape index: {}]
  %s13 = inlined_call_operand.vmem [shape: f32[2,256], index: 13, kind: input, shape index: {}]
  %s14 = inlined_call_operand.<no memory space> [shape: f32[1,1], index: 14, kind: input, shape index: {}]
  %s15 = inlined_call_operand.vmem [shape: f32[2,1,1], index: 15, kind: output, shape index: {}]
  %s16 = sld [smem:[#allocation0]]
  $region105: #{discriminator_forward.1} parent=0
    _
  %s18 = ssub.s32 1, %s16
  %s19 = scalar_select 0, %s18, %s16
  %v20 = vstv %s14
  %21 = vst [vmem:[#allocation2] sm:$0x1] %v20
  $region1: #{discriminator_forward.1} parent=0
    #allocation3 [shape = 'u8[393216]{0}', space=vmem, size = 0x60000, scoped, tag = 'input window, operand 5, single buffered']
    #allocation4 [shape = 's32[2]{0}', space=sflag, size = 0x8, scoped, tag = 'scoped memory for discriminator_forward.1']
    #allocation5 [shape = 'u8[393216]{0}', space=vmem, size = 0x60000, scoped, tag = 'input window, operand 8, single buffered']
    #allocation6 [shape = 's32[1]{0}', space=sflag, size = 0x4, scoped, tag = 'scoped memory for discriminator_forward.1']
    #allocation7 [shape = 'u8[393216]{0}', space=vmem, size = 0x60000, scoped, tag = 'input window, operand 11, single buffered']
    %22 = vsyncpa [#allocation4], 0
    %23 = vsyncpa [#allocation6], 0
    loop: start=0, step=1, limit=4
    $region2: #{discriminator_forward.1} parent=1 // loop_pre_header
      _
    $region3: #{discriminator_forward.1} parent=1 // loop_header
      %s25 = sphi 0, %s29
      %p26 = scmp.ge.s32.totalorder %s25, 4
      %s35 = sphi 0, %s37
      %s38 = sphi 0, %s35
      %s39 = sphi 0, %s38
      %s55 = sphi 0, %s39
      %s59 = sphi 0, %s59
      %s61 = sphi 0, %s59
      %s62 = sphi 0, %s61
      %s76 = sphi 0, %s62
      %s80 = sphi 0, %s80
      %s82 = sphi 0, %s80
      %s83 = sphi 0, %s82
      %s97 = sphi 0, %s83
      %s101 = sphi 0, %s101
      %s103 = sphi 0, %s101
      %s104 = sphi 0, %s103
      %s118 = sphi 0, %s104
      %s122 = sphi 0, %s122
      %s124 = sphi 0, %s122
      %s125 = sphi 0, %s124
      %s139 = sphi 0, %s125
      %s143 = sphi 0, %s143
      %s145 = sphi 0, %s143
      %s146 = sphi 0, %s145
      %s160 = sphi 0, %s146
      %s164 = sphi 0, %s164
      %s166 = sphi 0, %s164
      %s167 = sphi 0, %s166
      %s181 = sphi 0, %s167
      %s185 = sphi 0, %s185
      %s187 = sphi 0, %s185
      %s188 = sphi 0, %s187
      %s202 = sphi 0, %s188
      %s206 = sphi 0, %s206
      %s208 = sphi 0, %s206
      %s209 = sphi 0, %s208
      %s223 = sphi 0, %s209
      %s227 = sphi 0, %s227
      %s229 = sphi 0, %s227
      %s230 = sphi 0, %s229
      %s244 = sphi 0, %s230
      %s248 = sphi 0, %s248
      %s250 = sphi 0, %s248
      %s251 = sphi 0, %s250
      %s265 = sphi 0, %s251
      %s269 = sphi 0, %s269
      %s271 = sphi 0, %s269
      %s272 = sphi 0, %s271
      %s286 = sphi 0, %s272
      %s290 = sphi 0, %s290
      %s292 = sphi 0, %s290
      %s293 = sphi 0, %s292
      %s307 = sphi 0, %s293
      %s311 = sphi 0, %s311
      %s313 = sphi 0, %s311
      %s314 = sphi 0, %s313
      %s328 = sphi 0, %s314
      %s332 = sphi 0, %s332
      %s334 = sphi 0, %s332
      %s335 = sphi 0, %s334
      %s349 = sphi 0, %s335
      %s355 = sphi 0, %s357
      %s358 = sphi 0, %s355
      %s359 = sphi 0, %s358
      %s375 = sphi 0, %s359
    $region4: #{discriminator_forward.1} parent=1 // loop_header_branch
      %28 = sbr.rel (%p26) target = $region8
    $region5: #{discriminator_forward.1} parent=1 // loop_body
      %s30 = ssub.s32 %s25, 1
      %s31 = ssub.s32 %s25, 2
      %s32 = sadd.s32 %s25, 1
      %s33 = ssub.s32 %s25, %s32
      %p34 = scmp.eq.s32.totalorder %s33, 0
      %s36 = sadd.s32 %s35, 1
      %s37 = scalar_select %p34, %s35, %s36
      %p40 = pneg %p34
      %p41 = scmp.eq.s32.totalorder %s25, 1
      %p42 = por %p40, %p41
      %p43 = scmp.ne.s32.totalorder %s35, %s38
      %p44 = scmp.eq.s32.totalorder %s25, 0
      %p45 = por %p43, %p44
      %p46 = scmp.ne.s32.totalorder %s35, %s38
      %p47 = scmp.eq.s32.totalorder %s30, 1
      %p48 = por %p46, %p47
      %p49 = scmp.ne.s32.totalorder %s38, %s39
      %p50 = scmp.eq.s32.totalorder %s30, 0
      %p51 = por %p49, %p50
      %p52 = scmp.ne.s32.totalorder %s38, %s39
      %p53 = scmp.eq.s32.totalorder %s31, 1
      %p54 = por %p52, %p53
      %p56 = scmp.ne.s32.totalorder %s39, %s55
      %p57 = scmp.eq.s32.totalorder %s31, 0
      %p58 = por %p56, %p57
      %s60 = sadd.s32 %s59, 1
      %p63 = scmp.eq.s32.totalorder %s25, 1
      %p64 = scmp.ne.s32.totalorder %s59, %s61
      %p65 = scmp.eq.s32.totalorder %s25, 0
      %p66 = por %p64, %p65
      %p67 = scmp.ne.s32.totalorder %s59, %s61
      %p68 = scmp.eq.s32.totalorder %s30, 1
      %p69 = por %p67, %p68
      %p70 = scmp.ne.s32.totalorder %s61, %s62
      %p71 = scmp.eq.s32.totalorder %s30, 0
      %p72 = por %p70, %p71
      %p73 = scmp.ne.s32.totalorder %s61, %s62
      %p74 = scmp.eq.s32.totalorder %s31, 1
      %p75 = por %p73, %p74
      %p77 = scmp.ne.s32.totalorder %s62, %s76
      %p78 = scmp.eq.s32.totalorder %s31, 0
      %p79 = por %p77, %p78
      %s81 = sadd.s32 %s80, 1
      %p84 = scmp.eq.s32.totalorder %s25, 1
      %p85 = scmp.ne.s32.totalorder %s80, %s82
      %p86 = scmp.eq.s32.totalorder %s25, 0
      %p87 = por %p85, %p86
      %p88 = scmp.ne.s32.totalorder %s80, %s82
      %p89 = scmp.eq.s32.totalorder %s30, 1
      %p90 = por %p88, %p89
      %p91 = scmp.ne.s32.totalorder %s82, %s83
      %p92 = scmp.eq.s32.totalorder %s30, 0
      %p93 = por %p91, %p92
      %p94 = scmp.ne.s32.totalorder %s82, %s83
      %p95 = scmp.eq.s32.totalorder %s31, 1
      %p96 = por %p94, %p95
      %p98 = scmp.ne.s32.totalorder %s83, %s97
      %p99 = scmp.eq.s32.totalorder %s31, 0
      %p100 = por %p98, %p99
      %s102 = sadd.s32 %s101, 1
      %p105 = scmp.eq.s32.totalorder %s25, 1
      %p106 = scmp.ne.s32.totalorder %s101, %s103
      %p107 = scmp.eq.s32.totalorder %s25, 0
      %p108 = por %p106, %p107
      %p109 = scmp.ne.s32.totalorder %s101, %s103
      %p110 = scmp.eq.s32.totalorder %s30, 1
      %p111 = por %p109, %p110
      %p112 = scmp.ne.s32.totalorder %s103, %s104
      %p113 = scmp.eq.s32.totalorder %s30, 0
      %p114 = por %p112, %p113
      %p115 = scmp.ne.s32.totalorder %s103, %s104
      %p116 = scmp.eq.s32.totalorder %s31, 1
      %p117 = por %p115, %p116
      %p119 = scmp.ne.s32.totalorder %s104, %s118
      %p120 = scmp.eq.s32.totalorder %s31, 0
      %p121 = por %p119, %p120
      %s123 = sadd.s32 %s122, 1
      %p126 = scmp.eq.s32.totalorder %s25, 1
      %p127 = scmp.ne.s32.totalorder %s122, %s124
      %p128 = scmp.eq.s32.totalorder %s25, 0
      %p129 = por %p127, %p128
      %p130 = scmp.ne.s32.totalorder %s122, %s124
      %p131 = scmp.eq.s32.totalorder %s30, 1
      %p132 = por %p130, %p131
      %p133 = scmp.ne.s32.totalorder %s124, %s125
      %p134 = scmp.eq.s32.totalorder %s30, 0
      %p135 = por %p133, %p134
      %p136 = scmp.ne.s32.totalorder %s124, %s125
      %p137 = scmp.eq.s32.totalorder %s31, 1
      %p138 = por %p136, %p137
      %p140 = scmp.ne.s32.totalorder %s125, %s139
      %p141 = scmp.eq.s32.totalorder %s31, 0
      %p142 = por %p140, %p141
      %s144 = sadd.s32 %s143, 1
      %p147 = scmp.eq.s32.totalorder %s25, 1
      %p148 = scmp.ne.s32.totalorder %s143, %s145
      %p149 = scmp.eq.s32.totalorder %s25, 0
      %p150 = por %p148, %p149
      %p151 = scmp.ne.s32.totalorder %s143, %s145
      %p152 = scmp.eq.s32.totalorder %s30, 1
      %p153 = por %p151, %p152
      %p154 = scmp.ne.s32.totalorder %s145, %s146
      %p155 = scmp.eq.s32.totalorder %s30, 0
      %p156 = por %p154, %p155
      %p157 = scmp.ne.s32.totalorder %s145, %s146
      %p158 = scmp.eq.s32.totalorder %s31, 1
      %p159 = por %p157, %p158
      %p161 = scmp.ne.s32.totalorder %s146, %s160
      %p162 = scmp.eq.s32.totalorder %s31, 0
      %p163 = por %p161, %p162
      %s165 = sadd.s32 %s164, 1
      %p168 = scmp.eq.s32.totalorder %s25, 1
      %p169 = scmp.ne.s32.totalorder %s164, %s166
      %p170 = scmp.eq.s32.totalorder %s25, 0
      %p171 = por %p169, %p170
      %p172 = scmp.ne.s32.totalorder %s164, %s166
      %p173 = scmp.eq.s32.totalorder %s30, 1
      %p174 = por %p172, %p173
      %p175 = scmp.ne.s32.totalorder %s166, %s167
      %p176 = scmp.eq.s32.totalorder %s30, 0
      %p177 = por %p175, %p176
      %p178 = scmp.ne.s32.totalorder %s166, %s167
      %p179 = scmp.eq.s32.totalorder %s31, 1
      %p180 = por %p178, %p179
      %p182 = scmp.ne.s32.totalorder %s167, %s181
      %p183 = scmp.eq.s32.totalorder %s31, 0
      %p184 = por %p182, %p183
      %s186 = sadd.s32 %s185, 1
      %p189 = scmp.eq.s32.totalorder %s25, 1
      %p190 = scmp.ne.s32.totalorder %s185, %s187
      %p191 = scmp.eq.s32.totalorder %s25, 0
      %p192 = por %p190, %p191
      %p193 = scmp.ne.s32.totalorder %s185, %s187
      %p194 = scmp.eq.s32.totalorder %s30, 1
      %p195 = por %p193, %p194
      %p196 = scmp.ne.s32.totalorder %s187, %s188
      %p197 = scmp.eq.s32.totalorder %s30, 0
      %p198 = por %p196, %p197
      %p199 = scmp.ne.s32.totalorder %s187, %s188
      %p200 = scmp.eq.s32.totalorder %s31, 1
      %p201 = por %p199, %p200
      %p203 = scmp.ne.s32.totalorder %s188, %s202
      %p204 = scmp.eq.s32.totalorder %s31, 0
      %p205 = por %p203, %p204
      %s207 = sadd.s32 %s206, 1
      %p210 = scmp.eq.s32.totalorder %s25, 1
      %p211 = scmp.ne.s32.totalorder %s206, %s208
      %p212 = scmp.eq.s32.totalorder %s25, 0
      %p213 = por %p211, %p212
      %p214 = scmp.ne.s32.totalorder %s206, %s208
      %p215 = scmp.eq.s32.totalorder %s30, 1
      %p216 = por %p214, %p215
      %p217 = scmp.ne.s32.totalorder %s208, %s209
      %p218 = scmp.eq.s32.totalorder %s30, 0
      %p219 = por %p217, %p218
      %p220 = scmp.ne.s32.totalorder %s208, %s209
      %p221 = scmp.eq.s32.totalorder %s31, 1
      %p222 = por %p220, %p221
      %p224 = scmp.ne.s32.totalorder %s209, %s223
      %p225 = scmp.eq.s32.totalorder %s31, 0
      %p226 = por %p224, %p225
      %s228 = sadd.s32 %s227, 1
      %p231 = scmp.eq.s32.totalorder %s25, 1
      %p232 = scmp.ne.s32.totalorder %s227, %s229
      %p233 = scmp.eq.s32.totalorder %s25, 0
      %p234 = por %p232, %p233
      %p235 = scmp.ne.s32.totalorder %s227, %s229
      %p236 = scmp.eq.s32.totalorder %s30, 1
      %p237 = por %p235, %p236
      %p238 = scmp.ne.s32.totalorder %s229, %s230
      %p239 = scmp.eq.s32.totalorder %s30, 0
      %p240 = por %p238, %p239
      %p241 = scmp.ne.s32.totalorder %s229, %s230
      %p242 = scmp.eq.s32.totalorder %s31, 1
      %p243 = por %p241, %p242
      %p245 = scmp.ne.s32.totalorder %s230, %s244
      %p246 = scmp.eq.s32.totalorder %s31, 0
      %p247 = por %p245, %p246
      %s249 = sadd.s32 %s248, 1
      %p252 = scmp.eq.s32.totalorder %s25, 1
      %p253 = scmp.ne.s32.totalorder %s248, %s250
      %p254 = scmp.eq.s32.totalorder %s25, 0
      %p255 = por %p253, %p254
      %p256 = scmp.ne.s32.totalorder %s248, %s250
      %p257 = scmp.eq.s32.totalorder %s30, 1
      %p258 = por %p256, %p257
      %p259 = scmp.ne.s32.totalorder %s250, %s251
      %p260 = scmp.eq.s32.totalorder %s30, 0
      %p261 = por %p259, %p260
      %p262 = scmp.ne.s32.totalorder %s250, %s251
      %p263 = scmp.eq.s32.totalorder %s31, 1
      %p264 = por %p262, %p263
      %p266 = scmp.ne.s32.totalorder %s251, %s265
      %p267 = scmp.eq.s32.totalorder %s31, 0
      %p268 = por %p266, %p267
      %s270 = sadd.s32 %s269, 1
      %p273 = scmp.eq.s32.totalorder %s25, 1
      %p274 = scmp.ne.s32.totalorder %s269, %s271
      %p275 = scmp.eq.s32.totalorder %s25, 0
      %p276 = por %p274, %p275
      %p277 = scmp.ne.s32.totalorder %s269, %s271
      %p278 = scmp.eq.s32.totalorder %s30, 1
      %p279 = por %p277, %p278
      %p280 = scmp.ne.s32.totalorder %s271, %s272
      %p281 = scmp.eq.s32.totalorder %s30, 0
      %p282 = por %p280, %p281
      %p283 = scmp.ne.s32.totalorder %s271, %s272
      %p284 = scmp.eq.s32.totalorder %s31, 1
      %p285 = por %p283, %p284
      %p287 = scmp.ne.s32.totalorder %s272, %s286
      %p288 = scmp.eq.s32.totalorder %s31, 0
      %p289 = por %p287, %p288
      %s291 = sadd.s32 %s290, 1
      %p294 = scmp.eq.s32.totalorder %s25, 1
      %p295 = scmp.ne.s32.totalorder %s290, %s292
      %p296 = scmp.eq.s32.totalorder %s25, 0
      %p297 = por %p295, %p296
      %p298 = scmp.ne.s32.totalorder %s290, %s292
      %p299 = scmp.eq.s32.totalorder %s30, 1
      %p300 = por %p298, %p299
      %p301 = scmp.ne.s32.totalorder %s292, %s293
      %p302 = scmp.eq.s32.totalorder %s30, 0
      %p303 = por %p301, %p302
      %p304 = scmp.ne.s32.totalorder %s292, %s293
      %p305 = scmp.eq.s32.totalorder %s31, 1
      %p306 = por %p304, %p305
      %p308 = scmp.ne.s32.totalorder %s293, %s307
      %p309 = scmp.eq.s32.totalorder %s31, 0
      %p310 = por %p308, %p309
      %s312 = sadd.s32 %s311, 1
      %p315 = scmp.eq.s32.totalorder %s25, 1
      %p316 = scmp.ne.s32.totalorder %s311, %s313
      %p317 = scmp.eq.s32.totalorder %s25, 0
      %p318 = por %p316, %p317
      %p319 = scmp.ne.s32.totalorder %s311, %s313
      %p320 = scmp.eq.s32.totalorder %s30, 1
      %p321 = por %p319, %p320
      %p322 = scmp.ne.s32.totalorder %s313, %s314
      %p323 = scmp.eq.s32.totalorder %s30, 0
      %p324 = por %p322, %p323
      %p325 = scmp.ne.s32.totalorder %s313, %s314
      %p326 = scmp.eq.s32.totalorder %s31, 1
      %p327 = por %p325, %p326
      %p329 = scmp.ne.s32.totalorder %s314, %s328
      %p330 = scmp.eq.s32.totalorder %s31, 0
      %p331 = por %p329, %p330
      %s333 = sadd.s32 %s332, 1
      %p336 = scmp.eq.s32.totalorder %s25, 1
      %p337 = scmp.ne.s32.totalorder %s332, %s334
      %p338 = scmp.eq.s32.totalorder %s25, 0
      %p339 = por %p337, %p338
      %p340 = scmp.ne.s32.totalorder %s332, %s334
      %p341 = scmp.eq.s32.totalorder %s30, 1
      %p342 = por %p340, %p341
      %p343 = scmp.ne.s32.totalorder %s334, %s335
      %p344 = scmp.eq.s32.totalorder %s30, 0
      %p345 = por %p343, %p344
      %p346 = scmp.ne.s32.totalorder %s334, %s335
      %p347 = scmp.eq.s32.totalorder %s31, 1
      %p348 = por %p346, %p347
      %p350 = scmp.ne.s32.totalorder %s335, %s349
      %p351 = scmp.eq.s32.totalorder %s31, 0
      %p352 = por %p350, %p351
      %s353 = ssub.s32 %s25, %s32
      %p354 = scmp.eq.s32.totalorder %s353, 0
      %s356 = sadd.s32 %s355, 1
      %s357 = scalar_select %p354, %s355, %s356
      %p360 = pneg %p354
      %p361 = scmp.eq.s32.totalorder %s25, 1
      %p362 = por %p360, %p361
      %p363 = scmp.ne.s32.totalorder %s355, %s358
      %p364 = scmp.eq.s32.totalorder %s25, 0
      %p365 = por %p363, %p364
      %p366 = scmp.ne.s32.totalorder %s355, %s358
      %p367 = scmp.eq.s32.totalorder %s30, 1
      %p368 = por %p366, %p367
      %p369 = scmp.ne.s32.totalorder %s358, %s359
      %p370 = scmp.eq.s32.totalorder %s30, 0
      %p371 = por %p369, %p370
      %p372 = scmp.ne.s32.totalorder %s358, %s359
      %p373 = scmp.eq.s32.totalorder %s31, 1
      %p374 = por %p372, %p373
      %p376 = scmp.ne.s32.totalorder %s359, %s375
      %p377 = scmp.eq.s32.totalorder %s31, 0
      %p378 = por %p376, %p377
      %p379 = scmp.le.s32.totalorder 1, %s25
      %p380 = scmp.lt.s32.totalorder %s25, 3
      %p381 = pnand %p379, %p380
      %p382 = pneg %p381
      // Predicated region
      $region9: #{discriminator_forward.1} parent=5 // pred_check
        _
      $region10: #{discriminator_forward.1} parent=5 // pred_check_branch
        %384 = sbr.rel (%p381) target = $region12
      $region11: #{discriminator_forward.1} parent=5 // pred_region
        %s385 = ssub.s32 %s25, 1
        // Predicated region
        $region13: #{discriminator_forward.1} parent=11 // pred_check
          %p386 = pneg %p72
        $region14: #{discriminator_forward.1} parent=11 // pred_check_branch
          %388 = sbr.rel (%p386) target = $region16
        $region15: #{discriminator_forward.1} parent=11 // pred_region
          _
        $region16: #{discriminator_forward.1} parent=11 // pred_fallthru
          _
        // Predicated region
        $region17: #{discriminator_forward.1} parent=11 // pred_check
          %p389 = pneg %p93
        $region18: #{discriminator_forward.1} parent=11 // pred_check_branch
          %391 = sbr.rel (%p389) target = $region20
        $region19: #{discriminator_forward.1} parent=11 // pred_region
          _
        $region20: #{discriminator_forward.1} parent=11 // pred_fallthru
          _
        // Predicated region
        $region21: #{discriminator_forward.1} parent=11 // pred_check
          %p392 = pneg %p114
        $region22: #{discriminator_forward.1} parent=11 // pred_check_branch
          %394 = sbr.rel (%p392) target = $region24
        $region23: #{discriminator_forward.1} parent=11 // pred_region
          _
        $region24: #{discriminator_forward.1} parent=11 // pred_fallthru
          _
        // Predicated region
        $region25: #{discriminator_forward.1} parent=11 // pred_check
          %p395 = pneg %p135
        $region26: #{discriminator_forward.1} parent=11 // pred_check_branch
          %397 = sbr.rel (%p395) target = $region28
        $region27: #{discriminator_forward.1} parent=11 // pred_region
          _
        $region28: #{discriminator_forward.1} parent=11 // pred_fallthru
          _
        // Predicated region
        $region29: #{discriminator_forward.1} parent=11 // pred_check
          %p398 = pneg %p156
        $region30: #{discriminator_forward.1} parent=11 // pred_check_branch
          %400 = sbr.rel (%p398) target = $region32
        $region31: #{discriminator_forward.1} parent=11 // pred_region
          %s402 = ssub.s32 12288, 12288
          %403 = vsyncadd [#allocation4], %s402
          %s404 = sshll.u32 [#allocation3], 4
          %s405 = int_to_ptr.vmem [resolvable:$true] %s404
          %410 = dma.hbm_to_vmem [thread:$0]  %s5, 12288, %s405, [#allocation4], 128, 128, 8
        $region32: #{discriminator_forward.1} parent=11 // pred_fallthru
          _
        // Predicated region
        $region33: #{discriminator_forward.1} parent=11 // pred_check
          %p411 = pneg %p177
        $region34: #{discriminator_forward.1} parent=11 // pred_check_branch
          %413 = sbr.rel (%p411) target = $region36
        $region35: #{discriminator_forward.1} parent=11 // pred_region
          _
        $region36: #{discriminator_forward.1} parent=11 // pred_fallthru
          _
        // Predicated region
        $region37: #{discriminator_forward.1} parent=11 // pred_check
          %p414 = pneg %p198
        $region38: #{discriminator_forward.1} parent=11 // pred_check_branch
          %416 = sbr.rel (%p414) target = $region40
        $region39: #{discriminator_forward.1} parent=11 // pred_region
          _
        $region40: #{discriminator_forward.1} parent=11 // pred_fallthru
          _
        // Predicated region
        $region41: #{discriminator_forward.1} parent=11 // pred_check
          %p417 = pneg %p219
        $region42: #{discriminator_forward.1} parent=11 // pred_check_branch
          %419 = sbr.rel (%p417) target = $region44
        $region43: #{discriminator_forward.1} parent=11 // pred_region
          %s421 = ssub.s32 12288, 12288
          %422 = vsyncadd [#allocation6], %s421
          %s423 = sshll.u32 [#allocation5], 4
          %s424 = int_to_ptr.vmem [resolvable:$true] %s423
          %429 = dma.hbm_to_vmem [thread:$0]  %s8, 12288, %s424, [#allocation6], 128, 128, 8
        $region44: #{discriminator_forward.1} parent=11 // pred_fallthru
          _
        // Predicated region
        $region45: #{discriminator_forward.1} parent=11 // pred_check
          %p430 = pneg %p240
        $region46: #{discriminator_forward.1} parent=11 // pred_check_branch
          %432 = sbr.rel (%p430) target = $region48
        $region47: #{discriminator_forward.1} parent=11 // pred_region
          _
        $region48: #{discriminator_forward.1} parent=11 // pred_fallthru
          _
        // Predicated region
        $region49: #{discriminator_forward.1} parent=11 // pred_check
          %p433 = pneg %p261
        $region50: #{discriminator_forward.1} parent=11 // pred_check_branch
          %435 = sbr.rel (%p433) target = $region52
        $region51: #{discriminator_forward.1} parent=11 // pred_region
          _
        $region52: #{discriminator_forward.1} parent=11 // pred_fallthru
          _
        // Predicated region
        $region53: #{discriminator_forward.1} parent=11 // pred_check
          %p436 = pneg %p282
        $region54: #{discriminator_forward.1} parent=11 // pred_check_branch
          %438 = sbr.rel (%p436) target = $region56
        $region55: #{discriminator_forward.1} parent=11 // pred_region
          %s440 = ssub.s32 12288, 12288
          %441 = vsyncadd [#allocation6], %s440
          %s442 = sshll.u32 [#allocation7], 4
          %s443 = int_to_ptr.vmem [resolvable:$true] %s442
          %448 = dma.hbm_to_vmem [thread:$0]  %s11, 12288, %s443, [#allocation6], 128, 128, 8
        $region56: #{discriminator_forward.1} parent=11 // pred_fallthru
          _
        // Predicated region
        $region57: #{discriminator_forward.1} parent=11 // pred_check
          %p449 = pneg %p303
        $region58: #{discriminator_forward.1} parent=11 // pred_check_branch
          %451 = sbr.rel (%p449) target = $region60
        $region59: #{discriminator_forward.1} parent=11 // pred_region
          _
        $region60: #{discriminator_forward.1} parent=11 // pred_fallthru
          _
        // Predicated region
        $region61: #{discriminator_forward.1} parent=11 // pred_check
          %p452 = pneg %p324
        $region62: #{discriminator_forward.1} parent=11 // pred_check_branch
          %454 = sbr.rel (%p452) target = $region64
        $region63: #{discriminator_forward.1} parent=11 // pred_region
          _
        $region64: #{discriminator_forward.1} parent=11 // pred_fallthru
          _
        // Predicated region
        $region65: #{discriminator_forward.1} parent=11 // pred_check
          %p455 = pneg %p345
        $region66: #{discriminator_forward.1} parent=11 // pred_check_branch
          %457 = sbr.rel (%p455) target = $region68
        $region67: #{discriminator_forward.1} parent=11 // pred_region
          _
        $region68: #{discriminator_forward.1} parent=11 // pred_fallthru
          _
      $region12: #{discriminator_forward.1} parent=5 // pred_fallthru
        _
      %p458 = scmp.lt.s32.totalorder %s25, 2
      // Predicated region
      $region69: #{discriminator_forward.1} parent=5 // pred_check
        %p459 = pneg %p458
      $region70: #{discriminator_forward.1} parent=5 // pred_check_branch
        %461 = sbr.rel (%p459) target = $region72
      $region71: #{discriminator_forward.1} parent=5 // pred_region
        // Predicated region
        $region73: #{discriminator_forward.1} parent=71 // pred_check
          %p462 = pneg %p45
        $region74: #{discriminator_forward.1} parent=71 // pred_check_branch
          %464 = sbr.rel (%p462) target = $region76
        $region75: #{discriminator_forward.1} parent=71 // pred_region
          %p465 = scmp.lt.s32.totalorder %s25, 1
          %s466 = scalar_select %p465, %s25, 1
          %s467 = smul.addr %s466, 4
          %s468 = smul.addr %s467, 4
          %s469 = scalar_lea.vmem %s0, %s468
        $region76: #{discriminator_forward.1} parent=71 // pred_fallthru
          _
      $region72: #{discriminator_forward.1} parent=5 // pred_fallthru
        _
      %p470 = scmp.le.s32.totalorder 1, %s25
      %p471 = scmp.lt.s32.totalorder %s25, 3
      %p472 = pnand %p470, %p471
      %p473 = pneg %p472
      // Predicated region
      $region77: #{discriminator_forward.1} parent=5 // pred_check
        _
      $region78: #{discriminator_forward.1} parent=5 // pred_check_branch
        %475 = sbr.rel (%p472) target = $region80
      $region79: #{discriminator_forward.1} parent=5 // pred_region
        %s476 = ssub.s32 %s25, 1
        // Predicated region
        $region81: #{discriminator_forward.1} parent=79 // pred_check
          %p477 = pneg %p156
        $region82: #{discriminator_forward.1} parent=79 // pred_check_branch
          %479 = sbr.rel (%p477) target = $region84
        $region83: #{discriminator_forward.1} parent=79 // pred_region
          %480 = dma.done [#allocation4], 12288
        $region84: #{discriminator_forward.1} parent=79 // pred_fallthru
          _
        // Predicated region
        $region85: #{discriminator_forward.1} parent=79 // pred_check
          %p481 = pneg %p219
        $region86: #{discriminator_forward.1} parent=79 // pred_check_branch
          %483 = sbr.rel (%p481) target = $region88
        $region87: #{discriminator_forward.1} parent=79 // pred_region
          %484 = dma.done [#allocation6], 12288
        $region88: #{discriminator_forward.1} parent=79 // pred_fallthru
          _
        // Predicated region
        $region89: #{discriminator_forward.1} parent=79 // pred_check
          %p485 = pneg %p282
        $region90: #{discriminator_forward.1} parent=79 // pred_check_branch
          %487 = sbr.rel (%p485) target = $region92
        $region91: #{discriminator_forward.1} parent=79 // pred_region
          %488 = dma.done [#allocation6], 12288
        $region92: #{discriminator_forward.1} parent=79 // pred_fallthru
          _
        %p489 = scmp.lt.s32.totalorder %s30, 1
        %s490 = scalar_select %p489, %s30, 1
        %s491 = smul.addr %s490, 4
        %s492 = smul.addr %s491, 4
        %s493 = scalar_lea.vmem %s0, %s492
        %p494 = pneg %p51
        %p495 = pneg %p48
        %p496 = pneg %p72
        %p497 = pneg %p69
        %p498 = pneg %p93
        %p499 = pneg %p90
        %p500 = pneg %p114
        %p501 = pneg %p111
        %p502 = pneg %p135
        %p503 = pneg %p132
        %p504 = pneg %p156
        %p505 = pneg %p153
        %p506 = pneg %p177
        %p507 = pneg %p174
        %p508 = pneg %p198
        %p509 = pneg %p195
        %p510 = pneg %p219
        %p511 = pneg %p216
        %p512 = pneg %p240
        %p513 = pneg %p237
        %p514 = pneg %p261
        %p515 = pneg %p258
        %p516 = pneg %p282
        %p517 = pneg %p279
        %p518 = pneg %p303
        %p519 = pneg %p300
        %p520 = pneg %p324
        %p521 = pneg %p321
        %p522 = pneg %p345
        %p523 = pneg %p342
        %p524 = pneg %p371
        %p525 = pneg %p368
        %p526 = scmp.lt.s32.totalorder %s30, 1
        %s527 = scalar_select %p526, %s30, 1
        %s528 = scalar_lea.vmem %s15, %s527
        %p529 = scmp.lt.s32.totalorder %s30, 1
        %s530 = scalar_select %p529, %s30, 1
        %s531 = smul.addr %s530, 4
        %s532 = smul.addr %s531, 4
        %s533 = scalar_lea.vmem %s0, %s532
        %p534 = scmp.lt.s32.totalorder %s30, 1
        %s535 = scalar_select %p534, %s30, 1
        %s536 = scalar_lea.vmem %s15, %s535
        %v538 = vld [vmem:[%s533] sm:$0xf]
        %v539 = vld [vmem:[%s533 + $0x4] sm:$0xf]
        %v540 = vld [vmem:[%s533 + $0x8] sm:$0xf]
        %v541 = vld [vmem:[%s533 + $0xc] sm:$0xf]
        %v542 = vld [vmem:[%s1] sm:$0xf]
        %v543 = vld [vmem:[%s1 + $0x4] sm:$0xf]
        %v546 = vunpack.c.l.b16 %v542
        %v547 = vunpack.c.l.b16 %v543
        %v548 = vpack.c.b16 %v547, %v546
        %v553 = vunpack.c.l.b16 %v538
        %v554 = vunpack.c.l.b16 %v539
        %v555 = vunpack.c.l.b16 %v540
        %v556 = vunpack.c.l.b16 %v541
        %v557 = vpack.c.b16 %v554, %v553
        %v558 = vpack.c.b16 %v556, %v555
        %vm561 = vcmask 261120
        %v563 = vsel %vm561, %v548, 0
        %565 = vmatprep.subr.bf16.mxu0 0
        %566 = vmatpush1.bf16.msra.mxu0 %v557
        %567 = vmatprep.subr.bf16.mxu0 0
        %568 = vmatpush1.bf16.msra.mxu0 %v558
        %569 = vmatprep.subr.bf16.mxu0 0
        %570 = vmatpush1.bf16.msra.mxu0 0
        %571 = vmatprep.subr.bf16.mxu0 0
        %572 = vmatpush1.bf16.msra.mxu0 0
        %573 = vmatprep.subr.bf16.mxu0 0
        %574 = vmatpush1.bf16.msra.mxu0 0
        %575 = vmatprep.subr.bf16.mxu0 0
        %576 = vmatpush1.bf16.msra.mxu0 0
        %577 = vmatprep.subr.bf16.mxu0 0
        %578 = vmatpush1.bf16.msra.mxu0 0
        %579 = vmatprep.subr.bf16.mxu0 0
        %580 = vmatpush1.bf16.msra.mxu0 0
        %581 = vmatprep.subr.bf16.mxu0 0
        %582 = vmatpush1.bf16.msra.mxu0 0
        %583 = vmatprep.subr.bf16.mxu0 0
        %584 = vmatpush1.bf16.msra.mxu0 0
        %585 = vmatprep.subr.bf16.mxu0 0
        %586 = vmatpush1.bf16.msra.mxu0 0
        %587 = vmatprep.subr.bf16.mxu0 0
        %588 = vmatpush1.bf16.msra.mxu0 0
        %589 = vmatprep.subr.bf16.mxu0 0
        %590 = vmatpush1.bf16.msra.mxu0 0
        %591 = vmatprep.subr.bf16.mxu0 0
        %592 = vmatpush1.bf16.msra.mxu0 0
        %593 = vmatprep.subr.bf16.mxu0 0
        %594 = vmatpush1.bf16.msra.mxu0 0
        %595 = vmatprep.subr.bf16.mxu0 0
        %596 = vmatpush1.bf16.msra.mxu0 0
        %597 = vmatprep.mubr.bf16.mxu0 0
        %598 = vmatmul.mubr.bf16.gmra.mrb[0].mxu0 %v563
        %v599 = vpop.f32.mrb[0].mxu0
        %v600 = vadd.f32 0.0, %v599
        %v601 = vpop.f32.mrb[0].mxu0
        %v602 = vpop.f32.mrb[0].mxu0
        %v603 = vadd.f32 0.0, %v602
        %v604 = vpop.f32.mrb[0].mxu0
        %605 = vdwg.mxu0
        %v606 = vpack.c.bf16 %v603, %v600
        %s607 = scalar_lea.vmem %s1, 8
        %v608 = vld [vmem:[%s607] sm:$0xf]
        %v609 = vld [vmem:[%s607 + $0x4] sm:$0xf]
        %v612 = vunpack.c.l.b16 %v608
        %v613 = vunpack.c.l.b16 %v609
        %v614 = vpack.c.b16 %v613, %v612
        %v616 = vsel %vm561, %v614, 0
        %618 = vmatprep.subr.bf16.mxu0 0
        %619 = vmatpush1.bf16.msra.mxu0 %v557
        %620 = vmatprep.subr.bf16.mxu0 0
        %621 = vmatpush1.bf16.msra.mxu0 %v558
        %622 = vmatprep.subr.bf16.mxu0 0
        %623 = vmatpush1.bf16.msra.mxu0 0
        %624 = vmatprep.subr.bf16.mxu0 0
        %625 = vmatpush1.bf16.msra.mxu0 0
        %626 = vmatprep.subr.bf16.mxu0 0
        %627 = vmatpush1.bf16.msra.mxu0 0
        %628 = vmatprep.subr.bf16.mxu0 0
        %629 = vmatpush1.bf16.msra.mxu0 0
        %630 = vmatprep.subr.bf16.mxu0 0
        %631 = vmatpush1.bf16.msra.mxu0 0
        %632 = vmatprep.subr.bf16.mxu0 0
        %633 = vmatpush1.bf16.msra.mxu0 0
        %634 = vmatprep.subr.bf16.mxu0 0
        %635 = vmatpush1.bf16.msra.mxu0 0
        %636 = vmatprep.subr.bf16.mxu0 0
        %637 = vmatpush1.bf16.msra.mxu0 0
        %638 = vmatprep.subr.bf16.mxu0 0
        %639 = vmatpush1.bf16.msra.mxu0 0
        %640 = vmatprep.subr.bf16.mxu0 0
        %641 = vmatpush1.bf16.msra.mxu0 0
        %642 = vmatprep.subr.bf16.mxu0 0
        %643 = vmatpush1.bf16.msra.mxu0 0
        %644 = vmatprep.subr.bf16.mxu0 0
        %645 = vmatpush1.bf16.msra.mxu0 0
        %646 = vmatprep.subr.bf16.mxu0 0
        %647 = vmatpush1.bf16.msra.mxu0 0
        %648 = vmatprep.subr.bf16.mxu0 0
        %649 = vmatpush1.bf16.msra.mxu0 0
        %650 = vmatprep.mubr.bf16.mxu0 0
        %651 = vmatmul.mubr.bf16.gmra.mrb[0].mxu0 %v616
        %v652 = vpop.f32.mrb[0].mxu0
        %v653 = vadd.f32 0.0, %v652
        %v654 = vpop.f32.mrb[0].mxu0
        %v655 = vpop.f32.mrb[0].mxu0
        %v656 = vadd.f32 0.0, %v655
        %v657 = vpop.f32.mrb[0].mxu0
        %658 = vdwg.mxu0
        %v659 = vpack.c.bf16 %v656, %v653
        %s660 = scalar_lea.vmem %s1, 16
        %v661 = vld [vmem:[%s660] sm:$0xf]
        %v662 = vld [vmem:[%s660 + $0x4] sm:$0xf]
        %v665 = vunpack.c.l.b16 %v661
        %v666 = vunpack.c.l.b16 %v662
        %v667 = vpack.c.b16 %v666, %v665
        %v669 = vsel %vm561, %v667, 0
        %671 = vmatprep.subr.bf16.mxu0 0
        %672 = vmatpush1.bf16.msra.mxu0 %v557
        %673 = vmatprep.subr.bf16.mxu0 0
        %674 = vmatpush1.bf16.msra.mxu0 %v558
        %675 = vmatprep.subr.bf16.mxu0 0
        %676 = vmatpush1.bf16.msra.mxu0 0
        %677 = vmatprep.subr.bf16.mxu0 0
        %678 = vmatpush1.bf16.msra.mxu0 0
        %679 = vmatprep.subr.bf16.mxu0 0
        %680 = vmatpush1.bf16.msra.mxu0 0
        %681 = vmatprep.subr.bf16.mxu0 0
        %682 = vmatpush1.bf16.msra.mxu0 0
        %683 = vmatprep.subr.bf16.mxu0 0
        %684 = vmatpush1.bf16.msra.mxu0 0
        %685 = vmatprep.subr.bf16.mxu0 0
        %686 = vmatpush1.bf16.msra.mxu0 0
        %687 = vmatprep.subr.bf16.mxu0 0
        %688 = vmatpush1.bf16.msra.mxu0 0
        %689 = vmatprep.subr.bf16.mxu0 0
        %690 = vmatpush1.bf16.msra.mxu0 0
        %691 = vmatprep.subr.bf16.mxu0 0
        %692 = vmatpush1.bf16.msra.mxu0 0
        %693 = vmatprep.subr.bf16.mxu0 0
        %694 = vmatpush1.bf16.msra.mxu0 0
        %695 = vmatprep.subr.bf16.mxu0 0
        %696 = vmatpush1.bf16.msra.mxu0 0
        %697 = vmatprep.subr.bf16.mxu0 0
        %698 = vmatpush1.bf16.msra.mxu0 0
        %699 = vmatprep.subr.bf16.mxu0 0
        %700 = vmatpush1.bf16.msra.mxu0 0
        %701 = vmatprep.subr.bf16.mxu0 0
        %702 = vmatpush1.bf16.msra.mxu0 0
        %703 = vmatprep.mubr.bf16.mxu0 0
        %704 = vmatmul.mubr.bf16.gmra.mrb[0].mxu0 %v669
        %v705 = vpop.f32.mrb[0].mxu0
        %v706 = vadd.f32 0.0, %v705
        %v707 = vpop.f32.mrb[0].mxu0
        %v708 = vpop.f32.mrb[0].mxu0
        %v709 = vadd.f32 0.0, %v708
        %v710 = vpop.f32.mrb[0].mxu0
        %711 = vdwg.mxu0
        %v712 = vpack.c.bf16 %v709, %v706
        %v713 = vld [vmem:[%s2] sm:$0xff]
        %v714 = vld [vmem:[%s2 + $0x8] sm:$0xff]
        %v715 = vld [vmem:[%s2 + $0x10] sm:$0xff]
        %v716 = vld [vmem:[%s2 + $0x18] sm:$0xff]
        %v717 = vld [vmem:[%s2 + $0x20] sm:$0xff]
        %v718 = vld [vmem:[%s2 + $0x28] sm:$0xff]
        %v719 = vld [vmem:[%s2 + $0x30] sm:$0xff]
        %v720 = vld [vmem:[%s2 + $0x38] sm:$0xff]
        %v721 = vld [vmem:[%s2 + $0x40] sm:$0xff]
        %v722 = vld [vmem:[%s2 + $0x48] sm:$0xff]
        %v723 = vld [vmem:[%s2 + $0x50] sm:$0xff]
        %v724 = vld [vmem:[%s2 + $0x58] sm:$0xff]
        %v725 = vld [vmem:[%s2 + $0x60] sm:$0xff]
        %v726 = vld [vmem:[%s2 + $0x68] sm:$0xff]
        %v727 = vld [vmem:[%s2 + $0x70] sm:$0xff]
        %v728 = vld [vmem:[%s2 + $0x78] sm:$0xff]
        %v729 = vld [vmem:[%s2 + $0x80] sm:$0xff]
        %v730 = vld [vmem:[%s2 + $0x88] sm:$0xff]
        %v731 = vld [vmem:[%s2 + $0x90] sm:$0xff]
        %v732 = vld [vmem:[%s2 + $0x98] sm:$0xff]
        %v733 = vld [vmem:[%s2 + $0xa0] sm:$0xff]
        %v734 = vld [vmem:[%s2 + $0xa8] sm:$0xff]
        %v735 = vld [vmem:[%s2 + $0xb0] sm:$0xff]
        %v736 = vld [vmem:[%s2 + $0xb8] sm:$0xff]
        %v737 = vld [vmem:[%s2 + $0xc0] sm:$0xff]
        %v738 = vld [vmem:[%s2 + $0xc8] sm:$0xff]
        %v739 = vld [vmem:[%s2 + $0xd0] sm:$0xff]
        %v740 = vld [vmem:[%s2 + $0xd8] sm:$0xff]
        %v741 = vld [vmem:[%s2 + $0xe0] sm:$0xff]
        %v742 = vld [vmem:[%s2 + $0xe8] sm:$0xff]
        %v743 = vld [vmem:[%s2 + $0xf0] sm:$0xff]
        %v744 = vld [vmem:[%s2 + $0xf8] sm:$0xff]
        %v745 = vld [vmem:[%s2 + $0x100] sm:$0xff]
        %v746 = vld [vmem:[%s2 + $0x108] sm:$0xff]
        %v747 = vld [vmem:[%s2 + $0x110] sm:$0xff]
        %v748 = vld [vmem:[%s2 + $0x118] sm:$0xff]
        %v749 = vld [vmem:[%s2 + $0x120] sm:$0xff]
        %v750 = vld [vmem:[%s2 + $0x128] sm:$0xff]
        %v751 = vld [vmem:[%s2 + $0x130] sm:$0xff]
        %v752 = vld [vmem:[%s2 + $0x138] sm:$0xff]
        %v753 = vld [vmem:[%s2 + $0x140] sm:$0xff]
        %v754 = vld [vmem:[%s2 + $0x148] sm:$0xff]
        %v755 = vld [vmem:[%s2 + $0x150] sm:$0xff]
        %v756 = vld [vmem:[%s2 + $0x158] sm:$0xff]
        %v757 = vld [vmem:[%s2 + $0x160] sm:$0xff]
        %v758 = vld [vmem:[%s2 + $0x168] sm:$0xff]
        %v759 = vld [vmem:[%s2 + $0x170] sm:$0xff]
        %v760 = vld [vmem:[%s2 + $0x178] sm:$0xff]
        %v761 = vld [vmem:[%s3] sm:$0x77]
        %v763 = vlaneseq
        %v764 = vshrl.u32 %v763, 7
        %v765 = vsub.s32 0, %v764
        %v766 = vrot.slane %v761, %v765
        %v767 = vlaneseq
        %v768 = vshrl.u32 %v767, 7
        %v769 = vsub.s32 4, %v768
        %v770 = vrot.slane %v761, %v769
        %v773 = vlaneseq
        %v774 = vshrl.u32 %v773, 7
        %v775 = vsub.s32 0, %v774
        %v776 = vrot.slane %v766, %v775
        %v777 = vlaneseq
        %v778 = vshrl.u32 %v777, 7
        %v779 = vsub.s32 0, %v778
        %v780 = vrot.slane %v770, %v779
        %v829 = vunpack.c.l.b16 %v713
        %v830 = vunpack.c.h.b16 %v713
        %v831 = vunpack.c.l.b16 %v714
        %v832 = vunpack.c.h.b16 %v714
        %v833 = vunpack.c.l.b16 %v715
        %v834 = vunpack.c.h.b16 %v715
        %v835 = vunpack.c.l.b16 %v716
        %v836 = vunpack.c.h.b16 %v716
        %v837 = vunpack.c.l.b16 %v717
        %v838 = vunpack.c.h.b16 %v717
        %v839 = vunpack.c.l.b16 %v718
        %v840 = vunpack.c.h.b16 %v718
        %v841 = vunpack.c.l.b16 %v719
        %v842 = vunpack.c.h.b16 %v719
        %v843 = vunpack.c.l.b16 %v720
        %v844 = vunpack.c.h.b16 %v720
        %v845 = vunpack.c.l.b16 %v721
        %v846 = vunpack.c.h.b16 %v721
        %v847 = vunpack.c.l.b16 %v722
        %v848 = vunpack.c.h.b16 %v722
        %v849 = vunpack.c.l.b16 %v723
        %v850 = vunpack.c.h.b16 %v723
        %v851 = vunpack.c.l.b16 %v724
        %v852 = vunpack.c.h.b16 %v724
        %v853 = vunpack.c.l.b16 %v725
        %v854 = vunpack.c.h.b16 %v725
        %v855 = vunpack.c.l.b16 %v726
        %v856 = vunpack.c.h.b16 %v726
        %v857 = vunpack.c.l.b16 %v727
        %v858 = vunpack.c.h.b16 %v727
        %v859 = vunpack.c.l.b16 %v728
        %v860 = vunpack.c.h.b16 %v728
        %v861 = vunpack.c.l.b16 %v729
        %v862 = vunpack.c.h.b16 %v729
        %v863 = vunpack.c.l.b16 %v730
        %v864 = vunpack.c.h.b16 %v730
        %v865 = vunpack.c.l.b16 %v731
        %v866 = vunpack.c.h.b16 %v731
        %v867 = vunpack.c.l.b16 %v732
        %v868 = vunpack.c.h.b16 %v732
        %v869 = vunpack.c.l.b16 %v733
        %v870 = vunpack.c.h.b16 %v733
        %v871 = vunpack.c.l.b16 %v734
        %v872 = vunpack.c.h.b16 %v734
        %v873 = vunpack.c.l.b16 %v735
        %v874 = vunpack.c.h.b16 %v735
        %v875 = vunpack.c.l.b16 %v736
        %v876 = vunpack.c.h.b16 %v736
        %v877 = vunpack.c.l.b16 %v737
        %v878 = vunpack.c.h.b16 %v737
        %v879 = vunpack.c.l.b16 %v738
        %v880 = vunpack.c.h.b16 %v738
        %v881 = vunpack.c.l.b16 %v739
        %v882 = vunpack.c.h.b16 %v739
        %v883 = vunpack.c.l.b16 %v740
        %v884 = vunpack.c.h.b16 %v740
        %v885 = vunpack.c.l.b16 %v741
        %v886 = vunpack.c.h.b16 %v741
        %v887 = vunpack.c.l.b16 %v742
        %v888 = vunpack.c.h.b16 %v742
        %v889 = vunpack.c.l.b16 %v743
        %v890 = vunpack.c.h.b16 %v743
        %v891 = vunpack.c.l.b16 %v744
        %v892 = vunpack.c.h.b16 %v744
        %v893 = vunpack.c.l.b16 %v745
        %v894 = vunpack.c.h.b16 %v745
        %v895 = vunpack.c.l.b16 %v746
        %v896 = vunpack.c.h.b16 %v746
        %v897 = vunpack.c.l.b16 %v747
        %v898 = vunpack.c.h.b16 %v747
        %v899 = vunpack.c.l.b16 %v748
        %v900 = vunpack.c.h.b16 %v748
        %v901 = vunpack.c.l.b16 %v749
        %v902 = vunpack.c.h.b16 %v749
        %v903 = vunpack.c.l.b16 %v750
        %v904 = vunpack.c.h.b16 %v750
        %v905 = vunpack.c.l.b16 %v751
        %v906 = vunpack.c.h.b16 %v751
        %v907 = vunpack.c.l.b16 %v752
        %v908 = vunpack.c.h.b16 %v752
        %v909 = vunpack.c.l.b16 %v753
        %v910 = vunpack.c.h.b16 %v753
        %v911 = vunpack.c.l.b16 %v754
        %v912 = vunpack.c.h.b16 %v754
        %v913 = vunpack.c.l.b16 %v755
        %v914 = vunpack.c.h.b16 %v755
        %v915 = vunpack.c.l.b16 %v756
        %v916 = vunpack.c.h.b16 %v756
        %v917 = vunpack.c.l.b16 %v757
        %v918 = vunpack.c.h.b16 %v757
        %v919 = vunpack.c.l.b16 %v758
        %v920 = vunpack.c.h.b16 %v758
        %v921 = vunpack.c.l.b16 %v759
        %v922 = vunpack.c.h.b16 %v759
        %v923 = vunpack.c.l.b16 %v760
        %v924 = vunpack.c.h.b16 %v760
        %v925 = vpack.c.b16 %v831, %v829
        %v926 = vpack.c.b16 %v832, %v830
        %v927 = vpack.c.b16 %v835, %v833
        %v928 = vpack.c.b16 %v836, %v834
        %v929 = vpack.c.b16 %v839, %v837
        %v930 = vpack.c.b16 %v840, %v838
        %v931 = vpack.c.b16 %v843, %v841
        %v932 = vpack.c.b16 %v844, %v842
        %v933 = vpack.c.b16 %v847, %v845
        %v934 = vpack.c.b16 %v848, %v846
        %v935 = vpack.c.b16 %v851, %v849
        %v936 = vpack.c.b16 %v852, %v850
        %v937 = vpack.c.b16 %v855, %v853
        %v938 = vpack.c.b16 %v856, %v854
        %v939 = vpack.c.b16 %v859, %v857
        %v940 = vpack.c.b16 %v860, %v858
        %v941 = vpack.c.b16 %v863, %v861
        %v942 = vpack.c.b16 %v864, %v862
        %v943 = vpack.c.b16 %v867, %v865
        %v944 = vpack.c.b16 %v868, %v866
        %v945 = vpack.c.b16 %v871, %v869
        %v946 = vpack.c.b16 %v872, %v870
        %v947 = vpack.c.b16 %v875, %v873
        %v948 = vpack.c.b16 %v876, %v874
        %v949 = vpack.c.b16 %v879, %v877
        %v950 = vpack.c.b16 %v880, %v878
        %v951 = vpack.c.b16 %v883, %v881
        %v952 = vpack.c.b16 %v884, %v882
        %v953 = vpack.c.b16 %v887, %v885
        %v954 = vpack.c.b16 %v888, %v886
        %v955 = vpack.c.b16 %v891, %v889
        %v956 = vpack.c.b16 %v892, %v890
        %v957 = vpack.c.b16 %v895, %v893
        %v958 = vpack.c.b16 %v896, %v894
        %v959 = vpack.c.b16 %v899, %v897
        %v960 = vpack.c.b16 %v900, %v898
        %v961 = vpack.c.b16 %v903, %v901
        %v962 = vpack.c.b16 %v904, %v902
        %v963 = vpack.c.b16 %v907, %v905
        %v964 = vpack.c.b16 %v908, %v906
        %v965 = vpack.c.b16 %v911, %v909
        %v966 = vpack.c.b16 %v912, %v910
        %v967 = vpack.c.b16 %v915, %v913
        %v968 = vpack.c.b16 %v916, %v914
        %v969 = vpack.c.b16 %v919, %v917
        %v970 = vpack.c.b16 %v920, %v918
        %v971 = vpack.c.b16 %v923, %v921
        %v972 = vpack.c.b16 %v924, %v922
        %1021 = vmatprep.subr.bf16.mxu0 %v926
        %1022 = vmatpush1.bf16.msra.mxu0 %v925
        %1023 = vmatprep.subr.bf16.mxu0 %v928
        %1024 = vmatpush1.bf16.msra.mxu0 %v927
        %1025 = vmatprep.subr.bf16.mxu0 %v930
        %1026 = vmatpush1.bf16.msra.mxu0 %v929
        %1027 = vmatprep.subr.bf16.mxu0 %v932
        %1028 = vmatpush1.bf16.msra.mxu0 %v931
        %1029 = vmatprep.subr.bf16.mxu0 %v934
        %1030 = vmatpush1.bf16.msra.mxu0 %v933
        %1031 = vmatprep.subr.bf16.mxu0 %v936
        %1032 = vmatpush1.bf16.msra.mxu0 %v935
        %1033 = vmatprep.subr.bf16.mxu0 %v938
        %1034 = vmatpush1.bf16.msra.mxu0 %v937
        %1035 = vmatprep.subr.bf16.mxu0 %v940
        %1036 = vmatpush1.bf16.msra.mxu0 %v939
        %1037 = vmatprep.subr.bf16.mxu0 %v942
        %1038 = vmatpush1.bf16.msra.mxu0 %v941
        %1039 = vmatprep.subr.bf16.mxu0 %v944
        %1040 = vmatpush1.bf16.msra.mxu0 %v943
        %1041 = vmatprep.subr.bf16.mxu0 %v946
        %1042 = vmatpush1.bf16.msra.mxu0 %v945
        %1043 = vmatprep.subr.bf16.mxu0 %v948
        %1044 = vmatpush1.bf16.msra.mxu0 %v947
        %1045 = vmatprep.subr.bf16.mxu0 %v950
        %1046 = vmatpush1.bf16.msra.mxu0 %v949
        %1047 = vmatprep.subr.bf16.mxu0 %v952
        %1048 = vmatpush1.bf16.msra.mxu0 %v951
        %1049 = vmatprep.subr.bf16.mxu0 %v954
        %1050 = vmatpush1.bf16.msra.mxu0 %v953
        %1051 = vmatprep.subr.bf16.mxu0 %v956
        %1052 = vmatpush1.bf16.msra.mxu0 %v955
        %1053 = vmatprep.mubr.bf16.mxu0 %v659
        %1054 = vmatmul.mubr.bf16.gmra.mrb[0].mxu0 %v606
        %v1055 = vpop.f32.mrb[0].mxu0
        %v1056 = vadd.f32 %v776, %v1055
        %v1057 = vpop.f32.mrb[0].mxu0
        %v1058 = vadd.f32 %v780, %v1057
        %v1059 = vpop.f32.mrb[0].mxu0
        %v1060 = vadd.f32 %v776, %v1059
        %v1061 = vpop.f32.mrb[0].mxu0
        %v1062 = vadd.f32 %v780, %v1061
        %1063 = vdwg.mxu0
        %1064 = vmatprep.subr.bf16.mxu0 %v958
        %1065 = vmatpush1.bf16.msra.mxu0 %v957
        %1066 = vmatprep.subr.bf16.mxu0 %v960
        %1067 = vmatpush1.bf16.msra.mxu0 %v959
        %1068 = vmatprep.subr.bf16.mxu0 %v962
        %1069 = vmatpush1.bf16.msra.mxu0 %v961
        %1070 = vmatprep.subr.bf16.mxu0 %v964
        %1071 = vmatpush1.bf16.msra.mxu0 %v963
        %1072 = vmatprep.subr.bf16.mxu0 %v966
        %1073 = vmatpush1.bf16.msra.mxu0 %v965
        %1074 = vmatprep.subr.bf16.mxu0 %v968
        %1075 = vmatpush1.bf16.msra.mxu0 %v967
        %1076 = vmatprep.subr.bf16.mxu0 %v970
        %1077 = vmatpush1.bf16.msra.mxu0 %v969
        %1078 = vmatprep.subr.bf16.mxu0 %v972
        %1079 = vmatpush1.bf16.msra.mxu0 %v971
        %1080 = vmatprep.subr.bf16.mxu0 0
        %1081 = vmatpush1.bf16.msra.mxu0 0
        %1082 = vmatprep.subr.bf16.mxu0 0
        %1083 = vmatpush1.bf16.msra.mxu0 0
        %1084 = vmatprep.subr.bf16.mxu0 0
        %1085 = vmatpush1.bf16.msra.mxu0 0
        %1086 = vmatprep.subr.bf16.mxu0 0
        %1087 = vmatpush1.bf16.msra.mxu0 0
        %1088 = vmatprep.subr.bf16.mxu0 0
        %1089 = vmatpush1.bf16.msra.mxu0 0
        %1090 = vmatprep.subr.bf16.mxu0 0
        %1091 = vmatpush1.bf16.msra.mxu0 0
        %1092 = vmatprep.subr.bf16.mxu0 0
        %1093 = vmatpush1.bf16.msra.mxu0 0
        %1094 = vmatprep.subr.bf16.mxu0 0
        %1095 = vmatpush1.bf16.msra.mxu0 0
        %1096 = vmatprep.mubr.bf16.mxu0 0
        %1097 = vmatmul.mubr.bf16.gmra.mrb[0].mxu0 %v712
        %v1098 = vpop.f32.mrb[0].mxu0
        %v1099 = vadd.f32 %v1056, %v1098
        %v1100 = vpop.f32.mrb[0].mxu0
        %v1101 = vadd.f32 %v1058, %v1100
        %v1102 = vpop.f32.mrb[0].mxu0
        %v1103 = vadd.f32 %v1060, %v1102
        %v1104 = vpop.f32.mrb[0].mxu0
        %v1105 = vadd.f32 %v1062, %v1104
        %1106 = vdwg.mxu0
        %v1107 = vmul.f32 %v1099, 0.2
        %v1108 = vmul.f32 %v1101, 0.2
        %v1109 = vmul.f32 %v1103, 0.2
        %v1110 = vmul.f32 %v1105, 0.2
        %v1111 = vmax.f32 %v1099, %v1107
        %v1112 = vmax.f32 %v1101, %v1108
        %v1113 = vmax.f32 %v1103, %v1109
        %v1114 = vmax.f32 %v1105, %v1110
        %v1115 = vlaneseq
        %v1116 = vshrl.u32 %v1115, 7
        %v1117 = vsub.s32 1, %v1116
        %v1118 = vrot.slane %v761, %v1117
        %v1119 = vlaneseq
        %v1120 = vshrl.u32 %v1119, 7
        %v1121 = vsub.s32 5, %v1120
        %v1122 = vrot.slane %v761, %v1121
        %v1125 = vlaneseq
        %v1126 = vshrl.u32 %v1125, 7
        %v1127 = vsub.s32 1, %v1126
        %v1128 = vrot.slane %v1118, %v1127
        %v1129 = vlaneseq
        %v1130 = vshrl.u32 %v1129, 7
        %v1131 = vsub.s32 1, %v1130
        %v1132 = vrot.slane %v1122, %v1131
        %v1133 = vmul.f32 %v1111, %v1128
        %v1134 = vmul.f32 %v1112, %v1132
        %v1135 = vmul.f32 %v1113, %v1128
        %v1136 = vmul.f32 %v1114, %v1132
        %v1137 = vlaneseq
        %v1138 = vshrl.u32 %v1137, 7
        %v1139 = vsub.s32 2, %v1138
        %v1140 = vrot.slane %v761, %v1139
        %v1141 = vlaneseq
        %v1142 = vshrl.u32 %v1141, 7
        %v1143 = vsub.s32 6, %v1142
        %v1144 = vrot.slane %v761, %v1143
        %v1147 = vlaneseq
        %v1148 = vshrl.u32 %v1147, 7
        %v1149 = vsub.s32 2, %v1148
        %v1150 = vrot.slane %v1140, %v1149
        %v1151 = vlaneseq
        %v1152 = vshrl.u32 %v1151, 7
        %v1153 = vsub.s32 2, %v1152
        %v1154 = vrot.slane %v1144, %v1153
        %v1155 = vadd.f32 %v1133, %v1150
        %v1156 = vadd.f32 %v1134, %v1154
        %v1157 = vadd.f32 %v1135, %v1150
        %v1158 = vadd.f32 %v1136, %v1154
        %v1159 = vpack.c.bf16 %v1157, %v1155
        %v1160 = vpack.c.bf16 %v1158, %v1156
        %v1161 = vld [vmem:[%s4] sm:$0xf]
        %vm1162 = vcmask 130048
        %v1164 = vsel %vm1162, %v1161, 0
        %1166 = vmatprep.subr.bf16.mxu0 %v1160
        %1167 = vmatpush1.bf16.msra.mxu0 %v1159
        %1168 = vmatprep.subr.bf16.mxu0 0
        %1169 = vmatpush1.bf16.msra.mxu0 0
        %1170 = vmatprep.subr.bf16.mxu0 0
        %1171 = vmatpush1.bf16.msra.mxu0 0
        %1172 = vmatprep.subr.bf16.mxu0 0
        %1173 = vmatpush1.bf16.msra.mxu0 0
        %1174 = vmatprep.subr.bf16.mxu0 0
        %1175 = vmatpush1.bf16.msra.mxu0 0
        %1176 = vmatprep.subr.bf16.mxu0 0
        %1177 = vmatpush1.bf16.msra.mxu0 0
        %1178 = vmatprep.subr.bf16.mxu0 0
        %1179 = vmatpush1.bf16.msra.mxu0 0
        %1180 = vmatprep.subr.bf16.mxu0 0
        %1181 = vmatpush1.bf16.msra.mxu0 0
        %1182 = vmatprep.subr.bf16.mxu0 0
        %1183 = vmatpush1.bf16.msra.mxu0 0
        %1184 = vmatprep.subr.bf16.mxu0 0
        %1185 = vmatpush1.bf16.msra.mxu0 0
        %1186 = vmatprep.subr.bf16.mxu0 0
        %1187 = vmatpush1.bf16.msra.mxu0 0
        %1188 = vmatprep.subr.bf16.mxu0 0
        %1189 = vmatpush1.bf16.msra.mxu0 0
        %1190 = vmatprep.subr.bf16.mxu0 0
        %1191 = vmatpush1.bf16.msra.mxu0 0
        %1192 = vmatprep.subr.bf16.mxu0 0
        %1193 = vmatpush1.bf16.msra.mxu0 0
        %1194 = vmatprep.subr.bf16.mxu0 0
        %1195 = vmatpush1.bf16.msra.mxu0 0
        %1196 = vmatprep.subr.bf16.mxu0 0
        %1197 = vmatpush1.bf16.msra.mxu0 0
        %1198 = vmatprep.mubr.bf16.mxu0 0
        %1199 = vmatmul.mubr.bf16.gmra.mrb[0].mxu0 %v1164
        %v1200 = vpop.f32.mrb[0].mxu0
        %v1201 = vadd.f32 0.0, %v1200
        %v1202 = vpop.f32.mrb[0].mxu0
        %v1203 = vadd.f32 0.0, %v1202
        %v1204 = vpop.f32.mrb[0].mxu0
        %v1205 = vpop.f32.mrb[0].mxu0
        %1206 = vdwg.mxu0
        %v1207 = vpack.c.bf16 %v1201, %v1201
        %v1208 = vpack.c.bf16 %v1203, %v1203
        %s1209 = scalar_lea.vmem %s4, 4
        %v1210 = vld [vmem:[%s1209] sm:$0xf]
        %v1212 = vsel %vm1162, %v1210, 0
        %1214 = vmatprep.subr.bf16.mxu0 %v1160
        %1215 = vmatpush1.bf16.msra.mxu0 %v1159
        %1216 = vmatprep.subr.bf16.mxu0 0
        %1217 = vmatpush1.bf16.msra.mxu0 0
        %1218 = vmatprep.subr.bf16.mxu0 0
        %1219 = vmatpush1.bf16.msra.mxu0 0
        %1220 = vmatprep.subr.bf16.mxu0 0
        %1221 = vmatpush1.bf16.msra.mxu0 0
        %1222 = vmatprep.subr.bf16.mxu0 0
        %1223 = vmatpush1.bf16.msra.mxu0 0
        %1224 = vmatprep.subr.bf16.mxu0 0
        %1225 = vmatpush1.bf16.msra.mxu0 0
        %1226 = vmatprep.subr.bf16.mxu0 0
        %1227 = vmatpush1.bf16.msra.mxu0 0
        %1228 = vmatprep.subr.bf16.mxu0 0
        %1229 = vmatpush1.bf16.msra.mxu0 0
        %1230 = vmatprep.subr.bf16.mxu0 0
        %1231 = vmatpush1.bf16.msra.mxu0 0
        %1232 = vmatprep.subr.bf16.mxu0 0
        %1233 = vmatpush1.bf16.msra.mxu0 0
        %1234 = vmatprep.subr.bf16.mxu0 0
        %1235 = vmatpush1.bf16.msra.mxu0 0
        %1236 = vmatprep.subr.bf16.mxu0 0
        %1237 = vmatpush1.bf16.msra.mxu0 0
        %1238 = vmatprep.subr.bf16.mxu0 0
        %1239 = vmatpush1.bf16.msra.mxu0 0
        %1240 = vmatprep.subr.bf16.mxu0 0
        %1241 = vmatpush1.bf16.msra.mxu0 0
        %1242 = vmatprep.subr.bf16.mxu0 0
        %1243 = vmatpush1.bf16.msra.mxu0 0
        %1244 = vmatprep.subr.bf16.mxu0 0
        %1245 = vmatpush1.bf16.msra.mxu0 0
        %1246 = vmatprep.mubr.bf16.mxu0 0
        %1247 = vmatmul.mubr.bf16.gmra.mrb[0].mxu0 %v1212
        %v1248 = vpop.f32.mrb[0].mxu0
        %v1249 = vadd.f32 0.0, %v1248
        %v1250 = vpop.f32.mrb[0].mxu0
        %v1251 = vadd.f32 0.0, %v1250
        %v1252 = vpop.f32.mrb[0].mxu0
        %v1253 = vpop.f32.mrb[0].mxu0
        %1254 = vdwg.mxu0
        %v1255 = vpack.c.bf16 %v1249, %v1249
        %v1256 = vpack.c.bf16 %v1251, %v1251
        %s1257 = scalar_lea.vmem %s4, 8
        %v1258 = vld [vmem:[%s1257] sm:$0xf]
        %v1260 = vsel %vm1162, %v1258, 0
        %1262 = vmatprep.subr.bf16.mxu0 %v1160
        %1263 = vmatpush1.bf16.msra.mxu0 %v1159
        %1264 = vmatprep.subr.bf16.mxu0 0
        %1265 = vmatpush1.bf16.msra.mxu0 0
        %1266 = vmatprep.subr.bf16.mxu0 0
        %1267 = vmatpush1.bf16.msra.mxu0 0
        %1268 = vmatprep.subr.bf16.mxu0 0
        %1269 = vmatpush1.bf16.msra.mxu0 0
        %1270 = vmatprep.subr.bf16.mxu0 0
        %1271 = vmatpush1.bf16.msra.mxu0 0
        %1272 = vmatprep.subr.bf16.mxu0 0
        %1273 = vmatpush1.bf16.msra.mxu0 0
        %1274 = vmatprep.subr.bf16.mxu0 0
        %1275 = vmatpush1.bf16.msra.mxu0 0
        %1276 = vmatprep.subr.bf16.mxu0 0
        %1277 = vmatpush1.bf16.msra.mxu0 0
        %1278 = vmatprep.subr.bf16.mxu0 0
        %1279 = vmatpush1.bf16.msra.mxu0 0
        %1280 = vmatprep.subr.bf16.mxu0 0
        %1281 = vmatpush1.bf16.msra.mxu0 0
        %1282 = vmatprep.subr.bf16.mxu0 0
        %1283 = vmatpush1.bf16.msra.mxu0 0
        %1284 = vmatprep.subr.bf16.mxu0 0
        %1285 = vmatpush1.bf16.msra.mxu0 0
        %1286 = vmatprep.subr.bf16.mxu0 0
        %1287 = vmatpush1.bf16.msra.mxu0 0
        %1288 = vmatprep.subr.bf16.mxu0 0
        %1289 = vmatpush1.bf16.msra.mxu0 0
        %1290 = vmatprep.subr.bf16.mxu0 0
        %1291 = vmatpush1.bf16.msra.mxu0 0
        %1292 = vmatprep.subr.bf16.mxu0 0
        %1293 = vmatpush1.bf16.msra.mxu0 0
        %1294 = vmatprep.mubr.bf16.mxu0 0
        %1295 = vmatmul.mubr.bf16.gmra.mrb[0].mxu0 %v1260
        %v1296 = vpop.f32.mrb[0].mxu0
        %v1297 = vadd.f32 0.0, %v1296
        %v1298 = vpop.f32.mrb[0].mxu0
        %v1299 = vadd.f32 0.0, %v1298
        %v1300 = vpop.f32.mrb[0].mxu0
        %v1301 = vpop.f32.mrb[0].mxu0
        %1302 = vdwg.mxu0
        %v1303 = vpack.c.bf16 %v1297, %v1297
        %v1304 = vpack.c.bf16 %v1299, %v1299
        %v1305 = vld [vmem:[#allocation3] sm:$0xff]
        %v1306 = vld [vmem:[#allocation3 + $0x8] sm:$0xff]
        %v1307 = vld [vmem:[#allocation3 + $0x10] sm:$0xff]
        %v1308 = vld [vmem:[#allocation3 + $0x18] sm:$0xff]
        %v1309 = vld [vmem:[#allocation3 + $0x20] sm:$0xff]
        %v1310 = vld [vmem:[#allocation3 + $0x28] sm:$0xff]
        %v1311 = vld [vmem:[#allocation3 + $0x30] sm:$0xff]
        %v1312 = vld [vmem:[#allocation3 + $0x38] sm:$0xff]
        %v1313 = vld [vmem:[#allocation3 + $0x40] sm:$0xff]
        %v1314 = vld [vmem:[#allocation3 + $0x48] sm:$0xff]
        %v1315 = vld [vmem:[#allocation3 + $0x50] sm:$0xff]
        %v1316 = vld [vmem:[#allocation3 + $0x58] sm:$0xff]
        %v1317 = vld [vmem:[#allocation3 + $0x60] sm:$0xff]
        %v1318 = vld [vmem:[#allocation3 + $0x68] sm:$0xff]
        %v1319 = vld [vmem:[#allocation3 + $0x70] sm:$0xff]
        %v1320 = vld [vmem:[#allocation3 + $0x78] sm:$0xff]
        %v1321 = vld [vmem:[#allocation3 + $0x80] sm:$0xff]
        %v1322 = vld [vmem:[#allocation3 + $0x88] sm:$0xff]
        %v1323 = vld [vmem:[#allocation3 + $0x90] sm:$0xff]
        %v1324 = vld [vmem:[#allocation3 + $0x98] sm:$0xff]
        %v1325 = vld [vmem:[#allocation3 + $0xa0] sm:$0xff]
        %v1326 = vld [vmem:[#allocation3 + $0xa8] sm:$0xff]
        %v1327 = vld [vmem:[#allocation3 + $0xb0] sm:$0xff]
        %v1328 = vld [vmem:[#allocation3 + $0xb8] sm:$0xff]
        %v1329 = vld [vmem:[#allocation3 + $0xc0] sm:$0xff]
        %v1330 = vld [vmem:[#allocation3 + $0xc8] sm:$0xff]
        %v1331 = vld [vmem:[#allocation3 + $0xd0] sm:$0xff]
        %v1332 = vld [vmem:[#allocation3 + $0xd8] sm:$0xff]
        %v1333 = vld [vmem:[#allocation3 + $0xe0] sm:$0xff]
        %v1334 = vld [vmem:[#allocation3 + $0xe8] sm:$0xff]
        %v1335 = vld [vmem:[#allocation3 + $0xf0] sm:$0xff]
        %v1336 = vld [vmem:[#allocation3 + $0xf8] sm:$0xff]
        %v1337 = vld [vmem:[#allocation3 + $0x100] sm:$0xff]
        %v1338 = vld [vmem:[#allocation3 + $0x108] sm:$0xff]
        %v1339 = vld [vmem:[#allocation3 + $0x110] sm:$0xff]
        %v1340 = vld [vmem:[#allocation3 + $0x118] sm:$0xff]
        %v1341 = vld [vmem:[#allocation3 + $0x120] sm:$0xff]
        %v1342 = vld [vmem:[#allocation3 + $0x128] sm:$0xff]
        %v1343 = vld [vmem:[#allocation3 + $0x130] sm:$0xff]
        %v1344 = vld [vmem:[#allocation3 + $0x138] sm:$0xff]
        %v1345 = vld [vmem:[#allocation3 + $0x140] sm:$0xff]
        %v1346 = vld [vmem:[#allocation3 + $0x148] sm:$0xff]
        %v1347 = vld [vmem:[#allocation3 + $0x150] sm:$0xff]
        %v1348 = vld [vmem:[#allocation3 + $0x158] sm:$0xff]
        %v1349 = vld [vmem:[#allocation3 + $0x160] sm:$0xff]
        %v1350 = vld [vmem:[#allocation3 + $0x168] sm:$0xff]
        %v1351 = vld [vmem:[#allocation3 + $0x170] sm:$0xff]
        %v1352 = vld [vmem:[#allocation3 + $0x178] sm:$0xff]
        %v1353 = vld [vmem:[#allocation3 + $0x180] sm:$0xff]
        %v1354 = vld [vmem:[#allocation3 + $0x188] sm:$0xff]
        %v1355 = vld [vmem:[#allocation3 + $0x190] sm:$0xff]
        %v1356 = vld [vmem:[#allocation3 + $0x198] sm:$0xff]
        %v1357 = vld [vmem:[#allocation3 + $0x1a0] sm:$0xff]
        %v1358 = vld [vmem:[#allocation3 + $0x1a8] sm:$0xff]
        %v1359 = vld [vmem:[#allocation3 + $0x1b0] sm:$0xff]
        %v1360 = vld [vmem:[#allocation3 + $0x1b8] sm:$0xff]
        %v1361 = vld [vmem:[#allocation3 + $0x1c0] sm:$0xff]
        %v1362 = vld [vmem:[#allocation3 + $0x1c8] sm:$0xff]
        %v1363 = vld [vmem:[#allocation3 + $0x1d0] sm:$0xff]
        %v1364 = vld [vmem:[#allocation3 + $0x1d8] sm:$0xff]
        %v1365 = vld [vmem:[#allocation3 + $0x1e0] sm:$0xff]
        %v1366 = vld [vmem:[#allocation3 + $0x1e8] sm:$0xff]
        %v1367 = vld [vmem:[#allocation3 + $0x1f0] sm:$0xff]
        %v1368 = vld [vmem:[#allocation3 + $0x1f8] sm:$0xff]
        %v1369 = vld [vmem:[#allocation3 + $0x200] sm:$0xff]
        %v1370 = vld [vmem:[#allocation3 + $0x208] sm:$0xff]
        %v1371 = vld [vmem:[#allocation3 + $0x210] sm:$0xff]
        %v1372 = vld [vmem:[#allocation3 + $0x218] sm:$0xff]
        %v1373 = vld [vmem:[#allocation3 + $0x220] sm:$0xff]
        %v1374 = vld [vmem:[#allocation3 + $0x228] sm:$0xff]
        %v1375 = vld [vmem:[#allocation3 + $0x230] sm:$0xff]
        %v1376 = vld [vmem:[#allocation3 + $0x238] sm:$0xff]
        %v1377 = vld [vmem:[#allocation3 + $0x240] sm:$0xff]
        %v1378 = vld [vmem:[#allocation3 + $0x248] sm:$0xff]
        %v1379 = vld [vmem:[#allocation3 + $0x250] sm:$0xff]
        %v1380 = vld [vmem:[#allocation3 + $0x258] sm:$0xff]
        %v1381 = vld [vmem:[#allocation3 + $0x260] sm:$0xff]
        %v1382 = vld [vmem:[#allocation3 + $0x268] sm:$0xff]
        %v1383 = vld [vmem:[#allocation3 + $0x270] sm:$0xff]
        %v1384 = vld [vmem:[#allocation3 + $0x278] sm:$0xff]
        %v1385 = vld [vmem:[#allocation3 + $0x280] sm:$0xff]
        %v1386 = vld [vmem:[#allocation3 + $0x288] sm:$0xff]
        %v1387 = vld [vmem:[#allocation3 + $0x290] sm:$0xff]
        %v1388 = vld [vmem:[#allocation3 + $0x298] sm:$0xff]
        %v1389 = vld [vmem:[#allocation3 + $0x2a0] sm:$0xff]
        %v1390 = vld [vmem:[#allocation3 + $0x2a8] sm:$0xff]
        %v1391 = vld [vmem:[#allocation3 + $0x2b0] sm:$0xff]
        %v1392 = vld [vmem:[#allocation3 + $0x2b8] sm:$0xff]
        %v1393 = vld [vmem:[#allocation3 + $0x2c0] sm:$0xff]
        %v1394 = vld [vmem:[#allocation3 + $0x2c8] sm:$0xff]
        %v1395 = vld [vmem:[#allocation3 + $0x2d0] sm:$0xff]
        %v1396 = vld [vmem:[#allocation3 + $0x2d8] sm:$0xff]
        %v1397 = vld [vmem:[#allocation3 + $0x2e0] sm:$0xff]
        %v1398 = vld [vmem:[#allocation3 + $0x2e8] sm:$0xff]
        %v1399 = vld [vmem:[#allocation3 + $0x2f0] sm:$0xff]
        %v1400 = vld [vmem:[#allocation3 + $0x2f8] sm:$0xff]
        %v1401 = vld [vmem:[%s6] sm:$0x77]
        %v1403 = vlaneseq
        %v1404 = vshrl.u32 %v1403, 7
        %v1405 = vsub.s32 0, %v1404
        %v1406 = vrot.slane %v1401, %v1405
        %v1407 = vlaneseq
        %v1408 = vshrl.u32 %v1407, 7
        %v1409 = vsub.s32 4, %v1408
        %v1410 = vrot.slane %v1401, %v1409
        %v1413 = vlaneseq
        %v1414 = vshrl.u32 %v1413, 7
        %v1415 = vsub.s32 0, %v1414
        %v1416 = vrot.slane %v1406, %v1415
        %v1417 = vlaneseq
        %v1418 = vshrl.u32 %v1417, 7
        %v1419 = vsub.s32 0, %v1418
        %v1420 = vrot.slane %v1410, %v1419
        %v1517 = vunpack.c.l.b16 %v1305
        %v1518 = vunpack.c.h.b16 %v1305
        %v1519 = vunpack.c.l.b16 %v1306
        %v1520 = vunpack.c.h.b16 %v1306
        %v1521 = vunpack.c.l.b16 %v1307
        %v1522 = vunpack.c.h.b16 %v1307
        %v1523 = vunpack.c.l.b16 %v1308
        %v1524 = vunpack.c.h.b16 %v1308
        %v1525 = vunpack.c.l.b16 %v1309
        %v1526 = vunpack.c.h.b16 %v1309
        %v1527 = vunpack.c.l.b16 %v1310
        %v1528 = vunpack.c.h.b16 %v1310
        %v1529 = vunpack.c.l.b16 %v1311
        %v1530 = vunpack.c.h.b16 %v1311
        %v1531 = vunpack.c.l.b16 %v1312
        %v1532 = vunpack.c.h.b16 %v1312
        %v1533 = vunpack.c.l.b16 %v1313
        %v1534 = vunpack.c.h.b16 %v1313
        %v1535 = vunpack.c.l.b16 %v1314
        %v1536 = vunpack.c.h.b16 %v1314
        %v1537 = vunpack.c.l.b16 %v1315
        %v1538 = vunpack.c.h.b16 %v1315
        %v1539 = vunpack.c.l.b16 %v1316
        %v1540 = vunpack.c.h.b16 %v1316
        %v1541 = vunpack.c.l.b16 %v1317
        %v1542 = vunpack.c.h.b16 %v1317
        %v1543 = vunpack.c.l.b16 %v1318
        %v1544 = vunpack.c.h.b16 %v1318
        %v1545 = vunpack.c.l.b16 %v1319
        %v1546 = vunpack.c.h.b16 %v1319
        %v1547 = vunpack.c.l.b16 %v1320
        %v1548 = vunpack.c.h.b16 %v1320
        %v1549 = vunpack.c.l.b16 %v1321
        %v1550 = vunpack.c.h.b16 %v1321
        %v1551 = vunpack.c.l.b16 %v1322
        %v1552 = vunpack.c.h.b16 %v1322
        %v1553 = vunpack.c.l.b16 %v1323
        %v1554 = vunpack.c.h.b16 %v1323
        %v1555 = vunpack.c.l.b16 %v1324
        %v1556 = vunpack.c.h.b16 %v1324
        %v1557 = vunpack.c.l.b16 %v1325
        %v1558 = vunpack.c.h.b16 %v1325
        %v1559 = vunpack.c.l.b16 %v1326
        %v1560 = vunpack.c.h.b16 %v1326
        %v1561 = vunpack.c.l.b16 %v1327
        %v1562 = vunpack.c.h.b16 %v1327
        %v1563 = vunpack.c.l.b16 %v1328
        %v1564 = vunpack.c.h.b16 %v1328
        %v1565 = vunpack.c.l.b16 %v1329
        %v1566 = vunpack.c.h.b16 %v1329
        %v1567 = vunpack.c.l.b16 %v1330
        %v1568 = vunpack.c.h.b16 %v1330
        %v1569 = vunpack.c.l.b16 %v1331
        %v1570 = vunpack.c.h.b16 %v1331
        %v1571 = vunpack.c.l.b16 %v1332
        %v1572 = vunpack.c.h.b16 %v1332
        %v1573 = vunpack.c.l.b16 %v1333
        %v1574 = vunpack.c.h.b16 %v1333
        %v1575 = vunpack.c.l.b16 %v1334
        %v1576 = vunpack.c.h.b16 %v1334
        %v1577 = vunpack.c.l.b16 %v1335
        %v1578 = vunpack.c.h.b16 %v1335
        %v1579 = vunpack.c.l.b16 %v1336
        %v1580 = vunpack.c.h.b16 %v1336
        %v1581 = vunpack.c.l.b16 %v1337
        %v1582 = vunpack.c.h.b16 %v1337
        %v1583 = vunpack.c.l.b16 %v1338
        %v1584 = vunpack.c.h.b16 %v1338
        %v1585 = vunpack.c.l.b16 %v1339
        %v1586 = vunpack.c.h.b16 %v1339
        %v1587 = vunpack.c.l.b16 %v1340
        %v1588 = vunpack.c.h.b16 %v1340
        %v1589 = vunpack.c.l.b16 %v1341
        %v1590 = vunpack.c.h.b16 %v1341
        %v1591 = vunpack.c.l.b16 %v1342
        %v1592 = vunpack.c.h.b16 %v1342
        %v1593 = vunpack.c.l.b16 %v1343
        %v1594 = vunpack.c.h.b16 %v1343
        %v1595 = vunpack.c.l.b16 %v1344
        %v1596 = vunpack.c.h.b16 %v1344
        %v1597 = vunpack.c.l.b16 %v1345
        %v1598 = vunpack.c.h.b16 %v1345
        %v1599 = vunpack.c.l.b16 %v1346
        %v1600 = vunpack.c.h.b16 %v1346
        %v1601 = vunpack.c.l.b16 %v1347
        %v1602 = vunpack.c.h.b16 %v1347
        %v1603 = vunpack.c.l.b16 %v1348
        %v1604 = vunpack.c.h.b16 %v1348
        %v1605 = vunpack.c.l.b16 %v1349
        %v1606 = vunpack.c.h.b16 %v1349
        %v1607 = vunpack.c.l.b16 %v1350
        %v1608 = vunpack.c.h.b16 %v1350
        %v1609 = vunpack.c.l.b16 %v1351
        %v1610 = vunpack.c.h.b16 %v1351
        %v1611 = vunpack.c.l.b16 %v1352
        %v1612 = vunpack.c.h.b16 %v1352
        %v1613 = vunpack.c.l.b16 %v1353
        %v1614 = vunpack.c.h.b16 %v1353
        %v1615 = vunpack.c.l.b16 %v1354
        %v1616 = vunpack.c.h.b16 %v1354
        %v1617 = vunpack.c.l.b16 %v1355
        %v1618 = vunpack.c.h.b16 %v1355
        %v1619 = vunpack.c.l.b16 %v1356
        %v1620 = vunpack.c.h.b16 %v1356
        %v1621 = vunpack.c.l.b16 %v1357
        %v1622 = vunpack.c.h.b16 %v1357
        %v1623 = vunpack.c.l.b16 %v1358
        %v1624 = vunpack.c.h.b16 %v1358
        %v1625 = vunpack.c.l.b16 %v1359
        %v1626 = vunpack.c.h.b16 %v1359
        %v1627 = vunpack.c.l.b16 %v1360
        %v1628 = vunpack.c.h.b16 %v1360
        %v1629 = vunpack.c.l.b16 %v1361
        %v1630 = vunpack.c.h.b16 %v1361
        %v1631 = vunpack.c.l.b16 %v1362
        %v1632 = vunpack.c.h.b16 %v1362
        %v1633 = vunpack.c.l.b16 %v1363
        %v1634 = vunpack.c.h.b16 %v1363
        %v1635 = vunpack.c.l.b16 %v1364
        %v1636 = vunpack.c.h.b16 %v1364
        %v1637 = vunpack.c.l.b16 %v1365
        %v1638 = vunpack.c.h.b16 %v1365
        %v1639 = vunpack.c.l.b16 %v1366
        %v1640 = vunpack.c.h.b16 %v1366
        %v1641 = vunpack.c.l.b16 %v1367
        %v1642 = vunpack.c.h.b16 %v1367
        %v1643 = vunpack.c.l.b16 %v1368
        %v1644 = vunpack.c.h.b16 %v1368
        %v1645 = vunpack.c.l.b16 %v1369
        %v1646 = vunpack.c.h.b16 %v1369
        %v1647 = vunpack.c.l.b16 %v1370
        %v1648 = vunpack.c.h.b16 %v1370
        %v1649 = vunpack.c.l.b16 %v1371
        %v1650 = vunpack.c.h.b16 %v1371
        %v1651 = vunpack.c.l.b16 %v1372
        %v1652 = vunpack.c.h.b16 %v1372
        %v1653 = vunpack.c.l.b16 %v1373
        %v1654 = vunpack.c.h.b16 %v1373
        %v1655 = vunpack.c.l.b16 %v1374
        %v1656 = vunpack.c.h.b16 %v1374
        %v1657 = vunpack.c.l.b16 %v1375
        %v1658 = vunpack.c.h.b16 %v1375
        %v1659 = vunpack.c.l.b16 %v1376
        %v1660 = vunpack.c.h.b16 %v1376
        %v1661 = vunpack.c.l.b16 %v1377
        %v1662 = vunpack.c.h.b16 %v1377
        %v1663 = vunpack.c.l.b16 %v1378
        %v1664 = vunpack.c.h.b16 %v1378
        %v1665 = vunpack.c.l.b16 %v1379
        %v1666 = vunpack.c.h.b16 %v1379
        %v1667 = vunpack.c.l.b16 %v1380
        %v1668 = vunpack.c.h.b16 %v1380
        %v1669 = vunpack.c.l.b16 %v1381
        %v1670 = vunpack.c.h.b16 %v1381
        %v1671 = vunpack.c.l.b16 %v1382
        %v1672 = vunpack.c.h.b16 %v1382
        %v1673 = vunpack.c.l.b16 %v1383
        %v1674 = vunpack.c.h.b16 %v1383
        %v1675 = vunpack.c.l.b16 %v1384
        %v1676 = vunpack.c.h.b16 %v1384
        %v1677 = vunpack.c.l.b16 %v1385
        %v1678 = vunpack.c.h.b16 %v1385
        %v1679 = vunpack.c.l.b16 %v1386
        %v1680 = vunpack.c.h.b16 %v1386
        %v1681 = vunpack.c.l.b16 %v1387
        %v1682 = vunpack.c.h.b16 %v1387
        %v1683 = vunpack.c.l.b16 %v1388
        %v1684 = vunpack.c.h.b16 %v1388
        %v1685 = vunpack.c.l.b16 %v1389
        %v1686 = vunpack.c.h.b16 %v1389
        %v1687 = vunpack.c.l.b16 %v1390
        %v1688 = vunpack.c.h.b16 %v1390
        %v1689 = vunpack.c.l.b16 %v1391
        %v1690 = vunpack.c.h.b16 %v1391
        %v1691 = vunpack.c.l.b16 %v1392
        %v1692 = vunpack.c.h.b16 %v1392
        %v1693 = vunpack.c.l.b16 %v1393
        %v1694 = vunpack.c.h.b16 %v1393
        %v1695 = vunpack.c.l.b16 %v1394
        %v1696 = vunpack.c.h.b16 %v1394
        %v1697 = vunpack.c.l.b16 %v1395
        %v1698 = vunpack.c.h.b16 %v1395
        %v1699 = vunpack.c.l.b16 %v1396
        %v1700 = vunpack.c.h.b16 %v1396
        %v1701 = vunpack.c.l.b16 %v1397
        %v1702 = vunpack.c.h.b16 %v1397
        %v1703 = vunpack.c.l.b16 %v1398
        %v1704 = vunpack.c.h.b16 %v1398
        %v1705 = vunpack.c.l.b16 %v1399
        %v1706 = vunpack.c.h.b16 %v1399
        %v1707 = vunpack.c.l.b16 %v1400
        %v1708 = vunpack.c.h.b16 %v1400
        %v1709 = vpack.c.b16 %v1519, %v1517
        %v1710 = vpack.c.b16 %v1520, %v1518
        %v1711 = vpack.c.b16 %v1523, %v1521
        %v1712 = vpack.c.b16 %v1524, %v1522
        %v1713 = vpack.c.b16 %v1527, %v1525
        %v1714 = vpack.c.b16 %v1528, %v1526
        %v1715 = vpack.c.b16 %v1531, %v1529
        %v1716 = vpack.c.b16 %v1532, %v1530
        %v1717 = vpack.c.b16 %v1535, %v1533
        %v1718 = vpack.c.b16 %v1536, %v1534
        %v1719 = vpack.c.b16 %v1539, %v1537
        %v1720 = vpack.c.b16 %v1540, %v1538
        %v1721 = vpack.c.b16 %v1543, %v1541
        %v1722 = vpack.c.b16 %v1544, %v1542
        %v1723 = vpack.c.b16 %v1547, %v1545
        %v1724 = vpack.c.b16 %v1548, %v1546
        %v1725 = vpack.c.b16 %v1551, %v1549
        %v1726 = vpack.c.b16 %v1552, %v1550
        %v1727 = vpack.c.b16 %v1555, %v1553
        %v1728 = vpack.c.b16 %v1556, %v1554
        %v1729 = vpack.c.b16 %v1559, %v1557
        %v1730 = vpack.c.b16 %v1560, %v1558
        %v1731 = vpack.c.b16 %v1563, %v1561
        %v1732 = vpack.c.b16 %v1564, %v1562
        %v1733 = vpack.c.b16 %v1567, %v1565
        %v1734 = vpack.c.b16 %v1568, %v1566
        %v1735 = vpack.c.b16 %v1571, %v1569
        %v1736 = vpack.c.b16 %v1572, %v1570
        %v1737 = vpack.c.b16 %v1575, %v1573
        %v1738 = vpack.c.b16 %v1576, %v1574
        %v1739 = vpack.c.b16 %v1579, %v1577
        %v1740 = vpack.c.b16 %v1580, %v1578
        %v1741 = vpack.c.b16 %v1583, %v1581
        %v1742 = vpack.c.b16 %v1584, %v1582
        %v1743 = vpack.c.b16 %v1587, %v1585
        %v1744 = vpack.c.b16 %v1588, %v1586
        %v1745 = vpack.c.b16 %v1591, %v1589
        %v1746 = vpack.c.b16 %v1592, %v1590
        %v1747 = vpack.c.b16 %v1595, %v1593
        %v1748 = vpack.c.b16 %v1596, %v1594
        %v1749 = vpack.c.b16 %v1599, %v1597
        %v1750 = vpack.c.b16 %v1600, %v1598
        %v1751 = vpack.c.b16 %v1603, %v1601
        %v1752 = vpack.c.b16 %v1604, %v1602
        %v1753 = vpack.c.b16 %v1607, %v1605
        %v1754 = vpack.c.b16 %v1608, %v1606
        %v1755 = vpack.c.b16 %v1611, %v1609
        %v1756 = vpack.c.b16 %v1612, %v1610
        %v1757 = vpack.c.b16 %v1615, %v1613
        %v1758 = vpack.c.b16 %v1616, %v1614
        %v1759 = vpack.c.b16 %v1619, %v1617
        %v1760 = vpack.c.b16 %v1620, %v1618
        %v1761 = vpack.c.b16 %v1623, %v1621
        %v1762 = vpack.c.b16 %v1624, %v1622
        %v1763 = vpack.c.b16 %v1627, %v1625
        %v1764 = vpack.c.b16 %v1628, %v1626
        %v1765 = vpack.c.b16 %v1631, %v1629
        %v1766 = vpack.c.b16 %v1632, %v1630
        %v1767 = vpack.c.b16 %v1635, %v1633
        %v1768 = vpack.c.b16 %v1636, %v1634
        %v1769 = vpack.c.b16 %v1639, %v1637
        %v1770 = vpack.c.b16 %v1640, %v1638
        %v1771 = vpack.c.b16 %v1643, %v1641
        %v1772 = vpack.c.b16 %v1644, %v1642
        %v1773 = vpack.c.b16 %v1647, %v1645
        %v1774 = vpack.c.b16 %v1648, %v1646
        %v1775 = vpack.c.b16 %v1651, %v1649
        %v1776 = vpack.c.b16 %v1652, %v1650
        %v1777 = vpack.c.b16 %v1655, %v1653
        %v1778 = vpack.c.b16 %v1656, %v1654
        %v1779 = vpack.c.b16 %v1659, %v1657
        %v1780 = vpack.c.b16 %v1660, %v1658
        %v1781 = vpack.c.b16 %v1663, %v1661
        %v1782 = vpack.c.b16 %v1664, %v1662
        %v1783 = vpack.c.b16 %v1667, %v1665
        %v1784 = vpack.c.b16 %v1668, %v1666
        %v1785 = vpack.c.b16 %v1671, %v1669
        %v1786 = vpack.c.b16 %v1672, %v1670
        %v1787 = vpack.c.b16 %v1675, %v1673
        %v1788 = vpack.c.b16 %v1676, %v1674
        %v1789 = vpack.c.b16 %v1679, %v1677
        %v1790 = vpack.c.b16 %v1680, %v1678
        %v1791 = vpack.c.b16 %v1683, %v1681
        %v1792 = vpack.c.b16 %v1684, %v1682
        %v1793 = vpack.c.b16 %v1687, %v1685
        %v1794 = vpack.c.b16 %v1688, %v1686
        %v1795 = vpack.c.b16 %v1691, %v1689
        %v1796 = vpack.c.b16 %v1692, %v1690
        %v1797 = vpack.c.b16 %v1695, %v1693
        %v1798 = vpack.c.b16 %v1696, %v1694
        %v1799 = vpack.c.b16 %v1699, %v1697
        %v1800 = vpack.c.b16 %v1700, %v1698
        %v1801 = vpack.c.b16 %v1703, %v1701
        %v1802 = vpack.c.b16 %v1704, %v1702
        %v1803 = vpack.c.b16 %v1707, %v1705
        %v1804 = vpack.c.b16 %v1708, %v1706
        %1901 = vmatprep.subr.bf16.mxu0 %v1710
        %1902 = vmatpush1.bf16.msra.mxu0 %v1709
        %1903 = vmatprep.subr.bf16.mxu0 %v1712
        %1904 = vmatpush1.bf16.msra.mxu0 %v1711
        %1905 = vmatprep.subr.bf16.mxu0 %v1714
        %1906 = vmatpush1.bf16.msra.mxu0 %v1713
        %1907 = vmatprep.subr.bf16.mxu0 %v1716
        %1908 = vmatpush1.bf16.msra.mxu0 %v1715
        %1909 = vmatprep.subr.bf16.mxu0 %v1718
        %1910 = vmatpush1.bf16.msra.mxu0 %v1717
        %1911 = vmatprep.subr.bf16.mxu0 %v1720
        %1912 = vmatpush1.bf16.msra.mxu0 %v1719
        %1913 = vmatprep.subr.bf16.mxu0 %v1722
        %1914 = vmatpush1.bf16.msra.mxu0 %v1721
        %1915 = vmatprep.subr.bf16.mxu0 %v1724
        %1916 = vmatpush1.bf16.msra.mxu0 %v1723
        %1917 = vmatprep.subr.bf16.mxu0 %v1726
        %1918 = vmatpush1.bf16.msra.mxu0 %v1725
        %1919 = vmatprep.subr.bf16.mxu0 %v1728
        %1920 = vmatpush1.bf16.msra.mxu0 %v1727
        %1921 = vmatprep.subr.bf16.mxu0 %v1730
        %1922 = vmatpush1.bf16.msra.mxu0 %v1729
        %1923 = vmatprep.subr.bf16.mxu0 %v1732
        %1924 = vmatpush1.bf16.msra.mxu0 %v1731
        %1925 = vmatprep.subr.bf16.mxu0 %v1734
        %1926 = vmatpush1.bf16.msra.mxu0 %v1733
        %1927 = vmatprep.subr.bf16.mxu0 %v1736
        %1928 = vmatpush1.bf16.msra.mxu0 %v1735
        %1929 = vmatprep.subr.bf16.mxu0 %v1738
        %1930 = vmatpush1.bf16.msra.mxu0 %v1737
        %1931 = vmatprep.subr.bf16.mxu0 %v1740
        %1932 = vmatpush1.bf16.msra.mxu0 %v1739
        %1933 = vmatprep.mubr.bf16.mxu0 %v1208
        %1934 = vmatmul.mubr.bf16.gmra.mrb[0].mxu0 %v1207
        %v1935 = vpop.f32.mrb[0].mxu0
        %v1936 = vadd.f32 %v1416, %v1935
        %v1937 = vpop.f32.mrb[0].mxu0
        %v1938 = vadd.f32 %v1420, %v1937
        %v1939 = vpop.f32.mrb[0].mxu0
        %v1940 = vpop.f32.mrb[0].mxu0
        %1941 = vdwg.mxu0
        %1942 = vmatprep.subr.bf16.mxu0 %v1742
        %1943 = vmatpush1.bf16.msra.mxu0 %v1741
        %1944 = vmatprep.subr.bf16.mxu0 %v1744
        %1945 = vmatpush1.bf16.msra.mxu0 %v1743
        %1946 = vmatprep.subr.bf16.mxu0 %v1746
        %1947 = vmatpush1.bf16.msra.mxu0 %v1745
        %1948 = vmatprep.subr.bf16.mxu0 %v1748
        %1949 = vmatpush1.bf16.msra.mxu0 %v1747
        %1950 = vmatprep.subr.bf16.mxu0 %v1750
        %1951 = vmatpush1.bf16.msra.mxu0 %v1749
        %1952 = vmatprep.subr.bf16.mxu0 %v1752
        %1953 = vmatpush1.bf16.msra.mxu0 %v1751
        %1954 = vmatprep.subr.bf16.mxu0 %v1754
        %1955 = vmatpush1.bf16.msra.mxu0 %v1753
        %1956 = vmatprep.subr.bf16.mxu0 %v1756
        %1957 = vmatpush1.bf16.msra.mxu0 %v1755
        %1958 = vmatprep.subr.bf16.mxu0 %v1758
        %1959 = vmatpush1.bf16.msra.mxu0 %v1757
        %1960 = vmatprep.subr.bf16.mxu0 %v1760
        %1961 = vmatpush1.bf16.msra.mxu0 %v1759
        %1962 = vmatprep.subr.bf16.mxu0 %v1762
        %1963 = vmatpush1.bf16.msra.mxu0 %v1761
        %1964 = vmatprep.subr.bf16.mxu0 %v1764
        %1965 = vmatpush1.bf16.msra.mxu0 %v1763
        %1966 = vmatprep.subr.bf16.mxu0 %v1766
        %1967 = vmatpush1.bf16.msra.mxu0 %v1765
        %1968 = vmatprep.subr.bf16.mxu0 %v1768
        %1969 = vmatpush1.bf16.msra.mxu0 %v1767
        %1970 = vmatprep.subr.bf16.mxu0 %v1770
        %1971 = vmatpush1.bf16.msra.mxu0 %v1769
        %1972 = vmatprep.subr.bf16.mxu0 %v1772
        %1973 = vmatpush1.bf16.msra.mxu0 %v1771
        %1974 = vmatprep.mubr.bf16.mxu0 %v1256
        %1975 = vmatmul.mubr.bf16.gmra.mrb[0].mxu0 %v1255
        %v1976 = vpop.f32.mrb[0].mxu0
        %v1977 = vadd.f32 %v1936, %v1976
        %v1978 = vpop.f32.mrb[0].mxu0
        %v1979 = vadd.f32 %v1938, %v1978
        %v1980 = vpop.f32.mrb[0].mxu0
        %v1981 = vpop.f32.mrb[0].mxu0
        %1982 = vdwg.mxu0
        %1983 = vmatprep.subr.bf16.mxu0 %v1774
        %1984 = vmatpush1.bf16.msra.mxu0 %v1773
        %1985 = vmatprep.subr.bf16.mxu0 %v1776
        %1986 = vmatpush1.bf16.msra.mxu0 %v1775
        %1987 = vmatprep.subr.bf16.mxu0 %v1778
        %1988 = vmatpush1.bf16.msra.mxu0 %v1777
        %1989 = vmatprep.subr.bf16.mxu0 %v1780
        %1990 = vmatpush1.bf16.msra.mxu0 %v1779
        %1991 = vmatprep.subr.bf16.mxu0 %v1782
        %1992 = vmatpush1.bf16.msra.mxu0 %v1781
        %1993 = vmatprep.subr.bf16.mxu0 %v1784
        %1994 = vmatpush1.bf16.msra.mxu0 %v1783
        %1995 = vmatprep.subr.bf16.mxu0 %v1786
        %1996 = vmatpush1.bf16.msra.mxu0 %v1785
        %1997 = vmatprep.subr.bf16.mxu0 %v1788
        %1998 = vmatpush1.bf16.msra.mxu0 %v1787
        %1999 = vmatprep.subr.bf16.mxu0 %v1790
        %2000 = vmatpush1.bf16.msra.mxu0 %v1789
        %2001 = vmatprep.subr.bf16.mxu0 %v1792
        %2002 = vmatpush1.bf16.msra.mxu0 %v1791
        %2003 = vmatprep.subr.bf16.mxu0 %v1794
        %2004 = vmatpush1.bf16.msra.mxu0 %v1793
        %2005 = vmatprep.subr.bf16.mxu0 %v1796
        %2006 = vmatpush1.bf16.msra.mxu0 %v1795
        %2007 = vmatprep.subr.bf16.mxu0 %v1798
        %2008 = vmatpush1.bf16.msra.mxu0 %v1797
        %2009 = vmatprep.subr.bf16.mxu0 %v1800
        %2010 = vmatpush1.bf16.msra.mxu0 %v1799
        %2011 = vmatprep.subr.bf16.mxu0 %v1802
        %2012 = vmatpush1.bf16.msra.mxu0 %v1801
        %2013 = vmatprep.subr.bf16.mxu0 %v1804
        %2014 = vmatpush1.bf16.msra.mxu0 %v1803
        %2015 = vmatprep.mubr.bf16.mxu0 %v1304
        %2016 = vmatmul.mubr.bf16.gmra.mrb[0].mxu0 %v1303
        %v2017 = vpop.f32.mrb[0].mxu0
        %v2018 = vadd.f32 %v1977, %v2017
        %v2019 = vpop.f32.mrb[0].mxu0
        %v2020 = vadd.f32 %v1979, %v2019
        %v2021 = vpop.f32.mrb[0].mxu0
        %v2022 = vpop.f32.mrb[0].mxu0
        %2023 = vdwg.mxu0
        %v2024 = vmul.f32 %v2018, 0.2
        %v2025 = vmul.f32 %v2020, 0.2
        %v2026 = vmax.f32 %v2018, %v2024
        %v2027 = vmax.f32 %v2020, %v2025
        %v2028 = vlaneseq
        %v2029 = vshrl.u32 %v2028, 7
        %v2030 = vsub.s32 1, %v2029
        %v2031 = vrot.slane %v1401, %v2030
        %v2032 = vlaneseq
        %v2033 = vshrl.u32 %v2032, 7
        %v2034 = vsub.s32 5, %v2033
        %v2035 = vrot.slane %v1401, %v2034
        %v2038 = vlaneseq
        %v2039 = vshrl.u32 %v2038, 7
        %v2040 = vsub.s32 1, %v2039
        %v2041 = vrot.slane %v2031, %v2040
        %v2042 = vlaneseq
        %v2043 = vshrl.u32 %v2042, 7
        %v2044 = vsub.s32 1, %v2043
        %v2045 = vrot.slane %v2035, %v2044
        %v2046 = vmul.f32 %v2026, %v2041
        %v2047 = vmul.f32 %v2027, %v2045
        %v2048 = vlaneseq
        %v2049 = vshrl.u32 %v2048, 7
        %v2050 = vsub.s32 2, %v2049
        %v2051 = vrot.slane %v1401, %v2050
        %v2052 = vlaneseq
        %v2053 = vshrl.u32 %v2052, 7
        %v2054 = vsub.s32 6, %v2053
        %v2055 = vrot.slane %v1401, %v2054
        %v2058 = vlaneseq
        %v2059 = vshrl.u32 %v2058, 7
        %v2060 = vsub.s32 2, %v2059
        %v2061 = vrot.slane %v2051, %v2060
        %v2062 = vlaneseq
        %v2063 = vshrl.u32 %v2062, 7
        %v2064 = vsub.s32 2, %v2063
        %v2065 = vrot.slane %v2055, %v2064
        %v2066 = vadd.f32 %v2046, %v2061
        %v2067 = vadd.f32 %v2047, %v2065
        %v2068 = vpack.c.bf16 %v2066, %v2066
        %v2069 = vpack.c.bf16 %v2067, %v2067
        %v2070 = vld [vmem:[%s7] sm:$0x3]
        %vm2071 = vcmask 64512
        %v2073 = vsel %vm2071, %v2070, 0
        %vm2075 = vcmask 1043456
        %v2077 = vsel %vm2075, %v2068, 0
        %v2080 = vsel %vm2075, %v2069, 0
        %2082 = vmatprep.subr.bf16.mxu0 %v2080
        %2083 = vmatpush1.bf16.msra.mxu0 %v2077
        %2084 = vmatprep.subr.bf16.mxu0 0
        %2085 = vmatpush1.bf16.msra.mxu0 0
        %2086 = vmatprep.subr.bf16.mxu0 0
        %2087 = vmatpush1.bf16.msra.mxu0 0
        %2088 = vmatprep.subr.bf16.mxu0 0
        %2089 = vmatpush1.bf16.msra.mxu0 0
        %2090 = vmatprep.subr.bf16.mxu0 0
        %2091 = vmatpush1.bf16.msra.mxu0 0
        %2092 = vmatprep.subr.bf16.mxu0 0
        %2093 = vmatpush1.bf16.msra.mxu0 0
        %2094 = vmatprep.subr.bf16.mxu0 0
        %2095 = vmatpush1.bf16.msra.mxu0 0
        %2096 = vmatprep.subr.bf16.mxu0 0
        %2097 = vmatpush1.bf16.msra.mxu0 0
        %2098 = vmatprep.subr.bf16.mxu0 0
        %2099 = vmatpush1.bf16.msra.mxu0 0
        %2100 = vmatprep.subr.bf16.mxu0 0
        %2101 = vmatpush1.bf16.msra.mxu0 0
        %2102 = vmatprep.subr.bf16.mxu0 0
        %2103 = vmatpush1.bf16.msra.mxu0 0
        %2104 = vmatprep.subr.bf16.mxu0 0
        %2105 = vmatpush1.bf16.msra.mxu0 0
        %2106 = vmatprep.subr.bf16.mxu0 0
        %2107 = vmatpush1.bf16.msra.mxu0 0
        %2108 = vmatprep.subr.bf16.mxu0 0
        %2109 = vmatpush1.bf16.msra.mxu0 0
        %2110 = vmatprep.subr.bf16.mxu0 0
        %2111 = vmatpush1.bf16.msra.mxu0 0
        %2112 = vmatprep.subr.bf16.mxu0 0
        %2113 = vmatpush1.bf16.msra.mxu0 0
        %2114 = vmatprep.mubr.bf16.mxu0 0
        %2115 = vmatmul.mubr.bf16.gmra.mrb[0].mxu0 %v2073
        %v2116 = vpop.f32.mrb[0].mxu0
        %v2117 = vadd.f32 0.0, %v2116
        %v2118 = vpop.f32.mrb[0].mxu0
        %v2119 = vadd.f32 0.0, %v2118
        %v2120 = vpop.f32.mrb[0].mxu0
        %v2121 = vpop.f32.mrb[0].mxu0
        %2122 = vdwg.mxu0
        %v2123 = vpack.c.bf16 %v2117, %v2117
        %v2124 = vpack.c.bf16 %v2119, %v2119
        %s2125 = scalar_lea.vmem %s7, 2
        %v2126 = vld [vmem:[%s2125] sm:$0x3]
        %v2128 = vsel %vm2071, %v2126, 0
        %2130 = vmatprep.subr.bf16.mxu0 %v2080
        %2131 = vmatpush1.bf16.msra.mxu0 %v2077
        %2132 = vmatprep.subr.bf16.mxu0 0
        %2133 = vmatpush1.bf16.msra.mxu0 0
        %2134 = vmatprep.subr.bf16.mxu0 0
        %2135 = vmatpush1.bf16.msra.mxu0 0
        %2136 = vmatprep.subr.bf16.mxu0 0
        %2137 = vmatpush1.bf16.msra.mxu0 0
        %2138 = vmatprep.subr.bf16.mxu0 0
        %2139 = vmatpush1.bf16.msra.mxu0 0
        %2140 = vmatprep.subr.bf16.mxu0 0
        %2141 = vmatpush1.bf16.msra.mxu0 0
        %2142 = vmatprep.subr.bf16.mxu0 0
        %2143 = vmatpush1.bf16.msra.mxu0 0
        %2144 = vmatprep.subr.bf16.mxu0 0
        %2145 = vmatpush1.bf16.msra.mxu0 0
        %2146 = vmatprep.subr.bf16.mxu0 0
        %2147 = vmatpush1.bf16.msra.mxu0 0
        %2148 = vmatprep.subr.bf16.mxu0 0
        %2149 = vmatpush1.bf16.msra.mxu0 0
        %2150 = vmatprep.subr.bf16.mxu0 0
        %2151 = vmatpush1.bf16.msra.mxu0 0
        %2152 = vmatprep.subr.bf16.mxu0 0
        %2153 = vmatpush1.bf16.msra.mxu0 0
        %2154 = vmatprep.subr.bf16.mxu0 0
        %2155 = vmatpush1.bf16.msra.mxu0 0
        %2156 = vmatprep.subr.bf16.mxu0 0
        %2157 = vmatpush1.bf16.msra.mxu0 0
        %2158 = vmatprep.subr.bf16.mxu0 0
        %2159 = vmatpush1.bf16.msra.mxu0 0
        %2160 = vmatprep.subr.bf16.mxu0 0
        %2161 = vmatpush1.bf16.msra.mxu0 0
        %2162 = vmatprep.mubr.bf16.mxu0 0
        %2163 = vmatmul.mubr.bf16.gmra.mrb[0].mxu0 %v2128
        %v2164 = vpop.f32.mrb[0].mxu0
        %v2165 = vadd.f32 0.0, %v2164
        %v2166 = vpop.f32.mrb[0].mxu0
        %v2167 = vadd.f32 0.0, %v2166
        %v2168 = vpop.f32.mrb[0].mxu0
        %v2169 = vpop.f32.mrb[0].mxu0
        %2170 = vdwg.mxu0
        %v2171 = vpack.c.bf16 %v2165, %v2165
        %v2172 = vpack.c.bf16 %v2167, %v2167
        %s2173 = scalar_lea.vmem %s7, 4
        %v2174 = vld [vmem:[%s2173] sm:$0x3]
        %v2176 = vsel %vm2071, %v2174, 0
        %2178 = vmatprep.subr.bf16.mxu0 %v2080
        %2179 = vmatpush1.bf16.msra.mxu0 %v2077
        %2180 = vmatprep.subr.bf16.mxu0 0
        %2181 = vmatpush1.bf16.msra.mxu0 0
        %2182 = vmatprep.subr.bf16.mxu0 0
        %2183 = vmatpush1.bf16.msra.mxu0 0
        %2184 = vmatprep.subr.bf16.mxu0 0
        %2185 = vmatpush1.bf16.msra.mxu0 0
        %2186 = vmatprep.subr.bf16.mxu0 0
        %2187 = vmatpush1.bf16.msra.mxu0 0
        %2188 = vmatprep.subr.bf16.mxu0 0
        %2189 = vmatpush1.bf16.msra.mxu0 0
        %2190 = vmatprep.subr.bf16.mxu0 0
        %2191 = vmatpush1.bf16.msra.mxu0 0
        %2192 = vmatprep.subr.bf16.mxu0 0
        %2193 = vmatpush1.bf16.msra.mxu0 0
        %2194 = vmatprep.subr.bf16.mxu0 0
        %2195 = vmatpush1.bf16.msra.mxu0 0
        %2196 = vmatprep.subr.bf16.mxu0 0
        %2197 = vmatpush1.bf16.msra.mxu0 0
        %2198 = vmatprep.subr.bf16.mxu0 0
        %2199 = vmatpush1.bf16.msra.mxu0 0
        %2200 = vmatprep.subr.bf16.mxu0 0
        %2201 = vmatpush1.bf16.msra.mxu0 0
        %2202 = vmatprep.subr.bf16.mxu0 0
        %2203 = vmatpush1.bf16.msra.mxu0 0
        %2204 = vmatprep.subr.bf16.mxu0 0
        %2205 = vmatpush1.bf16.msra.mxu0 0
        %2206 = vmatprep.subr.bf16.mxu0 0
        %2207 = vmatpush1.bf16.msra.mxu0 0
        %2208 = vmatprep.subr.bf16.mxu0 0
        %2209 = vmatpush1.bf16.msra.mxu0 0
        %2210 = vmatprep.mubr.bf16.mxu0 0
        %2211 = vmatmul.mubr.bf16.gmra.mrb[0].mxu0 %v2176
        %v2212 = vpop.f32.mrb[0].mxu0
        %v2213 = vadd.f32 0.0, %v2212
        %v2214 = vpop.f32.mrb[0].mxu0
        %v2215 = vadd.f32 0.0, %v2214
        %v2216 = vpop.f32.mrb[0].mxu0
        %v2217 = vpop.f32.mrb[0].mxu0
        %2218 = vdwg.mxu0
        %v2219 = vpack.c.bf16 %v2213, %v2213
        %v2220 = vpack.c.bf16 %v2215, %v2215
        %v2221 = vld [vmem:[#allocation5] sm:$0xff]
        %v2222 = vld [vmem:[#allocation5 + $0x8] sm:$0xff]
        %v2223 = vld [vmem:[#allocation5 + $0x10] sm:$0xff]
        %v2224 = vld [vmem:[#allocation5 + $0x18] sm:$0xff]
        %v2225 = vld [vmem:[#allocation5 + $0x20] sm:$0xff]
        %v2226 = vld [vmem:[#allocation5 + $0x28] sm:$0xff]
        %v2227 = vld [vmem:[#allocation5 + $0x30] sm:$0xff]
        %v2228 = vld [vmem:[#allocation5 + $0x38] sm:$0xff]
        %v2229 = vld [vmem:[#allocation5 + $0x40] sm:$0xff]
        %v2230 = vld [vmem:[#allocation5 + $0x48] sm:$0xff]
        %v2231 = vld [vmem:[#allocation5 + $0x50] sm:$0xff]
        %v2232 = vld [vmem:[#allocation5 + $0x58] sm:$0xff]
        %v2233 = vld [vmem:[#allocation5 + $0x60] sm:$0xff]
        %v2234 = vld [vmem:[#allocation5 + $0x68] sm:$0xff]
        %v2235 = vld [vmem:[#allocation5 + $0x70] sm:$0xff]
        %v2236 = vld [vmem:[#allocation5 + $0x78] sm:$0xff]
        %v2237 = vld [vmem:[#allocation5 + $0x80] sm:$0xff]
        %v2238 = vld [vmem:[#allocation5 + $0x88] sm:$0xff]
        %v2239 = vld [vmem:[#allocation5 + $0x90] sm:$0xff]
        %v2240 = vld [vmem:[#allocation5 + $0x98] sm:$0xff]
        %v2241 = vld [vmem:[#allocation5 + $0xa0] sm:$0xff]
        %v2242 = vld [vmem:[#allocation5 + $0xa8] sm:$0xff]
        %v2243 = vld [vmem:[#allocation5 + $0xb0] sm:$0xff]
        %v2244 = vld [vmem:[#allocation5 + $0xb8] sm:$0xff]
        %v2245 = vld [vmem:[#allocation5 + $0xc0] sm:$0xff]
        %v2246 = vld [vmem:[#allocation5 + $0xc8] sm:$0xff]
        %v2247 = vld [vmem:[#allocation5 + $0xd0] sm:$0xff]
        %v2248 = vld [vmem:[#allocation5 + $0xd8] sm:$0xff]
        %v2249 = vld [vmem:[#allocation5 + $0xe0] sm:$0xff]
        %v2250 = vld [vmem:[#allocation5 + $0xe8] sm:$0xff]
        %v2251 = vld [vmem:[#allocation5 + $0xf0] sm:$0xff]
        %v2252 = vld [vmem:[#allocation5 + $0xf8] sm:$0xff]
        %v2253 = vld [vmem:[#allocation5 + $0x100] sm:$0xff]
        %v2254 = vld [vmem:[#allocation5 + $0x108] sm:$0xff]
        %v2255 = vld [vmem:[#allocation5 + $0x110] sm:$0xff]
        %v2256 = vld [vmem:[#allocation5 + $0x118] sm:$0xff]
        %v2257 = vld [vmem:[#allocation5 + $0x120] sm:$0xff]
        %v2258 = vld [vmem:[#allocation5 + $0x128] sm:$0xff]
        %v2259 = vld [vmem:[#allocation5 + $0x130] sm:$0xff]
        %v2260 = vld [vmem:[#allocation5 + $0x138] sm:$0xff]
        %v2261 = vld [vmem:[#allocation5 + $0x140] sm:$0xff]
        %v2262 = vld [vmem:[#allocation5 + $0x148] sm:$0xff]
        %v2263 = vld [vmem:[#allocation5 + $0x150] sm:$0xff]
        %v2264 = vld [vmem:[#allocation5 + $0x158] sm:$0xff]
        %v2265 = vld [vmem:[#allocation5 + $0x160] sm:$0xff]
        %v2266 = vld [vmem:[#allocation5 + $0x168] sm:$0xff]
        %v2267 = vld [vmem:[#allocation5 + $0x170] sm:$0xff]
        %v2268 = vld [vmem:[#allocation5 + $0x178] sm:$0xff]
        %v2269 = vld [vmem:[#allocation5 + $0x180] sm:$0xff]
        %v2270 = vld [vmem:[#allocation5 + $0x188] sm:$0xff]
        %v2271 = vld [vmem:[#allocation5 + $0x190] sm:$0xff]
        %v2272 = vld [vmem:[#allocation5 + $0x198] sm:$0xff]
        %v2273 = vld [vmem:[#allocation5 + $0x1a0] sm:$0xff]
        %v2274 = vld [vmem:[#allocation5 + $0x1a8] sm:$0xff]
        %v2275 = vld [vmem:[#allocation5 + $0x1b0] sm:$0xff]
        %v2276 = vld [vmem:[#allocation5 + $0x1b8] sm:$0xff]
        %v2277 = vld [vmem:[#allocation5 + $0x1c0] sm:$0xff]
        %v2278 = vld [vmem:[#allocation5 + $0x1c8] sm:$0xff]
        %v2279 = vld [vmem:[#allocation5 + $0x1d0] sm:$0xff]
        %v2280 = vld [vmem:[#allocation5 + $0x1d8] sm:$0xff]
        %v2281 = vld [vmem:[#allocation5 + $0x1e0] sm:$0xff]
        %v2282 = vld [vmem:[#allocation5 + $0x1e8] sm:$0xff]
        %v2283 = vld [vmem:[#allocation5 + $0x1f0] sm:$0xff]
        %v2284 = vld [vmem:[#allocation5 + $0x1f8] sm:$0xff]
        %v2285 = vld [vmem:[#allocation5 + $0x200] sm:$0xff]
        %v2286 = vld [vmem:[#allocation5 + $0x208] sm:$0xff]
        %v2287 = vld [vmem:[#allocation5 + $0x210] sm:$0xff]
        %v2288 = vld [vmem:[#allocation5 + $0x218] sm:$0xff]
        %v2289 = vld [vmem:[#allocation5 + $0x220] sm:$0xff]
        %v2290 = vld [vmem:[#allocation5 + $0x228] sm:$0xff]
        %v2291 = vld [vmem:[#allocation5 + $0x230] sm:$0xff]
        %v2292 = vld [vmem:[#allocation5 + $0x238] sm:$0xff]
        %v2293 = vld [vmem:[#allocation5 + $0x240] sm:$0xff]
        %v2294 = vld [vmem:[#allocation5 + $0x248] sm:$0xff]
        %v2295 = vld [vmem:[#allocation5 + $0x250] sm:$0xff]
        %v2296 = vld [vmem:[#allocation5 + $0x258] sm:$0xff]
        %v2297 = vld [vmem:[#allocation5 + $0x260] sm:$0xff]
        %v2298 = vld [vmem:[#allocation5 + $0x268] sm:$0xff]
        %v2299 = vld [vmem:[#allocation5 + $0x270] sm:$0xff]
        %v2300 = vld [vmem:[#allocation5 + $0x278] sm:$0xff]
        %v2301 = vld [vmem:[#allocation5 + $0x280] sm:$0xff]
        %v2302 = vld [vmem:[#allocation5 + $0x288] sm:$0xff]
        %v2303 = vld [vmem:[#allocation5 + $0x290] sm:$0xff]
        %v2304 = vld [vmem:[#allocation5 + $0x298] sm:$0xff]
        %v2305 = vld [vmem:[#allocation5 + $0x2a0] sm:$0xff]
        %v2306 = vld [vmem:[#allocation5 + $0x2a8] sm:$0xff]
        %v2307 = vld [vmem:[#allocation5 + $0x2b0] sm:$0xff]
        %v2308 = vld [vmem:[#allocation5 + $0x2b8] sm:$0xff]
        %v2309 = vld [vmem:[#allocation5 + $0x2c0] sm:$0xff]
        %v2310 = vld [vmem:[#allocation5 + $0x2c8] sm:$0xff]
        %v2311 = vld [vmem:[#allocation5 + $0x2d0] sm:$0xff]
        %v2312 = vld [vmem:[#allocation5 + $0x2d8] sm:$0xff]
        %v2313 = vld [vmem:[#allocation5 + $0x2e0] sm:$0xff]
        %v2314 = vld [vmem:[#allocation5 + $0x2e8] sm:$0xff]
        %v2315 = vld [vmem:[#allocation5 + $0x2f0] sm:$0xff]
        %v2316 = vld [vmem:[#allocation5 + $0x2f8] sm:$0xff]
        %v2317 = vld [vmem:[%s9] sm:$0x77]
        %v2319 = vlaneseq
        %v2320 = vshrl.u32 %v2319, 7
        %v2321 = vsub.s32 0, %v2320
        %v2322 = vrot.slane %v2317, %v2321
        %v2323 = vlaneseq
        %v2324 = vshrl.u32 %v2323, 7
        %v2325 = vsub.s32 4, %v2324
        %v2326 = vrot.slane %v2317, %v2325
        %v2329 = vlaneseq
        %v2330 = vshrl.u32 %v2329, 7
        %v2331 = vsub.s32 0, %v2330
        %v2332 = vrot.slane %v2322, %v2331
        %v2333 = vlaneseq
        %v2334 = vshrl.u32 %v2333, 7
        %v2335 = vsub.s32 0, %v2334
        %v2336 = vrot.slane %v2326, %v2335
        %v2433 = vunpack.c.l.b16 %v2221
        %v2434 = vunpack.c.h.b16 %v2221
        %v2435 = vunpack.c.l.b16 %v2222
        %v2436 = vunpack.c.h.b16 %v2222
        %v2437 = vunpack.c.l.b16 %v2223
        %v2438 = vunpack.c.h.b16 %v2223
        %v2439 = vunpack.c.l.b16 %v2224
        %v2440 = vunpack.c.h.b16 %v2224
        %v2441 = vunpack.c.l.b16 %v2225
        %v2442 = vunpack.c.h.b16 %v2225
        %v2443 = vunpack.c.l.b16 %v2226
        %v2444 = vunpack.c.h.b16 %v2226
        %v2445 = vunpack.c.l.b16 %v2227
        %v2446 = vunpack.c.h.b16 %v2227
        %v2447 = vunpack.c.l.b16 %v2228
        %v2448 = vunpack.c.h.b16 %v2228
        %v2449 = vunpack.c.l.b16 %v2229
        %v2450 = vunpack.c.h.b16 %v2229
        %v2451 = vunpack.c.l.b16 %v2230
        %v2452 = vunpack.c.h.b16 %v2230
        %v2453 = vunpack.c.l.b16 %v2231
        %v2454 = vunpack.c.h.b16 %v2231
        %v2455 = vunpack.c.l.b16 %v2232
        %v2456 = vunpack.c.h.b16 %v2232
        %v2457 = vunpack.c.l.b16 %v2233
        %v2458 = vunpack.c.h.b16 %v2233
        %v2459 = vunpack.c.l.b16 %v2234
        %v2460 = vunpack.c.h.b16 %v2234
        %v2461 = vunpack.c.l.b16 %v2235
        %v2462 = vunpack.c.h.b16 %v2235
        %v2463 = vunpack.c.l.b16 %v2236
        %v2464 = vunpack.c.h.b16 %v2236
        %v2465 = vunpack.c.l.b16 %v2237
        %v2466 = vunpack.c.h.b16 %v2237
        %v2467 = vunpack.c.l.b16 %v2238
        %v2468 = vunpack.c.h.b16 %v2238
        %v2469 = vunpack.c.l.b16 %v2239
        %v2470 = vunpack.c.h.b16 %v2239
        %v2471 = vunpack.c.l.b16 %v2240
        %v2472 = vunpack.c.h.b16 %v2240
        %v2473 = vunpack.c.l.b16 %v2241
        %v2474 = vunpack.c.h.b16 %v2241
        %v2475 = vunpack.c.l.b16 %v2242
        %v2476 = vunpack.c.h.b16 %v2242
        %v2477 = vunpack.c.l.b16 %v2243
        %v2478 = vunpack.c.h.b16 %v2243
        %v2479 = vunpack.c.l.b16 %v2244
        %v2480 = vunpack.c.h.b16 %v2244
        %v2481 = vunpack.c.l.b16 %v2245
        %v2482 = vunpack.c.h.b16 %v2245
        %v2483 = vunpack.c.l.b16 %v2246
        %v2484 = vunpack.c.h.b16 %v2246
        %v2485 = vunpack.c.l.b16 %v2247
        %v2486 = vunpack.c.h.b16 %v2247
        %v2487 = vunpack.c.l.b16 %v2248
        %v2488 = vunpack.c.h.b16 %v2248
        %v2489 = vunpack.c.l.b16 %v2249
        %v2490 = vunpack.c.h.b16 %v2249
        %v2491 = vunpack.c.l.b16 %v2250
        %v2492 = vunpack.c.h.b16 %v2250
        %v2493 = vunpack.c.l.b16 %v2251
        %v2494 = vunpack.c.h.b16 %v2251
        %v2495 = vunpack.c.l.b16 %v2252
        %v2496 = vunpack.c.h.b16 %v2252
        %v2497 = vunpack.c.l.b16 %v2253
        %v2498 = vunpack.c.h.b16 %v2253
        %v2499 = vunpack.c.l.b16 %v2254
        %v2500 = vunpack.c.h.b16 %v2254
        %v2501 = vunpack.c.l.b16 %v2255
        %v2502 = vunpack.c.h.b16 %v2255
        %v2503 = vunpack.c.l.b16 %v2256
        %v2504 = vunpack.c.h.b16 %v2256
        %v2505 = vunpack.c.l.b16 %v2257
        %v2506 = vunpack.c.h.b16 %v2257
        %v2507 = vunpack.c.l.b16 %v2258
        %v2508 = vunpack.c.h.b16 %v2258
        %v2509 = vunpack.c.l.b16 %v2259
        %v2510 = vunpack.c.h.b16 %v2259
        %v2511 = vunpack.c.l.b16 %v2260
        %v2512 = vunpack.c.h.b16 %v2260
        %v2513 = vunpack.c.l.b16 %v2261
        %v2514 = vunpack.c.h.b16 %v2261
        %v2515 = vunpack.c.l.b16 %v2262
        %v2516 = vunpack.c.h.b16 %v2262
        %v2517 = vunpack.c.l.b16 %v2263
        %v2518 = vunpack.c.h.b16 %v2263
        %v2519 = vunpack.c.l.b16 %v2264
        %v2520 = vunpack.c.h.b16 %v2264
        %v2521 = vunpack.c.l.b16 %v2265
        %v2522 = vunpack.c.h.b16 %v2265
        %v2523 = vunpack.c.l.b16 %v2266
        %v2524 = vunpack.c.h.b16 %v2266
        %v2525 = vunpack.c.l.b16 %v2267
        %v2526 = vunpack.c.h.b16 %v2267
        %v2527 = vunpack.c.l.b16 %v2268
        %v2528 = vunpack.c.h.b16 %v2268
        %v2529 = vunpack.c.l.b16 %v2269
        %v2530 = vunpack.c.h.b16 %v2269
        %v2531 = vunpack.c.l.b16 %v2270
        %v2532 = vunpack.c.h.b16 %v2270
        %v2533 = vunpack.c.l.b16 %v2271
        %v2534 = vunpack.c.h.b16 %v2271
        %v2535 = vunpack.c.l.b16 %v2272
        %v2536 = vunpack.c.h.b16 %v2272
        %v2537 = vunpack.c.l.b16 %v2273
        %v2538 = vunpack.c.h.b16 %v2273
        %v2539 = vunpack.c.l.b16 %v2274
        %v2540 = vunpack.c.h.b16 %v2274
        %v2541 = vunpack.c.l.b16 %v2275
        %v2542 = vunpack.c.h.b16 %v2275
        %v2543 = vunpack.c.l.b16 %v2276
        %v2544 = vunpack.c.h.b16 %v2276
        %v2545 = vunpack.c.l.b16 %v2277
        %v2546 = vunpack.c.h.b16 %v2277
        %v2547 = vunpack.c.l.b16 %v2278
        %v2548 = vunpack.c.h.b16 %v2278
        %v2549 = vunpack.c.l.b16 %v2279
        %v2550 = vunpack.c.h.b16 %v2279
        %v2551 = vunpack.c.l.b16 %v2280
        %v2552 = vunpack.c.h.b16 %v2280
        %v2553 = vunpack.c.l.b16 %v2281
        %v2554 = vunpack.c.h.b16 %v2281
        %v2555 = vunpack.c.l.b16 %v2282
        %v2556 = vunpack.c.h.b16 %v2282
        %v2557 = vunpack.c.l.b16 %v2283
        %v2558 = vunpack.c.h.b16 %v2283
        %v2559 = vunpack.c.l.b16 %v2284
        %v2560 = vunpack.c.h.b16 %v2284
        %v2561 = vunpack.c.l.b16 %v2285
        %v2562 = vunpack.c.h.b16 %v2285
        %v2563 = vunpack.c.l.b16 %v2286
        %v2564 = vunpack.c.h.b16 %v2286
        %v2565 = vunpack.c.l.b16 %v2287
        %v2566 = vunpack.c.h.b16 %v2287
        %v2567 = vunpack.c.l.b16 %v2288
        %v2568 = vunpack.c.h.b16 %v2288
        %v2569 = vunpack.c.l.b16 %v2289
        %v2570 = vunpack.c.h.b16 %v2289
        %v2571 = vunpack.c.l.b16 %v2290
        %v2572 = vunpack.c.h.b16 %v2290
        %v2573 = vunpack.c.l.b16 %v2291
        %v2574 = vunpack.c.h.b16 %v2291
        %v2575 = vunpack.c.l.b16 %v2292
        %v2576 = vunpack.c.h.b16 %v2292
        %v2577 = vunpack.c.l.b16 %v2293
        %v2578 = vunpack.c.h.b16 %v2293
        %v2579 = vunpack.c.l.b16 %v2294
        %v2580 = vunpack.c.h.b16 %v2294
        %v2581 = vunpack.c.l.b16 %v2295
        %v2582 = vunpack.c.h.b16 %v2295
        %v2583 = vunpack.c.l.b16 %v2296
        %v2584 = vunpack.c.h.b16 %v2296
        %v2585 = vunpack.c.l.b16 %v2297
        %v2586 = vunpack.c.h.b16 %v2297
        %v2587 = vunpack.c.l.b16 %v2298
        %v2588 = vunpack.c.h.b16 %v2298
        %v2589 = vunpack.c.l.b16 %v2299
        %v2590 = vunpack.c.h.b16 %v2299
        %v2591 = vunpack.c.l.b16 %v2300
        %v2592 = vunpack.c.h.b16 %v2300
        %v2593 = vunpack.c.l.b16 %v2301
        %v2594 = vunpack.c.h.b16 %v2301
        %v2595 = vunpack.c.l.b16 %v2302
        %v2596 = vunpack.c.h.b16 %v2302
        %v2597 = vunpack.c.l.b16 %v2303
        %v2598 = vunpack.c.h.b16 %v2303
        %v2599 = vunpack.c.l.b16 %v2304
        %v2600 = vunpack.c.h.b16 %v2304
        %v2601 = vunpack.c.l.b16 %v2305
        %v2602 = vunpack.c.h.b16 %v2305
        %v2603 = vunpack.c.l.b16 %v2306
        %v2604 = vunpack.c.h.b16 %v2306
        %v2605 = vunpack.c.l.b16 %v2307
        %v2606 = vunpack.c.h.b16 %v2307
        %v2607 = vunpack.c.l.b16 %v2308
        %v2608 = vunpack.c.h.b16 %v2308
        %v2609 = vunpack.c.l.b16 %v2309
        %v2610 = vunpack.c.h.b16 %v2309
        %v2611 = vunpack.c.l.b16 %v2310
        %v2612 = vunpack.c.h.b16 %v2310
        %v2613 = vunpack.c.l.b16 %v2311
        %v2614 = vunpack.c.h.b16 %v2311
        %v2615 = vunpack.c.l.b16 %v2312
        %v2616 = vunpack.c.h.b16 %v2312
        %v2617 = vunpack.c.l.b16 %v2313
        %v2618 = vunpack.c.h.b16 %v2313
        %v2619 = vunpack.c.l.b16 %v2314
        %v2620 = vunpack.c.h.b16 %v2314
        %v2621 = vunpack.c.l.b16 %v2315
        %v2622 = vunpack.c.h.b16 %v2315
        %v2623 = vunpack.c.l.b16 %v2316
        %v2624 = vunpack.c.h.b16 %v2316
        %v2625 = vpack.c.b16 %v2435, %v2433
        %v2626 = vpack.c.b16 %v2436, %v2434
        %v2627 = vpack.c.b16 %v2439, %v2437
        %v2628 = vpack.c.b16 %v2440, %v2438
        %v2629 = vpack.c.b16 %v2443, %v2441
        %v2630 = vpack.c.b16 %v2444, %v2442
        %v2631 = vpack.c.b16 %v2447, %v2445
        %v2632 = vpack.c.b16 %v2448, %v2446
        %v2633 = vpack.c.b16 %v2451, %v2449
        %v2634 = vpack.c.b16 %v2452, %v2450
        %v2635 = vpack.c.b16 %v2455, %v2453
        %v2636 = vpack.c.b16 %v2456, %v2454
        %v2637 = vpack.c.b16 %v2459, %v2457
        %v2638 = vpack.c.b16 %v2460, %v2458
        %v2639 = vpack.c.b16 %v2463, %v2461
        %v2640 = vpack.c.b16 %v2464, %v2462
        %v2641 = vpack.c.b16 %v2467, %v2465
        %v2642 = vpack.c.b16 %v2468, %v2466
        %v2643 = vpack.c.b16 %v2471, %v2469
        %v2644 = vpack.c.b16 %v2472, %v2470
        %v2645 = vpack.c.b16 %v2475, %v2473
        %v2646 = vpack.c.b16 %v2476, %v2474
        %v2647 = vpack.c.b16 %v2479, %v2477
        %v2648 = vpack.c.b16 %v2480, %v2478
        %v2649 = vpack.c.b16 %v2483, %v2481
        %v2650 = vpack.c.b16 %v2484, %v2482
        %v2651 = vpack.c.b16 %v2487, %v2485
        %v2652 = vpack.c.b16 %v2488, %v2486
        %v2653 = vpack.c.b16 %v2491, %v2489
        %v2654 = vpack.c.b16 %v2492, %v2490
        %v2655 = vpack.c.b16 %v2495, %v2493
        %v2656 = vpack.c.b16 %v2496, %v2494
        %v2657 = vpack.c.b16 %v2499, %v2497
        %v2658 = vpack.c.b16 %v2500, %v2498
        %v2659 = vpack.c.b16 %v2503, %v2501
        %v2660 = vpack.c.b16 %v2504, %v2502
        %v2661 = vpack.c.b16 %v2507, %v2505
        %v2662 = vpack.c.b16 %v2508, %v2506
        %v2663 = vpack.c.b16 %v2511, %v2509
        %v2664 = vpack.c.b16 %v2512, %v2510
        %v2665 = vpack.c.b16 %v2515, %v2513
        %v2666 = vpack.c.b16 %v2516, %v2514
        %v2667 = vpack.c.b16 %v2519, %v2517
        %v2668 = vpack.c.b16 %v2520, %v2518
        %v2669 = vpack.c.b16 %v2523, %v2521
        %v2670 = vpack.c.b16 %v2524, %v2522
        %v2671 = vpack.c.b16 %v2527, %v2525
        %v2672 = vpack.c.b16 %v2528, %v2526
        %v2673 = vpack.c.b16 %v2531, %v2529
        %v2674 = vpack.c.b16 %v2532, %v2530
        %v2675 = vpack.c.b16 %v2535, %v2533
        %v2676 = vpack.c.b16 %v2536, %v2534
        %v2677 = vpack.c.b16 %v2539, %v2537
        %v2678 = vpack.c.b16 %v2540, %v2538
        %v2679 = vpack.c.b16 %v2543, %v2541
        %v2680 = vpack.c.b16 %v2544, %v2542
        %v2681 = vpack.c.b16 %v2547, %v2545
        %v2682 = vpack.c.b16 %v2548, %v2546
        %v2683 = vpack.c.b16 %v2551, %v2549
        %v2684 = vpack.c.b16 %v2552, %v2550
        %v2685 = vpack.c.b16 %v2555, %v2553
        %v2686 = vpack.c.b16 %v2556, %v2554
        %v2687 = vpack.c.b16 %v2559, %v2557
        %v2688 = vpack.c.b16 %v2560, %v2558
        %v2689 = vpack.c.b16 %v2563, %v2561
        %v2690 = vpack.c.b16 %v2564, %v2562
        %v2691 = vpack.c.b16 %v2567, %v2565
        %v2692 = vpack.c.b16 %v2568, %v2566
        %v2693 = vpack.c.b16 %v2571, %v2569
        %v2694 = vpack.c.b16 %v2572, %v2570
        %v2695 = vpack.c.b16 %v2575, %v2573
        %v2696 = vpack.c.b16 %v2576, %v2574
        %v2697 = vpack.c.b16 %v2579, %v2577
        %v2698 = vpack.c.b16 %v2580, %v2578
        %v2699 = vpack.c.b16 %v2583, %v2581
        %v2700 = vpack.c.b16 %v2584, %v2582
        %v2701 = vpack.c.b16 %v2587, %v2585
        %v2702 = vpack.c.b16 %v2588, %v2586
        %v2703 = vpack.c.b16 %v2591, %v2589
        %v2704 = vpack.c.b16 %v2592, %v2590
        %v2705 = vpack.c.b16 %v2595, %v2593
        %v2706 = vpack.c.b16 %v2596, %v2594
        %v2707 = vpack.c.b16 %v2599, %v2597
        %v2708 = vpack.c.b16 %v2600, %v2598
        %v2709 = vpack.c.b16 %v2603, %v2601
        %v2710 = vpack.c.b16 %v2604, %v2602
        %v2711 = vpack.c.b16 %v2607, %v2605
        %v2712 = vpack.c.b16 %v2608, %v2606
        %v2713 = vpack.c.b16 %v2611, %v2609
        %v2714 = vpack.c.b16 %v2612, %v2610
        %v2715 = vpack.c.b16 %v2615, %v2613
        %v2716 = vpack.c.b16 %v2616, %v2614
        %v2717 = vpack.c.b16 %v2619, %v2617
        %v2718 = vpack.c.b16 %v2620, %v2618
        %v2719 = vpack.c.b16 %v2623, %v2621
        %v2720 = vpack.c.b16 %v2624, %v2622
        %2817 = vmatprep.subr.bf16.mxu0 %v2626
        %2818 = vmatpush1.bf16.msra.mxu0 %v2625
        %2819 = vmatprep.subr.bf16.mxu0 %v2628
        %2820 = vmatpush1.bf16.msra.mxu0 %v2627
        %2821 = vmatprep.subr.bf16.mxu0 %v2630
        %2822 = vmatpush1.bf16.msra.mxu0 %v2629
        %2823 = vmatprep.subr.bf16.mxu0 %v2632
        %2824 = vmatpush1.bf16.msra.mxu0 %v2631
        %2825 = vmatprep.subr.bf16.mxu0 %v2634
        %2826 = vmatpush1.bf16.msra.mxu0 %v2633
        %2827 = vmatprep.subr.bf16.mxu0 %v2636
        %2828 = vmatpush1.bf16.msra.mxu0 %v2635
        %2829 = vmatprep.subr.bf16.mxu0 %v2638
        %2830 = vmatpush1.bf16.msra.mxu0 %v2637
        %2831 = vmatprep.subr.bf16.mxu0 %v2640
        %2832 = vmatpush1.bf16.msra.mxu0 %v2639
        %2833 = vmatprep.subr.bf16.mxu0 %v2642
        %2834 = vmatpush1.bf16.msra.mxu0 %v2641
        %2835 = vmatprep.subr.bf16.mxu0 %v2644
        %2836 = vmatpush1.bf16.msra.mxu0 %v2643
        %2837 = vmatprep.subr.bf16.mxu0 %v2646
        %2838 = vmatpush1.bf16.msra.mxu0 %v2645
        %2839 = vmatprep.subr.bf16.mxu0 %v2648
        %2840 = vmatpush1.bf16.msra.mxu0 %v2647
        %2841 = vmatprep.subr.bf16.mxu0 %v2650
        %2842 = vmatpush1.bf16.msra.mxu0 %v2649
        %2843 = vmatprep.subr.bf16.mxu0 %v2652
        %2844 = vmatpush1.bf16.msra.mxu0 %v2651
        %2845 = vmatprep.subr.bf16.mxu0 %v2654
        %2846 = vmatpush1.bf16.msra.mxu0 %v2653
        %2847 = vmatprep.subr.bf16.mxu0 %v2656
        %2848 = vmatpush1.bf16.msra.mxu0 %v2655
        %2849 = vmatprep.mubr.bf16.mxu0 %v2124
        %2850 = vmatmul.mubr.bf16.gmra.mrb[0].mxu0 %v2123
        %v2851 = vpop.f32.mrb[0].mxu0
        %v2852 = vadd.f32 %v2332, %v2851
        %v2853 = vpop.f32.mrb[0].mxu0
        %v2854 = vadd.f32 %v2336, %v2853
        %v2855 = vpop.f32.mrb[0].mxu0
        %v2856 = vpop.f32.mrb[0].mxu0
        %2857 = vdwg.mxu0
        %2858 = vmatprep.subr.bf16.mxu0 %v2658
        %2859 = vmatpush1.bf16.msra.mxu0 %v2657
        %2860 = vmatprep.subr.bf16.mxu0 %v2660
        %2861 = vmatpush1.bf16.msra.mxu0 %v2659
        %2862 = vmatprep.subr.bf16.mxu0 %v2662
        %2863 = vmatpush1.bf16.msra.mxu0 %v2661
        %2864 = vmatprep.subr.bf16.mxu0 %v2664
        %2865 = vmatpush1.bf16.msra.mxu0 %v2663
        %2866 = vmatprep.subr.bf16.mxu0 %v2666
        %2867 = vmatpush1.bf16.msra.mxu0 %v2665
        %2868 = vmatprep.subr.bf16.mxu0 %v2668
        %2869 = vmatpush1.bf16.msra.mxu0 %v2667
        %2870 = vmatprep.subr.bf16.mxu0 %v2670
        %2871 = vmatpush1.bf16.msra.mxu0 %v2669
        %2872 = vmatprep.subr.bf16.mxu0 %v2672
        %2873 = vmatpush1.bf16.msra.mxu0 %v2671
        %2874 = vmatprep.subr.bf16.mxu0 %v2674
        %2875 = vmatpush1.bf16.msra.mxu0 %v2673
        %2876 = vmatprep.subr.bf16.mxu0 %v2676
        %2877 = vmatpush1.bf16.msra.mxu0 %v2675
        %2878 = vmatprep.subr.bf16.mxu0 %v2678
        %2879 = vmatpush1.bf16.msra.mxu0 %v2677
        %2880 = vmatprep.subr.bf16.mxu0 %v2680
        %2881 = vmatpush1.bf16.msra.mxu0 %v2679
        %2882 = vmatprep.subr.bf16.mxu0 %v2682
        %2883 = vmatpush1.bf16.msra.mxu0 %v2681
        %2884 = vmatprep.subr.bf16.mxu0 %v2684
        %2885 = vmatpush1.bf16.msra.mxu0 %v2683
        %2886 = vmatprep.subr.bf16.mxu0 %v2686
        %2887 = vmatpush1.bf16.msra.mxu0 %v2685
        %2888 = vmatprep.subr.bf16.mxu0 %v2688
        %2889 = vmatpush1.bf16.msra.mxu0 %v2687
        %2890 = vmatprep.mubr.bf16.mxu0 %v2172
        %2891 = vmatmul.mubr.bf16.gmra.mrb[0].mxu0 %v2171
        %v2892 = vpop.f32.mrb[0].mxu0
        %v2893 = vadd.f32 %v2852, %v2892
        %v2894 = vpop.f32.mrb[0].mxu0
        %v2895 = vadd.f32 %v2854, %v2894
        %v2896 = vpop.f32.mrb[0].mxu0
        %v2897 = vpop.f32.mrb[0].mxu0
        %2898 = vdwg.mxu0
        %2899 = vmatprep.subr.bf16.mxu0 %v2690
        %2900 = vmatpush1.bf16.msra.mxu0 %v2689
        %2901 = vmatprep.subr.bf16.mxu0 %v2692
        %2902 = vmatpush1.bf16.msra.mxu0 %v2691
        %2903 = vmatprep.subr.bf16.mxu0 %v2694
        %2904 = vmatpush1.bf16.msra.mxu0 %v2693
        %2905 = vmatprep.subr.bf16.mxu0 %v2696
        %2906 = vmatpush1.bf16.msra.mxu0 %v2695
        %2907 = vmatprep.subr.bf16.mxu0 %v2698
        %2908 = vmatpush1.bf16.msra.mxu0 %v2697
        %2909 = vmatprep.subr.bf16.mxu0 %v2700
        %2910 = vmatpush1.bf16.msra.mxu0 %v2699
        %2911 = vmatprep.subr.bf16.mxu0 %v2702
        %2912 = vmatpush1.bf16.msra.mxu0 %v2701
        %2913 = vmatprep.subr.bf16.mxu0 %v2704
        %2914 = vmatpush1.bf16.msra.mxu0 %v2703
        %2915 = vmatprep.subr.bf16.mxu0 %v2706
        %2916 = vmatpush1.bf16.msra.mxu0 %v2705
        %2917 = vmatprep.subr.bf16.mxu0 %v2708
        %2918 = vmatpush1.bf16.msra.mxu0 %v2707
        %2919 = vmatprep.subr.bf16.mxu0 %v2710
        %2920 = vmatpush1.bf16.msra.mxu0 %v2709
        %2921 = vmatprep.subr.bf16.mxu0 %v2712
        %2922 = vmatpush1.bf16.msra.mxu0 %v2711
        %2923 = vmatprep.subr.bf16.mxu0 %v2714
        %2924 = vmatpush1.bf16.msra.mxu0 %v2713
        %2925 = vmatprep.subr.bf16.mxu0 %v2716
        %2926 = vmatpush1.bf16.msra.mxu0 %v2715
        %2927 = vmatprep.subr.bf16.mxu0 %v2718
        %2928 = vmatpush1.bf16.msra.mxu0 %v2717
        %2929 = vmatprep.subr.bf16.mxu0 %v2720
        %2930 = vmatpush1.bf16.msra.mxu0 %v2719
        %2931 = vmatprep.mubr.bf16.mxu0 %v2220
        %2932 = vmatmul.mubr.bf16.gmra.mrb[0].mxu0 %v2219
        %v2933 = vpop.f32.mrb[0].mxu0
        %v2934 = vadd.f32 %v2893, %v2933
        %v2935 = vpop.f32.mrb[0].mxu0
        %v2936 = vadd.f32 %v2895, %v2935
        %v2937 = vpop.f32.mrb[0].mxu0
        %v2938 = vpop.f32.mrb[0].mxu0
        %2939 = vdwg.mxu0
        %v2940 = vmul.f32 %v2934, 0.2
        %v2941 = vmul.f32 %v2936, 0.2
        %v2942 = vmax.f32 %v2934, %v2940
        %v2943 = vmax.f32 %v2936, %v2941
        %v2944 = vlaneseq
        %v2945 = vshrl.u32 %v2944, 7
        %v2946 = vsub.s32 1, %v2945
        %v2947 = vrot.slane %v2317, %v2946
        %v2948 = vlaneseq
        %v2949 = vshrl.u32 %v2948, 7
        %v2950 = vsub.s32 5, %v2949
        %v2951 = vrot.slane %v2317, %v2950
        %v2954 = vlaneseq
        %v2955 = vshrl.u32 %v2954, 7
        %v2956 = vsub.s32 1, %v2955
        %v2957 = vrot.slane %v2947, %v2956
        %v2958 = vlaneseq
        %v2959 = vshrl.u32 %v2958, 7
        %v2960 = vsub.s32 1, %v2959
        %v2961 = vrot.slane %v2951, %v2960
        %v2962 = vmul.f32 %v2942, %v2957
        %v2963 = vmul.f32 %v2943, %v2961
        %v2964 = vlaneseq
        %v2965 = vshrl.u32 %v2964, 7
        %v2966 = vsub.s32 2, %v2965
        %v2967 = vrot.slane %v2317, %v2966
        %v2968 = vlaneseq
        %v2969 = vshrl.u32 %v2968, 7
        %v2970 = vsub.s32 6, %v2969
        %v2971 = vrot.slane %v2317, %v2970
        %v2974 = vlaneseq
        %v2975 = vshrl.u32 %v2974, 7
        %v2976 = vsub.s32 2, %v2975
        %v2977 = vrot.slane %v2967, %v2976
        %v2978 = vlaneseq
        %v2979 = vshrl.u32 %v2978, 7
        %v2980 = vsub.s32 2, %v2979
        %v2981 = vrot.slane %v2971, %v2980
        %v2982 = vadd.f32 %v2962, %v2977
        %v2983 = vadd.f32 %v2963, %v2981
        %v2984 = vpack.c.bf16 %v2982, %v2982
        %v2985 = vpack.c.bf16 %v2983, %v2983
        %v2986 = vld [vmem:[%s10] sm:$0x1]
        %vm2987 = vcmask 31744
        %v2989 = vsel %vm2987, %v2986, 0
        %vm2991 = vcmask 1041408
        %v2993 = vsel %vm2991, %v2984, 0
        %v2996 = vsel %vm2991, %v2985, 0
        %2998 = vmatprep.subr.bf16.mxu0 %v2996
        %2999 = vmatpush1.bf16.msra.mxu0 %v2993
        %3000 = vmatprep.subr.bf16.mxu0 0
        %3001 = vmatpush1.bf16.msra.mxu0 0
        %3002 = vmatprep.subr.bf16.mxu0 0
        %3003 = vmatpush1.bf16.msra.mxu0 0
        %3004 = vmatprep.subr.bf16.mxu0 0
        %3005 = vmatpush1.bf16.msra.mxu0 0
        %3006 = vmatprep.subr.bf16.mxu0 0
        %3007 = vmatpush1.bf16.msra.mxu0 0
        %3008 = vmatprep.subr.bf16.mxu0 0
        %3009 = vmatpush1.bf16.msra.mxu0 0
        %3010 = vmatprep.subr.bf16.mxu0 0
        %3011 = vmatpush1.bf16.msra.mxu0 0
        %3012 = vmatprep.subr.bf16.mxu0 0
        %3013 = vmatpush1.bf16.msra.mxu0 0
        %3014 = vmatprep.subr.bf16.mxu0 0
        %3015 = vmatpush1.bf16.msra.mxu0 0
        %3016 = vmatprep.subr.bf16.mxu0 0
        %3017 = vmatpush1.bf16.msra.mxu0 0
        %3018 = vmatprep.subr.bf16.mxu0 0
        %3019 = vmatpush1.bf16.msra.mxu0 0
        %3020 = vmatprep.subr.bf16.mxu0 0
        %3021 = vmatpush1.bf16.msra.mxu0 0
        %3022 = vmatprep.subr.bf16.mxu0 0
        %3023 = vmatpush1.bf16.msra.mxu0 0
        %3024 = vmatprep.subr.bf16.mxu0 0
        %3025 = vmatpush1.bf16.msra.mxu0 0
        %3026 = vmatprep.subr.bf16.mxu0 0
        %3027 = vmatpush1.bf16.msra.mxu0 0
        %3028 = vmatprep.subr.bf16.mxu0 0
        %3029 = vmatpush1.bf16.msra.mxu0 0
        %3030 = vmatprep.mubr.bf16.mxu0 0
        %3031 = vmatmul.mubr.bf16.gmra.mrb[0].mxu0 %v2989
        %v3032 = vpop.f32.mrb[0].mxu0
        %v3033 = vadd.f32 0.0, %v3032
        %v3034 = vpop.f32.mrb[0].mxu0
        %v3035 = vadd.f32 0.0, %v3034
        %v3036 = vpop.f32.mrb[0].mxu0
        %v3037 = vpop.f32.mrb[0].mxu0
        %3038 = vdwg.mxu0
        %v3039 = vpack.c.bf16 %v3033, %v3033
        %v3040 = vpack.c.bf16 %v3035, %v3035
        %s3041 = scalar_lea.vmem %s10, 1
        %v3042 = vld [vmem:[%s3041] sm:$0x1]
        %v3044 = vsel %vm2987, %v3042, 0
        %3046 = vmatprep.subr.bf16.mxu0 %v2996
        %3047 = vmatpush1.bf16.msra.mxu0 %v2993
        %3048 = vmatprep.subr.bf16.mxu0 0
        %3049 = vmatpush1.bf16.msra.mxu0 0
        %3050 = vmatprep.subr.bf16.mxu0 0
        %3051 = vmatpush1.bf16.msra.mxu0 0
        %3052 = vmatprep.subr.bf16.mxu0 0
        %3053 = vmatpush1.bf16.msra.mxu0 0
        %3054 = vmatprep.subr.bf16.mxu0 0
        %3055 = vmatpush1.bf16.msra.mxu0 0
        %3056 = vmatprep.subr.bf16.mxu0 0
        %3057 = vmatpush1.bf16.msra.mxu0 0
        %3058 = vmatprep.subr.bf16.mxu0 0
        %3059 = vmatpush1.bf16.msra.mxu0 0
        %3060 = vmatprep.subr.bf16.mxu0 0
        %3061 = vmatpush1.bf16.msra.mxu0 0
        %3062 = vmatprep.subr.bf16.mxu0 0
        %3063 = vmatpush1.bf16.msra.mxu0 0
        %3064 = vmatprep.subr.bf16.mxu0 0
        %3065 = vmatpush1.bf16.msra.mxu0 0
        %3066 = vmatprep.subr.bf16.mxu0 0
        %3067 = vmatpush1.bf16.msra.mxu0 0
        %3068 = vmatprep.subr.bf16.mxu0 0
        %3069 = vmatpush1.bf16.msra.mxu0 0
        %3070 = vmatprep.subr.bf16.mxu0 0
        %3071 = vmatpush1.bf16.msra.mxu0 0
        %3072 = vmatprep.subr.bf16.mxu0 0
        %3073 = vmatpush1.bf16.msra.mxu0 0
        %3074 = vmatprep.subr.bf16.mxu0 0
        %3075 = vmatpush1.bf16.msra.mxu0 0
        %3076 = vmatprep.subr.bf16.mxu0 0
        %3077 = vmatpush1.bf16.msra.mxu0 0
        %3078 = vmatprep.mubr.bf16.mxu0 0
        %3079 = vmatmul.mubr.bf16.gmra.mrb[0].mxu0 %v3044
        %v3080 = vpop.f32.mrb[0].mxu0
        %v3081 = vadd.f32 0.0, %v3080
        %v3082 = vpop.f32.mrb[0].mxu0
        %v3083 = vadd.f32 0.0, %v3082
        %v3084 = vpop.f32.mrb[0].mxu0
        %v3085 = vpop.f32.mrb[0].mxu0
        %3086 = vdwg.mxu0
        %v3087 = vpack.c.bf16 %v3081, %v3081
        %v3088 = vpack.c.bf16 %v3083, %v3083
        %s3089 = scalar_lea.vmem %s10, 2
        %v3090 = vld [vmem:[%s3089] sm:$0x1]
        %v3092 = vsel %vm2987, %v3090, 0
        %3094 = vmatprep.subr.bf16.mxu0 %v2996
        %3095 = vmatpush1.bf16.msra.mxu0 %v2993
        %3096 = vmatprep.subr.bf16.mxu0 0
        %3097 = vmatpush1.bf16.msra.mxu0 0
        %3098 = vmatprep.subr.bf16.mxu0 0
        %3099 = vmatpush1.bf16.msra.mxu0 0
        %3100 = vmatprep.subr.bf16.mxu0 0
        %3101 = vmatpush1.bf16.msra.mxu0 0
        %3102 = vmatprep.subr.bf16.mxu0 0
        %3103 = vmatpush1.bf16.msra.mxu0 0
        %3104 = vmatprep.subr.bf16.mxu0 0
        %3105 = vmatpush1.bf16.msra.mxu0 0
        %3106 = vmatprep.subr.bf16.mxu0 0
        %3107 = vmatpush1.bf16.msra.mxu0 0
        %3108 = vmatprep.subr.bf16.mxu0 0
        %3109 = vmatpush1.bf16.msra.mxu0 0
        %3110 = vmatprep.subr.bf16.mxu0 0
        %3111 = vmatpush1.bf16.msra.mxu0 0
        %3112 = vmatprep.subr.bf16.mxu0 0
        %3113 = vmatpush1.bf16.msra.mxu0 0
        %3114 = vmatprep.subr.bf16.mxu0 0
        %3115 = vmatpush1.bf16.msra.mxu0 0
        %3116 = vmatprep.subr.bf16.mxu0 0
        %3117 = vmatpush1.bf16.msra.mxu0 0
        %3118 = vmatprep.subr.bf16.mxu0 0
        %3119 = vmatpush1.bf16.msra.mxu0 0
        %3120 = vmatprep.subr.bf16.mxu0 0
        %3121 = vmatpush1.bf16.msra.mxu0 0
        %3122 = vmatprep.subr.bf16.mxu0 0
        %3123 = vmatpush1.bf16.msra.mxu0 0
        %3124 = vmatprep.subr.bf16.mxu0 0
        %3125 = vmatpush1.bf16.msra.mxu0 0
        %3126 = vmatprep.mubr.bf16.mxu0 0
        %3127 = vmatmul.mubr.bf16.gmra.mrb[0].mxu0 %v3092
        %v3128 = vpop.f32.mrb[0].mxu0
        %v3129 = vadd.f32 0.0, %v3128
        %v3130 = vpop.f32.mrb[0].mxu0
        %v3131 = vadd.f32 0.0, %v3130
        %v3132 = vpop.f32.mrb[0].mxu0
        %v3133 = vpop.f32.mrb[0].mxu0
        %3134 = vdwg.mxu0
        %v3135 = vpack.c.bf16 %v3129, %v3129
        %v3136 = vpack.c.bf16 %v3131, %v3131
        %v3137 = vld [vmem:[#allocation7] sm:$0xff]
        %v3138 = vld [vmem:[#allocation7 + $0x8] sm:$0xff]
        %v3139 = vld [vmem:[#allocation7 + $0x10] sm:$0xff]
        %v3140 = vld [vmem:[#allocation7 + $0x18] sm:$0xff]
        %v3141 = vld [vmem:[#allocation7 + $0x20] sm:$0xff]
        %v3142 = vld [vmem:[#allocation7 + $0x28] sm:$0xff]
        %v3143 = vld [vmem:[#allocation7 + $0x30] sm:$0xff]
        %v3144 = vld [vmem:[#allocation7 + $0x38] sm:$0xff]
        %v3145 = vld [vmem:[#allocation7 + $0x40] sm:$0xff]
        %v3146 = vld [vmem:[#allocation7 + $0x48] sm:$0xff]
        %v3147 = vld [vmem:[#allocation7 + $0x50] sm:$0xff]
        %v3148 = vld [vmem:[#allocation7 + $0x58] sm:$0xff]
        %v3149 = vld [vmem:[#allocation7 + $0x60] sm:$0xff]
        %v3150 = vld [vmem:[#allocation7 + $0x68] sm:$0xff]
        %v3151 = vld [vmem:[#allocation7 + $0x70] sm:$0xff]
        %v3152 = vld [vmem:[#allocation7 + $0x78] sm:$0xff]
        %v3153 = vld [vmem:[#allocation7 + $0x80] sm:$0xff]
        %v3154 = vld [vmem:[#allocation7 + $0x88] sm:$0xff]
        %v3155 = vld [vmem:[#allocation7 + $0x90] sm:$0xff]
        %v3156 = vld [vmem:[#allocation7 + $0x98] sm:$0xff]
        %v3157 = vld [vmem:[#allocation7 + $0xa0] sm:$0xff]
        %v3158 = vld [vmem:[#allocation7 + $0xa8] sm:$0xff]
        %v3159 = vld [vmem:[#allocation7 + $0xb0] sm:$0xff]
        %v3160 = vld [vmem:[#allocation7 + $0xb8] sm:$0xff]
        %v3161 = vld [vmem:[#allocation7 + $0xc0] sm:$0xff]
        %v3162 = vld [vmem:[#allocation7 + $0xc8] sm:$0xff]
        %v3163 = vld [vmem:[#allocation7 + $0xd0] sm:$0xff]
        %v3164 = vld [vmem:[#allocation7 + $0xd8] sm:$0xff]
        %v3165 = vld [vmem:[#allocation7 + $0xe0] sm:$0xff]
        %v3166 = vld [vmem:[#allocation7 + $0xe8] sm:$0xff]
        %v3167 = vld [vmem:[#allocation7 + $0xf0] sm:$0xff]
        %v3168 = vld [vmem:[#allocation7 + $0xf8] sm:$0xff]
        %v3169 = vld [vmem:[#allocation7 + $0x100] sm:$0xff]
        %v3170 = vld [vmem:[#allocation7 + $0x108] sm:$0xff]
        %v3171 = vld [vmem:[#allocation7 + $0x110] sm:$0xff]
        %v3172 = vld [vmem:[#allocation7 + $0x118] sm:$0xff]
        %v3173 = vld [vmem:[#allocation7 + $0x120] sm:$0xff]
        %v3174 = vld [vmem:[#allocation7 + $0x128] sm:$0xff]
        %v3175 = vld [vmem:[#allocation7 + $0x130] sm:$0xff]
        %v3176 = vld [vmem:[#allocation7 + $0x138] sm:$0xff]
        %v3177 = vld [vmem:[#allocation7 + $0x140] sm:$0xff]
        %v3178 = vld [vmem:[#allocation7 + $0x148] sm:$0xff]
        %v3179 = vld [vmem:[#allocation7 + $0x150] sm:$0xff]
        %v3180 = vld [vmem:[#allocation7 + $0x158] sm:$0xff]
        %v3181 = vld [vmem:[#allocation7 + $0x160] sm:$0xff]
        %v3182 = vld [vmem:[#allocation7 + $0x168] sm:$0xff]
        %v3183 = vld [vmem:[#allocation7 + $0x170] sm:$0xff]
        %v3184 = vld [vmem:[#allocation7 + $0x178] sm:$0xff]
        %v3185 = vld [vmem:[#allocation7 + $0x180] sm:$0xff]
        %v3186 = vld [vmem:[#allocation7 + $0x188] sm:$0xff]
        %v3187 = vld [vmem:[#allocation7 + $0x190] sm:$0xff]
        %v3188 = vld [vmem:[#allocation7 + $0x198] sm:$0xff]
        %v3189 = vld [vmem:[#allocation7 + $0x1a0] sm:$0xff]
        %v3190 = vld [vmem:[#allocation7 + $0x1a8] sm:$0xff]
        %v3191 = vld [vmem:[#allocation7 + $0x1b0] sm:$0xff]
        %v3192 = vld [vmem:[#allocation7 + $0x1b8] sm:$0xff]
        %v3193 = vld [vmem:[#allocation7 + $0x1c0] sm:$0xff]
        %v3194 = vld [vmem:[#allocation7 + $0x1c8] sm:$0xff]
        %v3195 = vld [vmem:[#allocation7 + $0x1d0] sm:$0xff]
        %v3196 = vld [vmem:[#allocation7 + $0x1d8] sm:$0xff]
        %v3197 = vld [vmem:[#allocation7 + $0x1e0] sm:$0xff]
        %v3198 = vld [vmem:[#allocation7 + $0x1e8] sm:$0xff]
        %v3199 = vld [vmem:[#allocation7 + $0x1f0] sm:$0xff]
        %v3200 = vld [vmem:[#allocation7 + $0x1f8] sm:$0xff]
        %v3201 = vld [vmem:[#allocation7 + $0x200] sm:$0xff]
        %v3202 = vld [vmem:[#allocation7 + $0x208] sm:$0xff]
        %v3203 = vld [vmem:[#allocation7 + $0x210] sm:$0xff]
        %v3204 = vld [vmem:[#allocation7 + $0x218] sm:$0xff]
        %v3205 = vld [vmem:[#allocation7 + $0x220] sm:$0xff]
        %v3206 = vld [vmem:[#allocation7 + $0x228] sm:$0xff]
        %v3207 = vld [vmem:[#allocation7 + $0x230] sm:$0xff]
        %v3208 = vld [vmem:[#allocation7 + $0x238] sm:$0xff]
        %v3209 = vld [vmem:[#allocation7 + $0x240] sm:$0xff]
        %v3210 = vld [vmem:[#allocation7 + $0x248] sm:$0xff]
        %v3211 = vld [vmem:[#allocation7 + $0x250] sm:$0xff]
        %v3212 = vld [vmem:[#allocation7 + $0x258] sm:$0xff]
        %v3213 = vld [vmem:[#allocation7 + $0x260] sm:$0xff]
        %v3214 = vld [vmem:[#allocation7 + $0x268] sm:$0xff]
        %v3215 = vld [vmem:[#allocation7 + $0x270] sm:$0xff]
        %v3216 = vld [vmem:[#allocation7 + $0x278] sm:$0xff]
        %v3217 = vld [vmem:[#allocation7 + $0x280] sm:$0xff]
        %v3218 = vld [vmem:[#allocation7 + $0x288] sm:$0xff]
        %v3219 = vld [vmem:[#allocation7 + $0x290] sm:$0xff]
        %v3220 = vld [vmem:[#allocation7 + $0x298] sm:$0xff]
        %v3221 = vld [vmem:[#allocation7 + $0x2a0] sm:$0xff]
        %v3222 = vld [vmem:[#allocation7 + $0x2a8] sm:$0xff]
        %v3223 = vld [vmem:[#allocation7 + $0x2b0] sm:$0xff]
        %v3224 = vld [vmem:[#allocation7 + $0x2b8] sm:$0xff]
        %v3225 = vld [vmem:[#allocation7 + $0x2c0] sm:$0xff]
        %v3226 = vld [vmem:[#allocation7 + $0x2c8] sm:$0xff]
        %v3227 = vld [vmem:[#allocation7 + $0x2d0] sm:$0xff]
        %v3228 = vld [vmem:[#allocation7 + $0x2d8] sm:$0xff]
        %v3229 = vld [vmem:[#allocation7 + $0x2e0] sm:$0xff]
        %v3230 = vld [vmem:[#allocation7 + $0x2e8] sm:$0xff]
        %v3231 = vld [vmem:[#allocation7 + $0x2f0] sm:$0xff]
        %v3232 = vld [vmem:[#allocation7 + $0x2f8] sm:$0xff]
        %v3233 = vld [vmem:[%s12] sm:$0x77]
        %v3235 = vlaneseq
        %v3236 = vshrl.u32 %v3235, 7
        %v3237 = vsub.s32 0, %v3236
        %v3238 = vrot.slane %v3233, %v3237
        %v3239 = vlaneseq
        %v3240 = vshrl.u32 %v3239, 7
        %v3241 = vsub.s32 4, %v3240
        %v3242 = vrot.slane %v3233, %v3241
        %v3245 = vlaneseq
        %v3246 = vshrl.u32 %v3245, 7
        %v3247 = vsub.s32 0, %v3246
        %v3248 = vrot.slane %v3238, %v3247
        %v3249 = vlaneseq
        %v3250 = vshrl.u32 %v3249, 7
        %v3251 = vsub.s32 0, %v3250
        %v3252 = vrot.slane %v3242, %v3251
        %v3349 = vunpack.c.l.b16 %v3137
        %v3350 = vunpack.c.h.b16 %v3137
        %v3351 = vunpack.c.l.b16 %v3138
        %v3352 = vunpack.c.h.b16 %v3138
        %v3353 = vunpack.c.l.b16 %v3139
        %v3354 = vunpack.c.h.b16 %v3139
        %v3355 = vunpack.c.l.b16 %v3140
        %v3356 = vunpack.c.h.b16 %v3140
        %v3357 = vunpack.c.l.b16 %v3141
        %v3358 = vunpack.c.h.b16 %v3141
        %v3359 = vunpack.c.l.b16 %v3142
        %v3360 = vunpack.c.h.b16 %v3142
        %v3361 = vunpack.c.l.b16 %v3143
        %v3362 = vunpack.c.h.b16 %v3143
        %v3363 = vunpack.c.l.b16 %v3144
        %v3364 = vunpack.c.h.b16 %v3144
        %v3365 = vunpack.c.l.b16 %v3145
        %v3366 = vunpack.c.h.b16 %v3145
        %v3367 = vunpack.c.l.b16 %v3146
        %v3368 = vunpack.c.h.b16 %v3146
        %v3369 = vunpack.c.l.b16 %v3147
        %v3370 = vunpack.c.h.b16 %v3147
        %v3371 = vunpack.c.l.b16 %v3148
        %v3372 = vunpack.c.h.b16 %v3148
        %v3373 = vunpack.c.l.b16 %v3149
        %v3374 = vunpack.c.h.b16 %v3149
        %v3375 = vunpack.c.l.b16 %v3150
        %v3376 = vunpack.c.h.b16 %v3150
        %v3377 = vunpack.c.l.b16 %v3151
        %v3378 = vunpack.c.h.b16 %v3151
        %v3379 = vunpack.c.l.b16 %v3152
        %v3380 = vunpack.c.h.b16 %v3152
        %v3381 = vunpack.c.l.b16 %v3153
        %v3382 = vunpack.c.h.b16 %v3153
        %v3383 = vunpack.c.l.b16 %v3154
        %v3384 = vunpack.c.h.b16 %v3154
        %v3385 = vunpack.c.l.b16 %v3155
        %v3386 = vunpack.c.h.b16 %v3155
        %v3387 = vunpack.c.l.b16 %v3156
        %v3388 = vunpack.c.h.b16 %v3156
        %v3389 = vunpack.c.l.b16 %v3157
        %v3390 = vunpack.c.h.b16 %v3157
        %v3391 = vunpack.c.l.b16 %v3158
        %v3392 = vunpack.c.h.b16 %v3158
        %v3393 = vunpack.c.l.b16 %v3159
        %v3394 = vunpack.c.h.b16 %v3159
        %v3395 = vunpack.c.l.b16 %v3160
        %v3396 = vunpack.c.h.b16 %v3160
        %v3397 = vunpack.c.l.b16 %v3161
        %v3398 = vunpack.c.h.b16 %v3161
        %v3399 = vunpack.c.l.b16 %v3162
        %v3400 = vunpack.c.h.b16 %v3162
        %v3401 = vunpack.c.l.b16 %v3163
        %v3402 = vunpack.c.h.b16 %v3163
        %v3403 = vunpack.c.l.b16 %v3164
        %v3404 = vunpack.c.h.b16 %v3164
        %v3405 = vunpack.c.l.b16 %v3165
        %v3406 = vunpack.c.h.b16 %v3165
        %v3407 = vunpack.c.l.b16 %v3166
        %v3408 = vunpack.c.h.b16 %v3166
        %v3409 = vunpack.c.l.b16 %v3167
        %v3410 = vunpack.c.h.b16 %v3167
        %v3411 = vunpack.c.l.b16 %v3168
        %v3412 = vunpack.c.h.b16 %v3168
        %v3413 = vunpack.c.l.b16 %v3169
        %v3414 = vunpack.c.h.b16 %v3169
        %v3415 = vunpack.c.l.b16 %v3170
        %v3416 = vunpack.c.h.b16 %v3170
        %v3417 = vunpack.c.l.b16 %v3171
        %v3418 = vunpack.c.h.b16 %v3171
        %v3419 = vunpack.c.l.b16 %v3172
        %v3420 = vunpack.c.h.b16 %v3172
        %v3421 = vunpack.c.l.b16 %v3173
        %v3422 = vunpack.c.h.b16 %v3173
        %v3423 = vunpack.c.l.b16 %v3174
        %v3424 = vunpack.c.h.b16 %v3174
        %v3425 = vunpack.c.l.b16 %v3175
        %v3426 = vunpack.c.h.b16 %v3175
        %v3427 = vunpack.c.l.b16 %v3176
        %v3428 = vunpack.c.h.b16 %v3176
        %v3429 = vunpack.c.l.b16 %v3177
        %v3430 = vunpack.c.h.b16 %v3177
        %v3431 = vunpack.c.l.b16 %v3178
        %v3432 = vunpack.c.h.b16 %v3178
        %v3433 = vunpack.c.l.b16 %v3179
        %v3434 = vunpack.c.h.b16 %v3179
        %v3435 = vunpack.c.l.b16 %v3180
        %v3436 = vunpack.c.h.b16 %v3180
        %v3437 = vunpack.c.l.b16 %v3181
        %v3438 = vunpack.c.h.b16 %v3181
        %v3439 = vunpack.c.l.b16 %v3182
        %v3440 = vunpack.c.h.b16 %v3182
        %v3441 = vunpack.c.l.b16 %v3183
        %v3442 = vunpack.c.h.b16 %v3183
        %v3443 = vunpack.c.l.b16 %v3184
        %v3444 = vunpack.c.h.b16 %v3184
        %v3445 = vunpack.c.l.b16 %v3185
        %v3446 = vunpack.c.h.b16 %v3185
        %v3447 = vunpack.c.l.b16 %v3186
        %v3448 = vunpack.c.h.b16 %v3186
        %v3449 = vunpack.c.l.b16 %v3187
        %v3450 = vunpack.c.h.b16 %v3187
        %v3451 = vunpack.c.l.b16 %v3188
        %v3452 = vunpack.c.h.b16 %v3188
        %v3453 = vunpack.c.l.b16 %v3189
        %v3454 = vunpack.c.h.b16 %v3189
        %v3455 = vunpack.c.l.b16 %v3190
        %v3456 = vunpack.c.h.b16 %v3190
        %v3457 = vunpack.c.l.b16 %v3191
        %v3458 = vunpack.c.h.b16 %v3191
        %v3459 = vunpack.c.l.b16 %v3192
        %v3460 = vunpack.c.h.b16 %v3192
        %v3461 = vunpack.c.l.b16 %v3193
        %v3462 = vunpack.c.h.b16 %v3193
        %v3463 = vunpack.c.l.b16 %v3194
        %v3464 = vunpack.c.h.b16 %v3194
        %v3465 = vunpack.c.l.b16 %v3195
        %v3466 = vunpack.c.h.b16 %v3195
        %v3467 = vunpack.c.l.b16 %v3196
        %v3468 = vunpack.c.h.b16 %v3196
        %v3469 = vunpack.c.l.b16 %v3197
        %v3470 = vunpack.c.h.b16 %v3197
        %v3471 = vunpack.c.l.b16 %v3198
        %v3472 = vunpack.c.h.b16 %v3198
        %v3473 = vunpack.c.l.b16 %v3199
        %v3474 = vunpack.c.h.b16 %v3199
        %v3475 = vunpack.c.l.b16 %v3200
        %v3476 = vunpack.c.h.b16 %v3200
        %v3477 = vunpack.c.l.b16 %v3201
        %v3478 = vunpack.c.h.b16 %v3201
        %v3479 = vunpack.c.l.b16 %v3202
        %v3480 = vunpack.c.h.b16 %v3202
        %v3481 = vunpack.c.l.b16 %v3203
        %v3482 = vunpack.c.h.b16 %v3203
        %v3483 = vunpack.c.l.b16 %v3204
        %v3484 = vunpack.c.h.b16 %v3204
        %v3485 = vunpack.c.l.b16 %v3205
        %v3486 = vunpack.c.h.b16 %v3205
        %v3487 = vunpack.c.l.b16 %v3206
        %v3488 = vunpack.c.h.b16 %v3206
        %v3489 = vunpack.c.l.b16 %v3207
        %v3490 = vunpack.c.h.b16 %v3207
        %v3491 = vunpack.c.l.b16 %v3208
        %v3492 = vunpack.c.h.b16 %v3208
        %v3493 = vunpack.c.l.b16 %v3209
        %v3494 = vunpack.c.h.b16 %v3209
        %v3495 = vunpack.c.l.b16 %v3210
        %v3496 = vunpack.c.h.b16 %v3210
        %v3497 = vunpack.c.l.b16 %v3211
        %v3498 = vunpack.c.h.b16 %v3211
        %v3499 = vunpack.c.l.b16 %v3212
        %v3500 = vunpack.c.h.b16 %v3212
        %v3501 = vunpack.c.l.b16 %v3213
        %v3502 = vunpack.c.h.b16 %v3213
        %v3503 = vunpack.c.l.b16 %v3214
        %v3504 = vunpack.c.h.b16 %v3214
        %v3505 = vunpack.c.l.b16 %v3215
        %v3506 = vunpack.c.h.b16 %v3215
        %v3507 = vunpack.c.l.b16 %v3216
        %v3508 = vunpack.c.h.b16 %v3216
        %v3509 = vunpack.c.l.b16 %v3217
        %v3510 = vunpack.c.h.b16 %v3217
        %v3511 = vunpack.c.l.b16 %v3218
        %v3512 = vunpack.c.h.b16 %v3218
        %v3513 = vunpack.c.l.b16 %v3219
        %v3514 = vunpack.c.h.b16 %v3219
        %v3515 = vunpack.c.l.b16 %v3220
        %v3516 = vunpack.c.h.b16 %v3220
        %v3517 = vunpack.c.l.b16 %v3221
        %v3518 = vunpack.c.h.b16 %v3221
        %v3519 = vunpack.c.l.b16 %v3222
        %v3520 = vunpack.c.h.b16 %v3222
        %v3521 = vunpack.c.l.b16 %v3223
        %v3522 = vunpack.c.h.b16 %v3223
        %v3523 = vunpack.c.l.b16 %v3224
        %v3524 = vunpack.c.h.b16 %v3224
        %v3525 = vunpack.c.l.b16 %v3225
        %v3526 = vunpack.c.h.b16 %v3225
        %v3527 = vunpack.c.l.b16 %v3226
        %v3528 = vunpack.c.h.b16 %v3226
        %v3529 = vunpack.c.l.b16 %v3227
        %v3530 = vunpack.c.h.b16 %v3227
        %v3531 = vunpack.c.l.b16 %v3228
        %v3532 = vunpack.c.h.b16 %v3228
        %v3533 = vunpack.c.l.b16 %v3229
        %v3534 = vunpack.c.h.b16 %v3229
        %v3535 = vunpack.c.l.b16 %v3230
        %v3536 = vunpack.c.h.b16 %v3230
        %v3537 = vunpack.c.l.b16 %v3231
        %v3538 = vunpack.c.h.b16 %v3231
        %v3539 = vunpack.c.l.b16 %v3232
        %v3540 = vunpack.c.h.b16 %v3232
        %v3541 = vpack.c.b16 %v3351, %v3349
        %v3542 = vpack.c.b16 %v3352, %v3350
        %v3543 = vpack.c.b16 %v3355, %v3353
        %v3544 = vpack.c.b16 %v3356, %v3354
        %v3545 = vpack.c.b16 %v3359, %v3357
        %v3546 = vpack.c.b16 %v3360, %v3358
        %v3547 = vpack.c.b16 %v3363, %v3361
        %v3548 = vpack.c.b16 %v3364, %v3362
        %v3549 = vpack.c.b16 %v3367, %v3365
        %v3550 = vpack.c.b16 %v3368, %v3366
        %v3551 = vpack.c.b16 %v3371, %v3369
        %v3552 = vpack.c.b16 %v3372, %v3370
        %v3553 = vpack.c.b16 %v3375, %v3373
        %v3554 = vpack.c.b16 %v3376, %v3374
        %v3555 = vpack.c.b16 %v3379, %v3377
        %v3556 = vpack.c.b16 %v3380, %v3378
        %v3557 = vpack.c.b16 %v3383, %v3381
        %v3558 = vpack.c.b16 %v3384, %v3382
        %v3559 = vpack.c.b16 %v3387, %v3385
        %v3560 = vpack.c.b16 %v3388, %v3386
        %v3561 = vpack.c.b16 %v3391, %v3389
        %v3562 = vpack.c.b16 %v3392, %v3390
        %v3563 = vpack.c.b16 %v3395, %v3393
        %v3564 = vpack.c.b16 %v3396, %v3394
        %v3565 = vpack.c.b16 %v3399, %v3397
        %v3566 = vpack.c.b16 %v3400, %v3398
        %v3567 = vpack.c.b16 %v3403, %v3401
        %v3568 = vpack.c.b16 %v3404, %v3402
        %v3569 = vpack.c.b16 %v3407, %v3405
        %v3570 = vpack.c.b16 %v3408, %v3406
        %v3571 = vpack.c.b16 %v3411, %v3409
        %v3572 = vpack.c.b16 %v3412, %v3410
        %v3573 = vpack.c.b16 %v3415, %v3413
        %v3574 = vpack.c.b16 %v3416, %v3414
        %v3575 = vpack.c.b16 %v3419, %v3417
        %v3576 = vpack.c.b16 %v3420, %v3418
        %v3577 = vpack.c.b16 %v3423, %v3421
        %v3578 = vpack.c.b16 %v3424, %v3422
        %v3579 = vpack.c.b16 %v3427, %v3425
        %v3580 = vpack.c.b16 %v3428, %v3426
        %v3581 = vpack.c.b16 %v3431, %v3429
        %v3582 = vpack.c.b16 %v3432, %v3430
        %v3583 = vpack.c.b16 %v3435, %v3433
        %v3584 = vpack.c.b16 %v3436, %v3434
        %v3585 = vpack.c.b16 %v3439, %v3437
        %v3586 = vpack.c.b16 %v3440, %v3438
        %v3587 = vpack.c.b16 %v3443, %v3441
        %v3588 = vpack.c.b16 %v3444, %v3442
        %v3589 = vpack.c.b16 %v3447, %v3445
        %v3590 = vpack.c.b16 %v3448, %v3446
        %v3591 = vpack.c.b16 %v3451, %v3449
        %v3592 = vpack.c.b16 %v3452, %v3450
        %v3593 = vpack.c.b16 %v3455, %v3453
        %v3594 = vpack.c.b16 %v3456, %v3454
        %v3595 = vpack.c.b16 %v3459, %v3457
        %v3596 = vpack.c.b16 %v3460, %v3458
        %v3597 = vpack.c.b16 %v3463, %v3461
        %v3598 = vpack.c.b16 %v3464, %v3462
        %v3599 = vpack.c.b16 %v3467, %v3465
        %v3600 = vpack.c.b16 %v3468, %v3466
        %v3601 = vpack.c.b16 %v3471, %v3469
        %v3602 = vpack.c.b16 %v3472, %v3470
        %v3603 = vpack.c.b16 %v3475, %v3473
        %v3604 = vpack.c.b16 %v3476, %v3474
        %v3605 = vpack.c.b16 %v3479, %v3477
        %v3606 = vpack.c.b16 %v3480, %v3478
        %v3607 = vpack.c.b16 %v3483, %v3481
        %v3608 = vpack.c.b16 %v3484, %v3482
        %v3609 = vpack.c.b16 %v3487, %v3485
        %v3610 = vpack.c.b16 %v3488, %v3486
        %v3611 = vpack.c.b16 %v3491, %v3489
        %v3612 = vpack.c.b16 %v3492, %v3490
        %v3613 = vpack.c.b16 %v3495, %v3493
        %v3614 = vpack.c.b16 %v3496, %v3494
        %v3615 = vpack.c.b16 %v3499, %v3497
        %v3616 = vpack.c.b16 %v3500, %v3498
        %v3617 = vpack.c.b16 %v3503, %v3501
        %v3618 = vpack.c.b16 %v3504, %v3502
        %v3619 = vpack.c.b16 %v3507, %v3505
        %v3620 = vpack.c.b16 %v3508, %v3506
        %v3621 = vpack.c.b16 %v3511, %v3509
        %v3622 = vpack.c.b16 %v3512, %v3510
        %v3623 = vpack.c.b16 %v3515, %v3513
        %v3624 = vpack.c.b16 %v3516, %v3514
        %v3625 = vpack.c.b16 %v3519, %v3517
        %v3626 = vpack.c.b16 %v3520, %v3518
        %v3627 = vpack.c.b16 %v3523, %v3521
        %v3628 = vpack.c.b16 %v3524, %v3522
        %v3629 = vpack.c.b16 %v3527, %v3525
        %v3630 = vpack.c.b16 %v3528, %v3526
        %v3631 = vpack.c.b16 %v3531, %v3529
        %v3632 = vpack.c.b16 %v3532, %v3530
        %v3633 = vpack.c.b16 %v3535, %v3533
        %v3634 = vpack.c.b16 %v3536, %v3534
        %v3635 = vpack.c.b16 %v3539, %v3537
        %v3636 = vpack.c.b16 %v3540, %v3538
        %3733 = vmatprep.subr.bf16.mxu0 %v3542
        %3734 = vmatpush1.bf16.msra.mxu0 %v3541
        %3735 = vmatprep.subr.bf16.mxu0 %v3544
        %3736 = vmatpush1.bf16.msra.mxu0 %v3543
        %3737 = vmatprep.subr.bf16.mxu0 %v3546
        %3738 = vmatpush1.bf16.msra.mxu0 %v3545
        %3739 = vmatprep.subr.bf16.mxu0 %v3548
        %3740 = vmatpush1.bf16.msra.mxu0 %v3547
        %3741 = vmatprep.subr.bf16.mxu0 %v3550
        %3742 = vmatpush1.bf16.msra.mxu0 %v3549
        %3743 = vmatprep.subr.bf16.mxu0 %v3552
        %3744 = vmatpush1.bf16.msra.mxu0 %v3551
        %3745 = vmatprep.subr.bf16.mxu0 %v3554
        %3746 = vmatpush1.bf16.msra.mxu0 %v3553
        %3747 = vmatprep.subr.bf16.mxu0 %v3556
        %3748 = vmatpush1.bf16.msra.mxu0 %v3555
        %3749 = vmatprep.subr.bf16.mxu0 %v3558
        %3750 = vmatpush1.bf16.msra.mxu0 %v3557
        %3751 = vmatprep.subr.bf16.mxu0 %v3560
        %3752 = vmatpush1.bf16.msra.mxu0 %v3559
        %3753 = vmatprep.subr.bf16.mxu0 %v3562
        %3754 = vmatpush1.bf16.msra.mxu0 %v3561
        %3755 = vmatprep.subr.bf16.mxu0 %v3564
        %3756 = vmatpush1.bf16.msra.mxu0 %v3563
        %3757 = vmatprep.subr.bf16.mxu0 %v3566
        %3758 = vmatpush1.bf16.msra.mxu0 %v3565
        %3759 = vmatprep.subr.bf16.mxu0 %v3568
        %3760 = vmatpush1.bf16.msra.mxu0 %v3567
        %3761 = vmatprep.subr.bf16.mxu0 %v3570
        %3762 = vmatpush1.bf16.msra.mxu0 %v3569
        %3763 = vmatprep.subr.bf16.mxu0 %v3572
        %3764 = vmatpush1.bf16.msra.mxu0 %v3571
        %3765 = vmatprep.mubr.bf16.mxu0 %v3040
        %3766 = vmatmul.mubr.bf16.gmra.mrb[0].mxu0 %v3039
        %v3767 = vpop.f32.mrb[0].mxu0
        %v3768 = vadd.f32 %v3248, %v3767
        %v3769 = vpop.f32.mrb[0].mxu0
        %v3770 = vadd.f32 %v3252, %v3769
        %v3771 = vpop.f32.mrb[0].mxu0
        %v3772 = vpop.f32.mrb[0].mxu0
        %3773 = vdwg.mxu0
        %3774 = vmatprep.subr.bf16.mxu0 %v3574
        %3775 = vmatpush1.bf16.msra.mxu0 %v3573
        %3776 = vmatprep.subr.bf16.mxu0 %v3576
        %3777 = vmatpush1.bf16.msra.mxu0 %v3575
        %3778 = vmatprep.subr.bf16.mxu0 %v3578
        %3779 = vmatpush1.bf16.msra.mxu0 %v3577
        %3780 = vmatprep.subr.bf16.mxu0 %v3580
        %3781 = vmatpush1.bf16.msra.mxu0 %v3579
        %3782 = vmatprep.subr.bf16.mxu0 %v3582
        %3783 = vmatpush1.bf16.msra.mxu0 %v3581
        %3784 = vmatprep.subr.bf16.mxu0 %v3584
        %3785 = vmatpush1.bf16.msra.mxu0 %v3583
        %3786 = vmatprep.subr.bf16.mxu0 %v3586
        %3787 = vmatpush1.bf16.msra.mxu0 %v3585
        %3788 = vmatprep.subr.bf16.mxu0 %v3588
        %3789 = vmatpush1.bf16.msra.mxu0 %v3587
        %3790 = vmatprep.subr.bf16.mxu0 %v3590
        %3791 = vmatpush1.bf16.msra.mxu0 %v3589
        %3792 = vmatprep.subr.bf16.mxu0 %v3592
        %3793 = vmatpush1.bf16.msra.mxu0 %v3591
        %3794 = vmatprep.subr.bf16.mxu0 %v3594
        %3795 = vmatpush1.bf16.msra.mxu0 %v3593
        %3796 = vmatprep.subr.bf16.mxu0 %v3596
        %3797 = vmatpush1.bf16.msra.mxu0 %v3595
        %3798 = vmatprep.subr.bf16.mxu0 %v3598
        %3799 = vmatpush1.bf16.msra.mxu0 %v3597
        %3800 = vmatprep.subr.bf16.mxu0 %v3600
        %3801 = vmatpush1.bf16.msra.mxu0 %v3599
        %3802 = vmatprep.subr.bf16.mxu0 %v3602
        %3803 = vmatpush1.bf16.msra.mxu0 %v3601
        %3804 = vmatprep.subr.bf16.mxu0 %v3604
        %3805 = vmatpush1.bf16.msra.mxu0 %v3603
        %3806 = vmatprep.mubr.bf16.mxu0 %v3088
        %3807 = vmatmul.mubr.bf16.gmra.mrb[0].mxu0 %v3087
        %v3808 = vpop.f32.mrb[0].mxu0
        %v3809 = vadd.f32 %v3768, %v3808
        %v3810 = vpop.f32.mrb[0].mxu0
        %v3811 = vadd.f32 %v3770, %v3810
        %v3812 = vpop.f32.mrb[0].mxu0
        %v3813 = vpop.f32.mrb[0].mxu0
        %3814 = vdwg.mxu0
        %3815 = vmatprep.subr.bf16.mxu0 %v3606
        %3816 = vmatpush1.bf16.msra.mxu0 %v3605
        %3817 = vmatprep.subr.bf16.mxu0 %v3608
        %3818 = vmatpush1.bf16.msra.mxu0 %v3607
        %3819 = vmatprep.subr.bf16.mxu0 %v3610
        %3820 = vmatpush1.bf16.msra.mxu0 %v3609
        %3821 = vmatprep.subr.bf16.mxu0 %v3612
        %3822 = vmatpush1.bf16.msra.mxu0 %v3611
        %3823 = vmatprep.subr.bf16.mxu0 %v3614
        %3824 = vmatpush1.bf16.msra.mxu0 %v3613
        %3825 = vmatprep.subr.bf16.mxu0 %v3616
        %3826 = vmatpush1.bf16.msra.mxu0 %v3615
        %3827 = vmatprep.subr.bf16.mxu0 %v3618
        %3828 = vmatpush1.bf16.msra.mxu0 %v3617
        %3829 = vmatprep.subr.bf16.mxu0 %v3620
        %3830 = vmatpush1.bf16.msra.mxu0 %v3619
        %3831 = vmatprep.subr.bf16.mxu0 %v3622
        %3832 = vmatpush1.bf16.msra.mxu0 %v3621
        %3833 = vmatprep.subr.bf16.mxu0 %v3624
        %3834 = vmatpush1.bf16.msra.mxu0 %v3623
        %3835 = vmatprep.subr.bf16.mxu0 %v3626
        %3836 = vmatpush1.bf16.msra.mxu0 %v3625
        %3837 = vmatprep.subr.bf16.mxu0 %v3628
        %3838 = vmatpush1.bf16.msra.mxu0 %v3627
        %3839 = vmatprep.subr.bf16.mxu0 %v3630
        %3840 = vmatpush1.bf16.msra.mxu0 %v3629
        %3841 = vmatprep.subr.bf16.mxu0 %v3632
        %3842 = vmatpush1.bf16.msra.mxu0 %v3631
        %3843 = vmatprep.subr.bf16.mxu0 %v3634
        %3844 = vmatpush1.bf16.msra.mxu0 %v3633
        %3845 = vmatprep.subr.bf16.mxu0 %v3636
        %3846 = vmatpush1.bf16.msra.mxu0 %v3635
        %3847 = vmatprep.mubr.bf16.mxu0 %v3136
        %3848 = vmatmul.mubr.bf16.gmra.mrb[0].mxu0 %v3135
        %v3849 = vpop.f32.mrb[0].mxu0
        %v3850 = vadd.f32 %v3809, %v3849
        %v3851 = vpop.f32.mrb[0].mxu0
        %v3852 = vadd.f32 %v3811, %v3851
        %v3853 = vpop.f32.mrb[0].mxu0
        %v3854 = vpop.f32.mrb[0].mxu0
        %3855 = vdwg.mxu0
        %v3856 = vmul.f32 %v3850, 0.2
        %v3857 = vmul.f32 %v3852, 0.2
        %v3858 = vmax.f32 %v3850, %v3856
        %v3859 = vmax.f32 %v3852, %v3857
        %v3860 = vlaneseq
        %v3861 = vshrl.u32 %v3860, 7
        %v3862 = vsub.s32 1, %v3861
        %v3863 = vrot.slane %v3233, %v3862
        %v3864 = vlaneseq
        %v3865 = vshrl.u32 %v3864, 7
        %v3866 = vsub.s32 5, %v3865
        %v3867 = vrot.slane %v3233, %v3866
        %v3870 = vlaneseq
        %v3871 = vshrl.u32 %v3870, 7
        %v3872 = vsub.s32 1, %v3871
        %v3873 = vrot.slane %v3863, %v3872
        %v3874 = vlaneseq
        %v3875 = vshrl.u32 %v3874, 7
        %v3876 = vsub.s32 1, %v3875
        %v3877 = vrot.slane %v3867, %v3876
        %v3878 = vmul.f32 %v3858, %v3873
        %v3879 = vmul.f32 %v3859, %v3877
        %v3880 = vlaneseq
        %v3881 = vshrl.u32 %v3880, 7
        %v3882 = vsub.s32 2, %v3881
        %v3883 = vrot.slane %v3233, %v3882
        %v3884 = vlaneseq
        %v3885 = vshrl.u32 %v3884, 7
        %v3886 = vsub.s32 6, %v3885
        %v3887 = vrot.slane %v3233, %v3886
        %v3890 = vlaneseq
        %v3891 = vshrl.u32 %v3890, 7
        %v3892 = vsub.s32 2, %v3891
        %v3893 = vrot.slane %v3883, %v3892
        %v3894 = vlaneseq
        %v3895 = vshrl.u32 %v3894, 7
        %v3896 = vsub.s32 2, %v3895
        %v3897 = vrot.slane %v3887, %v3896
        %v3898 = vadd.f32 %v3878, %v3893
        %v3899 = vadd.f32 %v3879, %v3897
        %v3900 = vld [vmem:[%s13] sm:$0xf]
        %v3903 = vunpack.c.l.s4 1983009808
        %v3904 = vunpack.c.0.s8 %v3903
        %v3905 = vlaneseq
        %v3906 = vshrl.u32 %v3905, 7
        %v3907 = vsub.s32 %v3904, %v3906
        %v3908 = vrot.slane %v3900, %v3907
        %v3909 = vcombine.high %v3908, %v3908
        %v3912 = vmul.f32 %v3898, %v3908
        %v3913 = vmul.f32 %v3899, %v3909
        %v3914 = vsel %vm2991, %v3912, 0.0
        %v3915 = vsel %vm2991, %v3913, 0.0
        %v3916 = vadd.f32 %v3914, %v3915
        %3917 = vadd.xlane.f32.xlu0 %v3916
        %v3918 = vpop.xlane.xlu0 %3917
        %v3919 = vsel %vm2991, %v3918, 0.0
        %v3920 = vrot.slane %v3919, 4
        %v3921 = vadd.f32 %v3919, %v3920
        %v3922 = vrot.slane %v3921, 2
        %v3923 = vadd.f32 %v3921, %v3922
        %v3924 = vrot.slane %v3923, 1
        %v3925 = vadd.f32 %v3923, %v3924
        %v3926 = vld [vmem:[#allocation2] sm:$0x1]
        %v3927 = vadd.f32 %v3925, %v3926
        %v3928 = vsub.f32 0.0, %v3927
        %v3929 = vmul.f32 %v3928, 1.442695
        %v3930 = vpow.pop %v3929
        %v3931 = vadd.f32 %v3930, 1.0
        %v3932 = vrcp.pop %v3931
        %v3933 = vmul.f32 1.0, %v3932
        %vm3934 = vcmask 0
        %3935 = vst.msk [vmem:[%s536] sm:$0x1] %vm3934, %v3933
        %p3936 = scmp.lt.s32.totalorder %s30, 1
        %s3937 = scalar_select %p3936, %s30, 1
        %s3938 = scalar_lea.vmem %s15, %s3937
        // Predicated region
        $region93: #{discriminator_forward.1} parent=79 // pred_check
          %p3939 = pneg %p368
        $region94: #{discriminator_forward.1} parent=79 // pred_check_branch
          %3941 = sbr.rel (%p3939) target = $region96
        $region95: #{discriminator_forward.1} parent=79 // pred_region
          _
        $region96: #{discriminator_forward.1} parent=79 // pred_fallthru
          _
      $region80: #{discriminator_forward.1} parent=5 // pred_fallthru
        _
      %p3942 = scmp.le.s32.totalorder 2, %s25
      // Predicated region
      $region97: #{discriminator_forward.1} parent=5 // pred_check
        %p3943 = pneg %p3942
      $region98: #{discriminator_forward.1} parent=5 // pred_check_branch
        %3945 = sbr.rel (%p3943) target = $region100
      $region99: #{discriminator_forward.1} parent=5 // pred_region
        %s3946 = ssub.s32 %s25, 2
        // Predicated region
        $region101: #{discriminator_forward.1} parent=99 // pred_check
          %p3947 = pneg %p374
        $region102: #{discriminator_forward.1} parent=99 // pred_check_branch
          %3949 = sbr.rel (%p3947) target = $region104
        $region103: #{discriminator_forward.1} parent=99 // pred_region
          %p3950 = scmp.lt.s32.totalorder %s31, 1
          %s3951 = scalar_select %p3950, %s31, 1
          %s3952 = scalar_lea.vmem %s15, %s3951
        $region104: #{discriminator_forward.1} parent=99 // pred_fallthru
          _
      $region100: #{discriminator_forward.1} parent=5 // pred_fallthru
        _
    $region6: #{discriminator_forward.1} parent=1 // loop_footer
      %s29 = sadd.s32 1, %s25
    $region7: #{discriminator_forward.1} parent=1 // loop_footer_branch
      %24 = sbr.rel target = $region3
    $region8: #{discriminator_forward.1} parent=1 // loop_exit
      _
    %3953 = vsyncpa [#allocation4], 1
    %s3954 = scalar_lea.sflag [#allocation4], 1
    %3955 = vsyncpa %s3954, 1
    %3956 = vsyncpa [#allocation6], 1

</llo_original>
